<compile_context>
chip_gen: v6e
topology: v6e:2x2x1
jax: 0.10.0
libtpu: 0.0.40
codegen_flags: <defaults>
</compile_context>

<pallas_src>
import functools
import math

import jax
import jax.numpy as jnp
from jax.experimental import pallas as pl
from jax.experimental.pallas import tpu as pltpu


def _cdiv(a, b):
    return (a + b - 1) // b


def _xavier_uniform(key, fan_in, fan_out, dtype=jnp.float32):
    bound = math.sqrt(6.0 / (fan_in + fan_out))
    return jax.random.uniform(key, (fan_in, fan_out), dtype=dtype,
                              minval=-bound, maxval=bound)


def _rbf_mlp_kernel(dist_ref, centers_ref, w1_ref, b1_ref, w2_ref, b2_ref,
                    out_ref, *, sqrt_gamma):
    # dist_ref:    (TM, 1)     f32   raw distances
    # centers_ref: (1, NRP)    f32   sqrt(gamma) * centers; padded lanes = 1e6
    # w1_ref:      (NRP, NRP)  bf16  input-feature major: h = rbf @ w1 + b1
    # b1_ref:      (1, NRP)    f32
    # w2_ref:      (NRP, DO)   bf16
    # b2_ref:      (1, DO)     f32
    # out_ref:     (TM, DO)    f32
    d = dist_ref[...] * sqrt_gamma        # scale the (TM,1) column, not (TM,NRP)
    diff = d - centers_ref[...]           # broadcast -> (TM, NRP)
    rbf = jnp.exp(-(diff * diff))         # padded lanes: exp(-~1e12) == 0.0

    # bf16 operands, f32 MXU accumulation (kernel is MXU-bound).
    h = jnp.dot(rbf.astype(jnp.bfloat16), w1_ref[...],
                preferred_element_type=jnp.float32)
    h = h + b1_ref[...]
    h = h * jax.nn.sigmoid(h)             # SiLU in f32; Dropout(p=0) == identity

    o = jnp.dot(h.astype(jnp.bfloat16), w2_ref[...],
                preferred_element_type=jnp.float32)
    out_ref[...] = o + b2_ref[...]


class RBFEncoderPallas:
    def __init__(self, num_rbf: int = 300, cutoff: float = 30.0,
                 d_out: int = 128, dropout: float = 0.0, *, key):
        assert dropout == 0.0  # Dropout(p=0) == identity; matches reference fwd
        self.num_rbf = num_rbf
        self.d_out = d_out

        centers = jnp.linspace(0.0, cutoff, num_rbf, dtype=jnp.float32)
        delta = float(centers[1] - centers[0])
        self.gamma = 1.0 / delta ** 2
        self.sqrt_gamma = 1.0 / delta      # == sqrt(gamma)  (gamma > 0)
        self._centers = centers            # f32 copy for the reference check

        k1, k2 = jax.random.split(key)
        # PyTorch nn.Linear stores W as [out, in]; keep [in, out] so the kernel
        # computes x @ W (same math as x @ W_torch.T).
        w1 = _xavier_uniform(k1, num_rbf, num_rbf)
        b1 = jnp.zeros((num_rbf,), jnp.float32)
        w2 = _xavier_uniform(k2, num_rbf, d_out)
        b2 = jnp.zeros((d_out,), jnp.float32)
        self._w1_f32, self._b1, self._w2_f32, self._b2 = w1, b1, w2, b2

        # Pad the num_rbf axis to a multiple of 128 lanes.
        nrp = max(128, _cdiv(num_rbf, 128) * 128)
        self.nrp = nrp
        pad = nrp - num_rbf
        # Padded center lanes get a huge sentinel so exp underflows to 0.
        self.centers_p = jnp.pad(centers * self.sqrt_gamma, (0, pad),
                                 constant_values=1e6)[None, :]              # (1, NRP)
        self.w1_p = jnp.pad(w1, ((0, pad), (0, pad))).astype(jnp.bfloat16)  # (NRP, NRP)
        self.b1_p = jnp.pad(b1, (0, pad))[None, :]                          # (1, NRP) f32
        self.w2_p = jnp.pad(w2, ((0, pad), (0, 0))).astype(jnp.bfloat16)    # (NRP, DO)
        self.b2_p = b2[None, :]                                             # (1, DO)  f32

    def _pick_tm(self, m: int, max_tm: int) -> int:
        m128 = max(128, _cdiv(m, 128) * 128)
        tm = max_tm
        # Keep >= 2 grid steps whenever there is enough work (v7x shards the
        # "parallel" grid axis across its 2 TensorCores) and avoid large
        # padding waste for small m.  tm stays a multiple of 128.
        while tm > 128 and m128 < 2 * tm:
            tm //= 2
        return tm

    def __call__(self, dist, *, tm: int | None = None, max_tm: int = 512):
        orig_shape = dist.shape
        m = max(1, math.prod(orig_shape))
        d = jnp.reshape(dist.astype(jnp.float32), (m, 1))

        if tm is None:
            tm = self._pick_tm(m, max_tm)
        assert tm > 0 and tm % 128 == 0

        m_pad = _cdiv(m, tm) * tm
        if m_pad != m:
            d = jnp.pad(d, ((0, m_pad - m), (0, 0)))

        nrp, do = self.nrp, self.d_out
        grid = (m_pad // tm,)

        out = pl.pallas_call(
            functools.partial(_rbf_mlp_kernel, sqrt_gamma=self.sqrt_gamma),
            out_shape=jax.ShapeDtypeStruct((m_pad, do), jnp.float32),
            grid_spec=pltpu.PrefetchScalarGridSpec(
                num_scalar_prefetch=0,
                grid=grid,
                in_specs=[
                    pl.BlockSpec((tm, 1), lambda i: (i, 0)),      # dist column tile
                    pl.BlockSpec((1, nrp), lambda i: (0, 0)),     # scaled centers
                    pl.BlockSpec((nrp, nrp), lambda i: (0, 0)),   # w1 (bf16)
                    pl.BlockSpec((1, nrp), lambda i: (0, 0)),     # b1
                    pl.BlockSpec((nrp, do), lambda i: (0, 0)),    # w2 (bf16)
                    pl.BlockSpec((1, do), lambda i: (0, 0)),      # b2
                ],
                out_specs=pl.BlockSpec((tm, do), lambda i: (i, 0)),
            ),
            compiler_params=pltpu.CompilerParams(
                dimension_semantics=("parallel",)),
        )(d, self.centers_p, self.w1_p, self.b1_p, self.w2_p, self.b2_p)

        out = out[:m]
        return jnp.reshape(out, orig_shape + (do,))

    # Pure-JAX references for sanity checks.
    def reference_bf16(self, dist):
        """Mirrors the kernel's mixed-precision path (bf16 MXU operands)."""
        d = dist.astype(jnp.float32)[..., None] * self.sqrt_gamma
        diff = d - self._centers * self.sqrt_gamma
        rbf = jnp.exp(-(diff * diff))
        w1 = self.w1_p[:self.num_rbf, :self.num_rbf]
        w2 = self.w2_p[:self.num_rbf]
        h = jnp.dot(rbf.astype(jnp.bfloat16), w1,
                    preferred_element_type=jnp.float32) + self._b1
        h = h * jax.nn.sigmoid(h)
        return jnp.dot(h.astype(jnp.bfloat16), w2,
                       preferred_element_type=jnp.float32) + self._b2

    def reference_f32(self, dist):
        """Full-f32 math of the original PyTorch module (same params)."""
        diff = dist.astype(jnp.float32)[..., None] - self._centers
        rbf = jnp.exp(-self.gamma * diff * diff)
        h = jnp.dot(rbf, self._w1_f32,
                    precision=jax.lax.Precision.HIGHEST) + self._b1
        h = h * jax.nn.sigmoid(h)
        return jnp.dot(h, self._w2_f32,
                       precision=jax.lax.Precision.HIGHEST) + self._b2


if __name__ == "__main__":
    key = jax.random.PRNGKey(0)
    k_param, k_dist = jax.random.split(key)

    enc = RBFEncoderPallas(num_rbf=300, cutoff=30.0, d_out=128, dropout=0.0,
                           key=k_param)

    # Pairwise-distance style input: [batch=2, n=16, n=16] -> 512 distances.
    dist = jax.random.uniform(k_dist, (2, 16, 16), minval=0.0, maxval=30.0,
                              dtype=jnp.float32)

    out = jax.block_until_ready(enc(dist))
    assert out.shape == (2, 16, 16, 128), out.shape
    assert bool(jnp.all(jnp.isfinite(out)))

    # Tight check vs a reference that uses the same bf16-operand matmul path.
    ref_bf16 = enc.reference_bf16(dist)
    err_bf16 = float(jnp.max(jnp.abs(out - ref_bf16)))
    assert err_bf16 < 1e-2, f"bf16-path mismatch: {err_bf16}"

    # Loose check vs full-f32 original-module math (bf16 operands add ~0.4%
    # relative error; outputs here are O(0.1), so 5e-2 absolute is generous).
    ref_f32 = enc.reference_f32(dist)
    err_f32 = float(jnp.max(jnp.abs(out - ref_f32)))
    assert err_f32 < 5e-2, f"f32 reference mismatch: {err_f32}"

    print("KERNEL_OK")
</pallas_src>

<mosaic_0001>
module attributes {stable_mosaic.version = 11 : i64} {
  func.func @_rbf_mlp_kernel(%arg0: i32, %arg1: memref<256x1xf32, #tpu.memory_space<vmem>>, %arg2: memref<1x384xf32, #tpu.memory_space<vmem>>, %arg3: memref<384x384xbf16, #tpu.memory_space<vmem>>, %arg4: memref<1x384xf32, #tpu.memory_space<vmem>>, %arg5: memref<384x128xbf16, #tpu.memory_space<vmem>>, %arg6: memref<1x128xf32, #tpu.memory_space<vmem>>, %arg7: memref<256x128xf32, #tpu.memory_space<vmem>>) attributes {dimension_semantics = [#tpu.dimension_semantics<parallel>], iteration_bounds = array<i64: 2>, scalar_prefetch = 0 : i64, scratch_operands = 0 : i64, tpu.core_type = #tpu.core_type<tc>, window_params = [{transform_indices = @transform_0, window_bounds = array<i64: 256, 1>}, {pipeline_mode = #tpu.pipeline_mode<synchronous>, transform_indices = @transform_1, window_bounds = array<i64: 1, 384>}, {pipeline_mode = #tpu.pipeline_mode<synchronous>, transform_indices = @transform_2, window_bounds = array<i64: 384, 384>}, {pipeline_mode = #tpu.pipeline_mode<synchronous>, transform_indices = @transform_3, window_bounds = array<i64: 1, 384>}, {pipeline_mode = #tpu.pipeline_mode<synchronous>, transform_indices = @transform_4, window_bounds = array<i64: 384, 128>}, {pipeline_mode = #tpu.pipeline_mode<synchronous>, transform_indices = @transform_5, window_bounds = array<i64: 1, 128>}, {transform_indices = @transform_6, window_bounds = array<i64: 256, 128>}]} {
    %c0 = arith.constant 0 : index
    %c0_0 = arith.constant 0 : index
    %0 = vector.load %arg1[%c0, %c0_0] : memref<256x1xf32, #tpu.memory_space<vmem>>, vector<256x1xf32>
    %cst = arith.constant 9.96666622 : f32
    %1 = vector.broadcast %cst : f32 to vector<256x1xf32>
    %2 = arith.mulf %0, %1 : vector<256x1xf32>
    %c0_1 = arith.constant 0 : index
    %c0_2 = arith.constant 0 : index
    %3 = vector.load %arg2[%c0_1, %c0_2] : memref<1x384xf32, #tpu.memory_space<vmem>>, vector<1x384xf32>
    %4 = vector.broadcast %2 : vector<256x1xf32> to vector<256x384xf32>
    %5 = vector.broadcast %3 : vector<1x384xf32> to vector<256x384xf32>
    %6 = arith.subf %4, %5 : vector<256x384xf32>
    %7 = arith.mulf %6, %6 : vector<256x384xf32>
    %cst_3 = arith.constant 0.000000e+00 : f32
    %8 = vector.broadcast %cst_3 : f32 to vector<256x384xf32>
    %9 = arith.subf %8, %7 : vector<256x384xf32>
    %10 = math.exp %9 : vector<256x384xf32>
    %11 = arith.truncf %10 : vector<256x384xf32> to vector<256x384xbf16>
    %c0_4 = arith.constant 0 : index
    %c0_5 = arith.constant 0 : index
    %12 = vector.load %arg3[%c0_4, %c0_5] : memref<384x384xbf16, #tpu.memory_space<vmem>>, vector<384x384xbf16>
    %cst_6 = arith.constant dense<0.000000e+00> : vector<256x384xf32>
    %13 = tpu.matmul %11, %12, %cst_6 {dimension_numbers = #tpu.dot_dimension_numbers<[1], [0], [0], [1], [0, 0, 1, 1], [], []>} : vector<256x384xbf16>, vector<384x384xbf16>, vector<256x384xf32> -> vector<256x384xf32>
    %c0_7 = arith.constant 0 : index
    %c0_8 = arith.constant 0 : index
    %14 = vector.load %arg4[%c0_7, %c0_8] : memref<1x384xf32, #tpu.memory_space<vmem>>, vector<1x384xf32>
    %15 = vector.broadcast %14 : vector<1x384xf32> to vector<256x384xf32>
    %16 = arith.addf %13, %15 : vector<256x384xf32>
    %17 = arith.negf %16 : vector<256x384xf32>
    %18 = math.exp %17 : vector<256x384xf32>
    %cst_9 = arith.constant 1.000000e+00 : f32
    %19 = vector.broadcast %cst_9 : f32 to vector<256x384xf32>
    %20 = arith.addf %19, %18 : vector<256x384xf32>
    %21 = arith.divf %19, %20 : vector<256x384xf32>
    %22 = arith.mulf %16, %21 : vector<256x384xf32>
    %23 = arith.truncf %22 : vector<256x384xf32> to vector<256x384xbf16>
    %c0_10 = arith.constant 0 : index
    %c0_11 = arith.constant 0 : index
    %24 = vector.load %arg5[%c0_10, %c0_11] : memref<384x128xbf16, #tpu.memory_space<vmem>>, vector<384x128xbf16>
    %cst_12 = arith.constant dense<0.000000e+00> : vector<256x128xf32>
    %25 = tpu.matmul %23, %24, %cst_12 {dimension_numbers = #tpu.dot_dimension_numbers<[1], [0], [0], [1], [0, 0, 1, 1], [], []>} : vector<256x384xbf16>, vector<384x128xbf16>, vector<256x128xf32> -> vector<256x128xf32>
    %c0_13 = arith.constant 0 : index
    %c0_14 = arith.constant 0 : index
    %26 = vector.load %arg6[%c0_13, %c0_14] : memref<1x128xf32, #tpu.memory_space<vmem>>, vector<1x128xf32>
    %27 = vector.broadcast %26 : vector<1x128xf32> to vector<256x128xf32>
    %28 = arith.addf %25, %27 : vector<256x128xf32>
    %c0_15 = arith.constant 0 : index
    %c0_16 = arith.constant 0 : index
    %29 = vector.load %arg7[%c0_15, %c0_16] : memref<256x128xf32, #tpu.memory_space<vmem>>, vector<256x128xf32>
    tpu.vector_store %arg7[%c0_15, %c0_16], %28 {strides = array<i32>} : memref<256x128xf32, #tpu.memory_space<vmem>>, vector<256x128xf32>,
    return
  }
  func.func @transform_0(%arg0: i32) -> (i32, i32) {
    %c0_i32 = arith.constant 0 : i32
    %c0_i32_0 = arith.constant 0 : i32
    return %arg0, %c0_i32 : i32, i32
  }
  func.func @transform_1(%arg0: i32) -> (i32, i32) {
    %c0_i32 = arith.constant 0 : i32
    %c0_i32_0 = arith.constant 0 : i32
    %c0_i32_1 = arith.constant 0 : i32
    return %c0_i32, %c0_i32_0 : i32, i32
  }
  func.func @transform_2(%arg0: i32) -> (i32, i32) {
    %c0_i32 = arith.constant 0 : i32
    %c0_i32_0 = arith.constant 0 : i32
    %c0_i32_1 = arith.constant 0 : i32
    return %c0_i32, %c0_i32_0 : i32, i32
  }
  func.func @transform_3(%arg0: i32) -> (i32, i32) {
    %c0_i32 = arith.constant 0 : i32
    %c0_i32_0 = arith.constant 0 : i32
    %c0_i32_1 = arith.constant 0 : i32
    return %c0_i32, %c0_i32_0 : i32, i32
  }
  func.func @transform_4(%arg0: i32) -> (i32, i32) {
    %c0_i32 = arith.constant 0 : i32
    %c0_i32_0 = arith.constant 0 : i32
    %c0_i32_1 = arith.constant 0 : i32
    return %c0_i32, %c0_i32_0 : i32, i32
  }
  func.func @transform_5(%arg0: i32) -> (i32, i32) {
    %c0_i32 = arith.constant 0 : i32
    %c0_i32_0 = arith.constant 0 : i32
    %c0_i32_1 = arith.constant 0 : i32
    return %c0_i32, %c0_i32_0 : i32, i32
  }
  func.func @transform_6(%arg0: i32) -> (i32, i32) {
    %c0_i32 = arith.constant 0 : i32
    %c0_i32_0 = arith.constant 0 : i32
    return %arg0, %c0_i32 : i32, i32
  }
}

</mosaic_0001>

<llo_original>
// kernel: tpu_custom_call.1
$region0: #{tpu_custom_call.1}
  #allocation0 [shape = 'u32[]', space=smem, size = 0x4, offset = 0x4, fixed_abs, tag = 'smem constant byte address 0x4 - core index']
  #allocation1 [shape = 'u32[144,128]{1,0:T(1,128)}', space=vmem, size = 0x12000, scoped, tag = 'internal scratch']
  %s0 = inlined_call_operand.vmem [shape: f32[512,1], index: 0, kind: input, shape index: {}]
  %s1 = inlined_call_operand.vmem [shape: f32[1,384], index: 1, kind: input, shape index: {}]
  %s2 = inlined_call_operand.hbm [shape: bf16[384,384], index: 2, kind: input, shape index: {}]
  %s3 = inlined_call_operand.vmem [shape: f32[1,384], index: 3, kind: input, shape index: {}]
  %s4 = inlined_call_operand.vmem [shape: bf16[384,128], index: 4, kind: input, shape index: {}]
  %s5 = inlined_call_operand.vmem [shape: f32[1,128], index: 5, kind: input, shape index: {}]
  %s6 = inlined_call_operand.hbm [shape: f32[512,128], index: 6, kind: output, shape index: {}]
  %s7 = sld [smem:[#allocation0]]
  $region61: #{tpu_custom_call.1} parent=0
    _
  %s9 = ssub.s32 1, %s7
  %s10 = scalar_select 0, %s9, %s7
  $region1: #{tpu_custom_call.1} parent=0
    #allocation2 [shape = 'u8[294912]{0}', space=vmem, size = 0x48000, scoped, tag = 'input window, operand 2, single buffered']
    #allocation3 [shape = 's32[2]{0}', space=sflag, size = 0x8, scoped, tag = 'scoped memory for tpu_custom_call.1']
    #allocation4 [shape = 's32[2]{0}', space=sflag, size = 0x8, scoped, tag = 'scoped memory for tpu_custom_call.1']
    #allocation5 [shape = 'u8[262144]{0}', space=vmem, size = 0x40000, scoped, tag = 'output window, operand 0']
    %11 = vsyncpa [#allocation3], 0
    %12 = vsyncpa [#allocation4], 0
    %s13 = scalar_lea.sflag [#allocation4], 1
    %14 = vsyncpa %s13, 0
    loop: start=0, step=1, limit=4
    $region2: #{tpu_custom_call.1} parent=1 // loop_pre_header
      _
    $region3: #{tpu_custom_call.1} parent=1 // loop_header
      %s16 = sphi 0, %s20
      %p17 = scmp.ge.s32.totalorder %s16, 4
      %s26 = sphi 0, %s28
      %s29 = sphi 0, %s26
      %s30 = sphi 0, %s29
      %s46 = sphi 0, %s30
      %s50 = sphi 0, %s50
      %s52 = sphi 0, %s50
      %s53 = sphi 0, %s52
      %s67 = sphi 0, %s53
      %s71 = sphi 0, %s71
      %s73 = sphi 0, %s71
      %s74 = sphi 0, %s73
      %s88 = sphi 0, %s74
      %s92 = sphi 0, %s92
      %s94 = sphi 0, %s92
      %s95 = sphi 0, %s94
      %s109 = sphi 0, %s95
      %s113 = sphi 0, %s113
      %s115 = sphi 0, %s113
      %s116 = sphi 0, %s115
      %s130 = sphi 0, %s116
      %s134 = sphi 0, %s134
      %s136 = sphi 0, %s134
      %s137 = sphi 0, %s136
      %s151 = sphi 0, %s137
      %s157 = sphi 0, %s159
      %s160 = sphi 0, %s157
      %s161 = sphi 0, %s160
      %s177 = sphi 0, %s161
    $region4: #{tpu_custom_call.1} parent=1 // loop_header_branch
      %19 = sbr.rel (%p17) target = $region8
    $region5: #{tpu_custom_call.1} parent=1 // loop_body
      %s21 = ssub.s32 %s16, 1
      %s22 = ssub.s32 %s16, 2
      %s23 = sadd.s32 %s16, 1
      %s24 = ssub.s32 %s16, %s23
      %p25 = scmp.eq.s32.totalorder %s24, 0
      %s27 = sadd.s32 %s26, 1
      %s28 = scalar_select %p25, %s26, %s27
      %p31 = pneg %p25
      %p32 = scmp.eq.s32.totalorder %s16, 1
      %p33 = por %p31, %p32
      %p34 = scmp.ne.s32.totalorder %s26, %s29
      %p35 = scmp.eq.s32.totalorder %s16, 0
      %p36 = por %p34, %p35
      %p37 = scmp.ne.s32.totalorder %s26, %s29
      %p38 = scmp.eq.s32.totalorder %s21, 1
      %p39 = por %p37, %p38
      %p40 = scmp.ne.s32.totalorder %s29, %s30
      %p41 = scmp.eq.s32.totalorder %s21, 0
      %p42 = por %p40, %p41
      %p43 = scmp.ne.s32.totalorder %s29, %s30
      %p44 = scmp.eq.s32.totalorder %s22, 1
      %p45 = por %p43, %p44
      %p47 = scmp.ne.s32.totalorder %s30, %s46
      %p48 = scmp.eq.s32.totalorder %s22, 0
      %p49 = por %p47, %p48
      %s51 = sadd.s32 %s50, 1
      %p54 = scmp.eq.s32.totalorder %s16, 1
      %p55 = scmp.ne.s32.totalorder %s50, %s52
      %p56 = scmp.eq.s32.totalorder %s16, 0
      %p57 = por %p55, %p56
      %p58 = scmp.ne.s32.totalorder %s50, %s52
      %p59 = scmp.eq.s32.totalorder %s21, 1
      %p60 = por %p58, %p59
      %p61 = scmp.ne.s32.totalorder %s52, %s53
      %p62 = scmp.eq.s32.totalorder %s21, 0
      %p63 = por %p61, %p62
      %p64 = scmp.ne.s32.totalorder %s52, %s53
      %p65 = scmp.eq.s32.totalorder %s22, 1
      %p66 = por %p64, %p65
      %p68 = scmp.ne.s32.totalorder %s53, %s67
      %p69 = scmp.eq.s32.totalorder %s22, 0
      %p70 = por %p68, %p69
      %s72 = sadd.s32 %s71, 1
      %p75 = scmp.eq.s32.totalorder %s16, 1
      %p76 = scmp.ne.s32.totalorder %s71, %s73
      %p77 = scmp.eq.s32.totalorder %s16, 0
      %p78 = por %p76, %p77
      %p79 = scmp.ne.s32.totalorder %s71, %s73
      %p80 = scmp.eq.s32.totalorder %s21, 1
      %p81 = por %p79, %p80
      %p82 = scmp.ne.s32.totalorder %s73, %s74
      %p83 = scmp.eq.s32.totalorder %s21, 0
      %p84 = por %p82, %p83
      %p85 = scmp.ne.s32.totalorder %s73, %s74
      %p86 = scmp.eq.s32.totalorder %s22, 1
      %p87 = por %p85, %p86
      %p89 = scmp.ne.s32.totalorder %s74, %s88
      %p90 = scmp.eq.s32.totalorder %s22, 0
      %p91 = por %p89, %p90
      %s93 = sadd.s32 %s92, 1
      %p96 = scmp.eq.s32.totalorder %s16, 1
      %p97 = scmp.ne.s32.totalorder %s92, %s94
      %p98 = scmp.eq.s32.totalorder %s16, 0
      %p99 = por %p97, %p98
      %p100 = scmp.ne.s32.totalorder %s92, %s94
      %p101 = scmp.eq.s32.totalorder %s21, 1
      %p102 = por %p100, %p101
      %p103 = scmp.ne.s32.totalorder %s94, %s95
      %p104 = scmp.eq.s32.totalorder %s21, 0
      %p105 = por %p103, %p104
      %p106 = scmp.ne.s32.totalorder %s94, %s95
      %p107 = scmp.eq.s32.totalorder %s22, 1
      %p108 = por %p106, %p107
      %p110 = scmp.ne.s32.totalorder %s95, %s109
      %p111 = scmp.eq.s32.totalorder %s22, 0
      %p112 = por %p110, %p111
      %s114 = sadd.s32 %s113, 1
      %p117 = scmp.eq.s32.totalorder %s16, 1
      %p118 = scmp.ne.s32.totalorder %s113, %s115
      %p119 = scmp.eq.s32.totalorder %s16, 0
      %p120 = por %p118, %p119
      %p121 = scmp.ne.s32.totalorder %s113, %s115
      %p122 = scmp.eq.s32.totalorder %s21, 1
      %p123 = por %p121, %p122
      %p124 = scmp.ne.s32.totalorder %s115, %s116
      %p125 = scmp.eq.s32.totalorder %s21, 0
      %p126 = por %p124, %p125
      %p127 = scmp.ne.s32.totalorder %s115, %s116
      %p128 = scmp.eq.s32.totalorder %s22, 1
      %p129 = por %p127, %p128
      %p131 = scmp.ne.s32.totalorder %s116, %s130
      %p132 = scmp.eq.s32.totalorder %s22, 0
      %p133 = por %p131, %p132
      %s135 = sadd.s32 %s134, 1
      %p138 = scmp.eq.s32.totalorder %s16, 1
      %p139 = scmp.ne.s32.totalorder %s134, %s136
      %p140 = scmp.eq.s32.totalorder %s16, 0
      %p141 = por %p139, %p140
      %p142 = scmp.ne.s32.totalorder %s134, %s136
      %p143 = scmp.eq.s32.totalorder %s21, 1
      %p144 = por %p142, %p143
      %p145 = scmp.ne.s32.totalorder %s136, %s137
      %p146 = scmp.eq.s32.totalorder %s21, 0
      %p147 = por %p145, %p146
      %p148 = scmp.ne.s32.totalorder %s136, %s137
      %p149 = scmp.eq.s32.totalorder %s22, 1
      %p150 = por %p148, %p149
      %p152 = scmp.ne.s32.totalorder %s137, %s151
      %p153 = scmp.eq.s32.totalorder %s22, 0
      %p154 = por %p152, %p153
      %s155 = ssub.s32 %s16, %s23
      %p156 = scmp.eq.s32.totalorder %s155, 0
      %s158 = sadd.s32 %s157, 1
      %s159 = scalar_select %p156, %s157, %s158
      %p162 = pneg %p156
      %p163 = scmp.eq.s32.totalorder %s16, 1
      %p164 = por %p162, %p163
      %p165 = scmp.ne.s32.totalorder %s157, %s160
      %p166 = scmp.eq.s32.totalorder %s16, 0
      %p167 = por %p165, %p166
      %p168 = scmp.ne.s32.totalorder %s157, %s160
      %p169 = scmp.eq.s32.totalorder %s21, 1
      %p170 = por %p168, %p169
      %p171 = scmp.ne.s32.totalorder %s160, %s161
      %p172 = scmp.eq.s32.totalorder %s21, 0
      %p173 = por %p171, %p172
      %p174 = scmp.ne.s32.totalorder %s160, %s161
      %p175 = scmp.eq.s32.totalorder %s22, 1
      %p176 = por %p174, %p175
      %p178 = scmp.ne.s32.totalorder %s161, %s177
      %p179 = scmp.eq.s32.totalorder %s22, 0
      %p180 = por %p178, %p179
      %p181 = scmp.le.s32.totalorder 1, %s16
      %p182 = scmp.lt.s32.totalorder %s16, 3
      %p183 = pnand %p181, %p182
      %p184 = pneg %p183
      // Predicated region
      $region9: #{tpu_custom_call.1} parent=5 // pred_check
        _
      $region10: #{tpu_custom_call.1} parent=5 // pred_check_branch
        %186 = sbr.rel (%p183) target = $region12
      $region11: #{tpu_custom_call.1} parent=5 // pred_region
        %s187 = ssub.s32 %s16, 1
        // Predicated region
        $region13: #{tpu_custom_call.1} parent=11 // pred_check
          %p188 = pneg %p63
        $region14: #{tpu_custom_call.1} parent=11 // pred_check_branch
          %190 = sbr.rel (%p188) target = $region16
        $region15: #{tpu_custom_call.1} parent=11 // pred_region
          _
        $region16: #{tpu_custom_call.1} parent=11 // pred_fallthru
          _
        // Predicated region
        $region17: #{tpu_custom_call.1} parent=11 // pred_check
          %p191 = pneg %p84
        $region18: #{tpu_custom_call.1} parent=11 // pred_check_branch
          %193 = sbr.rel (%p191) target = $region20
        $region19: #{tpu_custom_call.1} parent=11 // pred_region
          %s195 = ssub.s32 9216, 9216
          %196 = vsyncadd [#allocation3], %s195
          %s197 = sshll.u32 [#allocation2], 4
          %s198 = int_to_ptr.vmem [resolvable:$true] %s197
          %203 = dma.hbm_to_vmem [thread:$0]  %s2, 9216, %s198, [#allocation3], 192, 192, 12
        $region20: #{tpu_custom_call.1} parent=11 // pred_fallthru
          _
        // Predicated region
        $region21: #{tpu_custom_call.1} parent=11 // pred_check
          %p204 = pneg %p105
        $region22: #{tpu_custom_call.1} parent=11 // pred_check_branch
          %206 = sbr.rel (%p204) target = $region24
        $region23: #{tpu_custom_call.1} parent=11 // pred_region
          _
        $region24: #{tpu_custom_call.1} parent=11 // pred_fallthru
          _
        // Predicated region
        $region25: #{tpu_custom_call.1} parent=11 // pred_check
          %p207 = pneg %p126
        $region26: #{tpu_custom_call.1} parent=11 // pred_check_branch
          %209 = sbr.rel (%p207) target = $region28
        $region27: #{tpu_custom_call.1} parent=11 // pred_region
          _
        $region28: #{tpu_custom_call.1} parent=11 // pred_fallthru
          _
        // Predicated region
        $region29: #{tpu_custom_call.1} parent=11 // pred_check
          %p210 = pneg %p147
        $region30: #{tpu_custom_call.1} parent=11 // pred_check_branch
          %212 = sbr.rel (%p210) target = $region32
        $region31: #{tpu_custom_call.1} parent=11 // pred_region
          _
        $region32: #{tpu_custom_call.1} parent=11 // pred_fallthru
          _
      $region12: #{tpu_custom_call.1} parent=5 // pred_fallthru
        _
      %p213 = scmp.lt.s32.totalorder %s16, 2
      // Predicated region
      $region33: #{tpu_custom_call.1} parent=5 // pred_check
        %p214 = pneg %p213
      $region34: #{tpu_custom_call.1} parent=5 // pred_check_branch
        %216 = sbr.rel (%p214) target = $region36
      $region35: #{tpu_custom_call.1} parent=5 // pred_region
        // Predicated region
        $region37: #{tpu_custom_call.1} parent=35 // pred_check
          %p217 = pneg %p36
        $region38: #{tpu_custom_call.1} parent=35 // pred_check_branch
          %219 = sbr.rel (%p217) target = $region40
        $region39: #{tpu_custom_call.1} parent=35 // pred_region
          %s220 = smul.u32 32, %s16
          %p221 = scmp.lt.s32.totalorder %s220, 63
          %s222 = scalar_select %p221, %s220, 63
          %s223 = smul.addr %s222, 8
          %s224 = scalar_lea.vmem %s0, %s223
          %s225 = smul.u32 32, %s16
        $region40: #{tpu_custom_call.1} parent=35 // pred_fallthru
          _
      $region36: #{tpu_custom_call.1} parent=5 // pred_fallthru
        _
      %p226 = scmp.le.s32.totalorder 1, %s16
      %p227 = scmp.lt.s32.totalorder %s16, 3
      %p228 = pnand %p226, %p227
      %p229 = pneg %p228
      // Predicated region
      $region41: #{tpu_custom_call.1} parent=5 // pred_check
        _
      $region42: #{tpu_custom_call.1} parent=5 // pred_check_branch
        %231 = sbr.rel (%p228) target = $region44
      $region43: #{tpu_custom_call.1} parent=5 // pred_region
        %s232 = ssub.s32 %s16, 1
        // Predicated region
        $region45: #{tpu_custom_call.1} parent=43 // pred_check
          %p233 = pneg %p84
        $region46: #{tpu_custom_call.1} parent=43 // pred_check_branch
          %235 = sbr.rel (%p233) target = $region48
        $region47: #{tpu_custom_call.1} parent=43 // pred_region
          %236 = dma.done [#allocation3], 9216
        $region48: #{tpu_custom_call.1} parent=43 // pred_fallthru
          _
        %s237 = smul.u32 32, %s21
        %p238 = scmp.lt.s32.totalorder %s237, 63
        %s239 = scalar_select %p238, %s237, 63
        %s240 = smul.addr %s239, 8
        %s241 = scalar_lea.vmem %s0, %s240
        %p242 = pneg %p42
        %p243 = pneg %p39
        %p244 = pneg %p63
        %p245 = pneg %p60
        %p246 = pneg %p84
        %p247 = pneg %p81
        %p248 = pneg %p105
        %p249 = pneg %p102
        %p250 = pneg %p126
        %p251 = pneg %p123
        %p252 = pneg %p147
        %p253 = pneg %p144
        %p254 = pneg %p173
        %p255 = pneg %p170
        %s256 = sand.u32 %s160, 1
        %s257 = scalar_lea.sflag [#allocation4], %s256
        %s258 = sand.u32 %s160, 1
        %s259 = smul.addr %s258, 256
        %s260 = scalar_lea.vmem [#allocation5], %s259
        %s261 = smul.u32 32, %s21
        %p262 = scmp.lt.s32.totalorder %s261, 63
        %s263 = scalar_select %p262, %s261, 63
        %s264 = smul.addr %s263, 8
        %s265 = scalar_lea.vmem %s0, %s264
        %s266 = smul.u32 32, %s21
        %s267 = smul.u32 32, %s21
        %v269 = vld [vmem:[%s265] sm:$0xff]
        %v270 = vld [vmem:[%s265 + $0x8] sm:$0xff]
        %v271 = vld [vmem:[%s265 + $0x10] sm:$0xff]
        %v272 = vld [vmem:[%s265 + $0x18] sm:$0xff]
        %v273 = vld [vmem:[%s265 + $0x20] sm:$0xff]
        %v274 = vld [vmem:[%s265 + $0x28] sm:$0xff]
        %v275 = vld [vmem:[%s265 + $0x30] sm:$0xff]
        %v276 = vld [vmem:[%s265 + $0x38] sm:$0xff]
        %v277 = vld [vmem:[%s265 + $0x40] sm:$0xff]
        %v278 = vld [vmem:[%s265 + $0x48] sm:$0xff]
        %v279 = vld [vmem:[%s265 + $0x50] sm:$0xff]
        %v280 = vld [vmem:[%s265 + $0x58] sm:$0xff]
        %v281 = vld [vmem:[%s265 + $0x60] sm:$0xff]
        %v282 = vld [vmem:[%s265 + $0x68] sm:$0xff]
        %v283 = vld [vmem:[%s265 + $0x70] sm:$0xff]
        %v284 = vld [vmem:[%s265 + $0x78] sm:$0xff]
        %v285 = vld [vmem:[%s265 + $0x80] sm:$0xff]
        %v286 = vld [vmem:[%s265 + $0x88] sm:$0xff]
        %v287 = vld [vmem:[%s265 + $0x90] sm:$0xff]
        %v288 = vld [vmem:[%s265 + $0x98] sm:$0xff]
        %v289 = vld [vmem:[%s265 + $0xa0] sm:$0xff]
        %v290 = vld [vmem:[%s265 + $0xa8] sm:$0xff]
        %v291 = vld [vmem:[%s265 + $0xb0] sm:$0xff]
        %v292 = vld [vmem:[%s265 + $0xb8] sm:$0xff]
        %v293 = vld [vmem:[%s265 + $0xc0] sm:$0xff]
        %v294 = vld [vmem:[%s265 + $0xc8] sm:$0xff]
        %v295 = vld [vmem:[%s265 + $0xd0] sm:$0xff]
        %v296 = vld [vmem:[%s265 + $0xd8] sm:$0xff]
        %v297 = vld [vmem:[%s265 + $0xe0] sm:$0xff]
        %v298 = vld [vmem:[%s265 + $0xe8] sm:$0xff]
        %v299 = vld [vmem:[%s265 + $0xf0] sm:$0xff]
        %v300 = vld [vmem:[%s265 + $0xf8] sm:$0xff]
        %v301 = vmul.f32 %v269, 9.966666
        %v302 = vmul.f32 %v270, 9.966666
        %v303 = vmul.f32 %v271, 9.966666
        %v304 = vmul.f32 %v272, 9.966666
        %v305 = vmul.f32 %v273, 9.966666
        %v306 = vmul.f32 %v274, 9.966666
        %v307 = vmul.f32 %v275, 9.966666
        %v308 = vmul.f32 %v276, 9.966666
        %v309 = vmul.f32 %v277, 9.966666
        %v310 = vmul.f32 %v278, 9.966666
        %v311 = vmul.f32 %v279, 9.966666
        %v312 = vmul.f32 %v280, 9.966666
        %v313 = vmul.f32 %v281, 9.966666
        %v314 = vmul.f32 %v282, 9.966666
        %v315 = vmul.f32 %v283, 9.966666
        %v316 = vmul.f32 %v284, 9.966666
        %v317 = vmul.f32 %v285, 9.966666
        %v318 = vmul.f32 %v286, 9.966666
        %v319 = vmul.f32 %v287, 9.966666
        %v320 = vmul.f32 %v288, 9.966666
        %v321 = vmul.f32 %v289, 9.966666
        %v322 = vmul.f32 %v290, 9.966666
        %v323 = vmul.f32 %v291, 9.966666
        %v324 = vmul.f32 %v292, 9.966666
        %v325 = vmul.f32 %v293, 9.966666
        %v326 = vmul.f32 %v294, 9.966666
        %v327 = vmul.f32 %v295, 9.966666
        %v328 = vmul.f32 %v296, 9.966666
        %v329 = vmul.f32 %v297, 9.966666
        %v330 = vmul.f32 %v298, 9.966666
        %v331 = vmul.f32 %v299, 9.966666
        %v332 = vmul.f32 %v300, 9.966666
        %v333 = vld [vmem:[%s1] sm:$0x7]
        %335 = vset.pattern.permute.xlu0 0
        %336 = vperm.xlu0 %335, %v301
        %v337 = vpop.permute.xlu0 %336
        %340 = vset.pattern.permute.xlu0 0
        %341 = vperm.xlu0 %340, %v302
        %v342 = vpop.permute.xlu0 %341
        %345 = vset.pattern.permute.xlu0 0
        %346 = vperm.xlu0 %345, %v303
        %v347 = vpop.permute.xlu0 %346
        %350 = vset.pattern.permute.xlu0 0
        %351 = vperm.xlu0 %350, %v304
        %v352 = vpop.permute.xlu0 %351
        %355 = vset.pattern.permute.xlu0 0
        %356 = vperm.xlu0 %355, %v305
        %v357 = vpop.permute.xlu0 %356
        %360 = vset.pattern.permute.xlu0 0
        %361 = vperm.xlu0 %360, %v306
        %v362 = vpop.permute.xlu0 %361
        %365 = vset.pattern.permute.xlu0 0
        %366 = vperm.xlu0 %365, %v307
        %v367 = vpop.permute.xlu0 %366
        %370 = vset.pattern.permute.xlu0 0
        %371 = vperm.xlu0 %370, %v308
        %v372 = vpop.permute.xlu0 %371
        %375 = vset.pattern.permute.xlu0 0
        %376 = vperm.xlu0 %375, %v309
        %v377 = vpop.permute.xlu0 %376
        %380 = vset.pattern.permute.xlu0 0
        %381 = vperm.xlu0 %380, %v310
        %v382 = vpop.permute.xlu0 %381
        %385 = vset.pattern.permute.xlu0 0
        %386 = vperm.xlu0 %385, %v311
        %v387 = vpop.permute.xlu0 %386
        %390 = vset.pattern.permute.xlu0 0
        %391 = vperm.xlu0 %390, %v312
        %v392 = vpop.permute.xlu0 %391
        %395 = vset.pattern.permute.xlu0 0
        %396 = vperm.xlu0 %395, %v313
        %v397 = vpop.permute.xlu0 %396
        %400 = vset.pattern.permute.xlu0 0
        %401 = vperm.xlu0 %400, %v314
        %v402 = vpop.permute.xlu0 %401
        %405 = vset.pattern.permute.xlu0 0
        %406 = vperm.xlu0 %405, %v315
        %v407 = vpop.permute.xlu0 %406
        %410 = vset.pattern.permute.xlu0 0
        %411 = vperm.xlu0 %410, %v316
        %v412 = vpop.permute.xlu0 %411
        %415 = vset.pattern.permute.xlu0 0
        %416 = vperm.xlu0 %415, %v317
        %v417 = vpop.permute.xlu0 %416
        %420 = vset.pattern.permute.xlu0 0
        %421 = vperm.xlu0 %420, %v318
        %v422 = vpop.permute.xlu0 %421
        %425 = vset.pattern.permute.xlu0 0
        %426 = vperm.xlu0 %425, %v319
        %v427 = vpop.permute.xlu0 %426
        %430 = vset.pattern.permute.xlu0 0
        %431 = vperm.xlu0 %430, %v320
        %v432 = vpop.permute.xlu0 %431
        %435 = vset.pattern.permute.xlu0 0
        %436 = vperm.xlu0 %435, %v321
        %v437 = vpop.permute.xlu0 %436
        %440 = vset.pattern.permute.xlu0 0
        %441 = vperm.xlu0 %440, %v322
        %v442 = vpop.permute.xlu0 %441
        %445 = vset.pattern.permute.xlu0 0
        %446 = vperm.xlu0 %445, %v323
        %v447 = vpop.permute.xlu0 %446
        %450 = vset.pattern.permute.xlu0 0
        %451 = vperm.xlu0 %450, %v324
        %v452 = vpop.permute.xlu0 %451
        %455 = vset.pattern.permute.xlu0 0
        %456 = vperm.xlu0 %455, %v325
        %v457 = vpop.permute.xlu0 %456
        %460 = vset.pattern.permute.xlu0 0
        %461 = vperm.xlu0 %460, %v326
        %v462 = vpop.permute.xlu0 %461
        %465 = vset.pattern.permute.xlu0 0
        %466 = vperm.xlu0 %465, %v327
        %v467 = vpop.permute.xlu0 %466
        %470 = vset.pattern.permute.xlu0 0
        %471 = vperm.xlu0 %470, %v328
        %v472 = vpop.permute.xlu0 %471
        %475 = vset.pattern.permute.xlu0 0
        %476 = vperm.xlu0 %475, %v329
        %v477 = vpop.permute.xlu0 %476
        %480 = vset.pattern.permute.xlu0 0
        %481 = vperm.xlu0 %480, %v330
        %v482 = vpop.permute.xlu0 %481
        %485 = vset.pattern.permute.xlu0 0
        %486 = vperm.xlu0 %485, %v331
        %v487 = vpop.permute.xlu0 %486
        %490 = vset.pattern.permute.xlu0 0
        %491 = vperm.xlu0 %490, %v332
        %v492 = vpop.permute.xlu0 %491
        %v495 = vlaneseq
        %v496 = vshrl.u32 %v495, 7
        %v497 = vsub.s32 0, %v496
        %v498 = vrot.slane %v333, %v497
        %v499 = vlaneseq
        %v500 = vshrl.u32 %v499, 7
        %v501 = vsub.s32 1, %v500
        %v502 = vrot.slane %v333, %v501
        %v503 = vlaneseq
        %v504 = vshrl.u32 %v503, 7
        %v505 = vsub.s32 2, %v504
        %v506 = vrot.slane %v333, %v505
        %v510 = vsub.f32 %v337, %v498
        %v511 = vsub.f32 %v337, %v502
        %v512 = vsub.f32 %v337, %v506
        %v513 = vsub.f32 %v342, %v498
        %v514 = vsub.f32 %v342, %v502
        %v515 = vsub.f32 %v342, %v506
        %v516 = vsub.f32 %v347, %v498
        %v517 = vsub.f32 %v347, %v502
        %v518 = vsub.f32 %v347, %v506
        %v519 = vsub.f32 %v352, %v498
        %v520 = vsub.f32 %v352, %v502
        %v521 = vsub.f32 %v352, %v506
        %v522 = vsub.f32 %v357, %v498
        %v523 = vsub.f32 %v357, %v502
        %v524 = vsub.f32 %v357, %v506
        %v525 = vsub.f32 %v362, %v498
        %v526 = vsub.f32 %v362, %v502
        %v527 = vsub.f32 %v362, %v506
        %v528 = vsub.f32 %v367, %v498
        %v529 = vsub.f32 %v367, %v502
        %v530 = vsub.f32 %v367, %v506
        %v531 = vsub.f32 %v372, %v498
        %v532 = vsub.f32 %v372, %v502
        %v533 = vsub.f32 %v372, %v506
        %v534 = vsub.f32 %v377, %v498
        %v535 = vsub.f32 %v377, %v502
        %v536 = vsub.f32 %v377, %v506
        %v537 = vsub.f32 %v382, %v498
        %v538 = vsub.f32 %v382, %v502
        %v539 = vsub.f32 %v382, %v506
        %v540 = vsub.f32 %v387, %v498
        %v541 = vsub.f32 %v387, %v502
        %v542 = vsub.f32 %v387, %v506
        %v543 = vsub.f32 %v392, %v498
        %v544 = vsub.f32 %v392, %v502
        %v545 = vsub.f32 %v392, %v506
        %v546 = vsub.f32 %v397, %v498
        %v547 = vsub.f32 %v397, %v502
        %v548 = vsub.f32 %v397, %v506
        %v549 = vsub.f32 %v402, %v498
        %v550 = vsub.f32 %v402, %v502
        %v551 = vsub.f32 %v402, %v506
        %v552 = vsub.f32 %v407, %v498
        %v553 = vsub.f32 %v407, %v502
        %v554 = vsub.f32 %v407, %v506
        %v555 = vsub.f32 %v412, %v498
        %v556 = vsub.f32 %v412, %v502
        %v557 = vsub.f32 %v412, %v506
        %v558 = vsub.f32 %v417, %v498
        %v559 = vsub.f32 %v417, %v502
        %v560 = vsub.f32 %v417, %v506
        %v561 = vsub.f32 %v422, %v498
        %v562 = vsub.f32 %v422, %v502
        %v563 = vsub.f32 %v422, %v506
        %v564 = vsub.f32 %v427, %v498
        %v565 = vsub.f32 %v427, %v502
        %v566 = vsub.f32 %v427, %v506
        %v567 = vsub.f32 %v432, %v498
        %v568 = vsub.f32 %v432, %v502
        %v569 = vsub.f32 %v432, %v506
        %v570 = vsub.f32 %v437, %v498
        %v571 = vsub.f32 %v437, %v502
        %v572 = vsub.f32 %v437, %v506
        %v573 = vsub.f32 %v442, %v498
        %v574 = vsub.f32 %v442, %v502
        %v575 = vsub.f32 %v442, %v506
        %v576 = vsub.f32 %v447, %v498
        %v577 = vsub.f32 %v447, %v502
        %v578 = vsub.f32 %v447, %v506
        %v579 = vsub.f32 %v452, %v498
        %v580 = vsub.f32 %v452, %v502
        %v581 = vsub.f32 %v452, %v506
        %v582 = vsub.f32 %v457, %v498
        %v583 = vsub.f32 %v457, %v502
        %v584 = vsub.f32 %v457, %v506
        %v585 = vsub.f32 %v462, %v498
        %v586 = vsub.f32 %v462, %v502
        %v587 = vsub.f32 %v462, %v506
        %v588 = vsub.f32 %v467, %v498
        %v589 = vsub.f32 %v467, %v502
        %v590 = vsub.f32 %v467, %v506
        %v591 = vsub.f32 %v472, %v498
        %v592 = vsub.f32 %v472, %v502
        %v593 = vsub.f32 %v472, %v506
        %v594 = vsub.f32 %v477, %v498
        %v595 = vsub.f32 %v477, %v502
        %v596 = vsub.f32 %v477, %v506
        %v597 = vsub.f32 %v482, %v498
        %v598 = vsub.f32 %v482, %v502
        %v599 = vsub.f32 %v482, %v506
        %v600 = vsub.f32 %v487, %v498
        %v601 = vsub.f32 %v487, %v502
        %v602 = vsub.f32 %v487, %v506
        %v603 = vsub.f32 %v492, %v498
        %v604 = vsub.f32 %v492, %v502
        %v605 = vsub.f32 %v492, %v506
        %v606 = vmul.f32 %v510, %v510
        %v607 = vmul.f32 %v511, %v511
        %v608 = vmul.f32 %v512, %v512
        %v609 = vmul.f32 %v513, %v513
        %v610 = vmul.f32 %v514, %v514
        %v611 = vmul.f32 %v515, %v515
        %v612 = vmul.f32 %v516, %v516
        %v613 = vmul.f32 %v517, %v517
        %v614 = vmul.f32 %v518, %v518
        %v615 = vmul.f32 %v519, %v519
        %v616 = vmul.f32 %v520, %v520
        %v617 = vmul.f32 %v521, %v521
        %v618 = vmul.f32 %v522, %v522
        %v619 = vmul.f32 %v523, %v523
        %v620 = vmul.f32 %v524, %v524
        %v621 = vmul.f32 %v525, %v525
        %v622 = vmul.f32 %v526, %v526
        %v623 = vmul.f32 %v527, %v527
        %v624 = vmul.f32 %v528, %v528
        %v625 = vmul.f32 %v529, %v529
        %v626 = vmul.f32 %v530, %v530
        %v627 = vmul.f32 %v531, %v531
        %v628 = vmul.f32 %v532, %v532
        %v629 = vmul.f32 %v533, %v533
        %v630 = vmul.f32 %v534, %v534
        %v631 = vmul.f32 %v535, %v535
        %v632 = vmul.f32 %v536, %v536
        %v633 = vmul.f32 %v537, %v537
        %v634 = vmul.f32 %v538, %v538
        %v635 = vmul.f32 %v539, %v539
        %v636 = vmul.f32 %v540, %v540
        %v637 = vmul.f32 %v541, %v541
        %v638 = vmul.f32 %v542, %v542
        %v639 = vmul.f32 %v543, %v543
        %v640 = vmul.f32 %v544, %v544
        %v641 = vmul.f32 %v545, %v545
        %v642 = vmul.f32 %v546, %v546
        %v643 = vmul.f32 %v547, %v547
        %v644 = vmul.f32 %v548, %v548
        %v645 = vmul.f32 %v549, %v549
        %v646 = vmul.f32 %v550, %v550
        %v647 = vmul.f32 %v551, %v551
        %v648 = vmul.f32 %v552, %v552
        %v649 = vmul.f32 %v553, %v553
        %v650 = vmul.f32 %v554, %v554
        %v651 = vmul.f32 %v555, %v555
        %v652 = vmul.f32 %v556, %v556
        %v653 = vmul.f32 %v557, %v557
        %v654 = vmul.f32 %v558, %v558
        %v655 = vmul.f32 %v559, %v559
        %v656 = vmul.f32 %v560, %v560
        %v657 = vmul.f32 %v561, %v561
        %v658 = vmul.f32 %v562, %v562
        %v659 = vmul.f32 %v563, %v563
        %v660 = vmul.f32 %v564, %v564
        %v661 = vmul.f32 %v565, %v565
        %v662 = vmul.f32 %v566, %v566
        %v663 = vmul.f32 %v567, %v567
        %v664 = vmul.f32 %v568, %v568
        %v665 = vmul.f32 %v569, %v569
        %v666 = vmul.f32 %v570, %v570
        %v667 = vmul.f32 %v571, %v571
        %v668 = vmul.f32 %v572, %v572
        %v669 = vmul.f32 %v573, %v573
        %v670 = vmul.f32 %v574, %v574
        %v671 = vmul.f32 %v575, %v575
        %v672 = vmul.f32 %v576, %v576
        %v673 = vmul.f32 %v577, %v577
        %v674 = vmul.f32 %v578, %v578
        %v675 = vmul.f32 %v579, %v579
        %v676 = vmul.f32 %v580, %v580
        %v677 = vmul.f32 %v581, %v581
        %v678 = vmul.f32 %v582, %v582
        %v679 = vmul.f32 %v583, %v583
        %v680 = vmul.f32 %v584, %v584
        %v681 = vmul.f32 %v585, %v585
        %v682 = vmul.f32 %v586, %v586
        %v683 = vmul.f32 %v587, %v587
        %v684 = vmul.f32 %v588, %v588
        %v685 = vmul.f32 %v589, %v589
        %v686 = vmul.f32 %v590, %v590
        %v687 = vmul.f32 %v591, %v591
        %v688 = vmul.f32 %v592, %v592
        %v689 = vmul.f32 %v593, %v593
        %v690 = vmul.f32 %v594, %v594
        %v691 = vmul.f32 %v595, %v595
        %v692 = vmul.f32 %v596, %v596
        %v693 = vmul.f32 %v597, %v597
        %v694 = vmul.f32 %v598, %v598
        %v695 = vmul.f32 %v599, %v599
        %v696 = vmul.f32 %v600, %v600
        %v697 = vmul.f32 %v601, %v601
        %v698 = vmul.f32 %v602, %v602
        %v699 = vmul.f32 %v603, %v603
        %v700 = vmul.f32 %v604, %v604
        %v701 = vmul.f32 %v605, %v605
        %v702 = vsub.f32 0.0, %v606
        %v703 = vsub.f32 0.0, %v607
        %v704 = vsub.f32 0.0, %v608
        %v705 = vsub.f32 0.0, %v609
        %v706 = vsub.f32 0.0, %v610
        %v707 = vsub.f32 0.0, %v611
        %v708 = vsub.f32 0.0, %v612
        %v709 = vsub.f32 0.0, %v613
        %v710 = vsub.f32 0.0, %v614
        %v711 = vsub.f32 0.0, %v615
        %v712 = vsub.f32 0.0, %v616
        %v713 = vsub.f32 0.0, %v617
        %v714 = vsub.f32 0.0, %v618
        %v715 = vsub.f32 0.0, %v619
        %v716 = vsub.f32 0.0, %v620
        %v717 = vsub.f32 0.0, %v621
        %v718 = vsub.f32 0.0, %v622
        %v719 = vsub.f32 0.0, %v623
        %v720 = vsub.f32 0.0, %v624
        %v721 = vsub.f32 0.0, %v625
        %v722 = vsub.f32 0.0, %v626
        %v723 = vsub.f32 0.0, %v627
        %v724 = vsub.f32 0.0, %v628
        %v725 = vsub.f32 0.0, %v629
        %v726 = vsub.f32 0.0, %v630
        %v727 = vsub.f32 0.0, %v631
        %v728 = vsub.f32 0.0, %v632
        %v729 = vsub.f32 0.0, %v633
        %v730 = vsub.f32 0.0, %v634
        %v731 = vsub.f32 0.0, %v635
        %v732 = vsub.f32 0.0, %v636
        %v733 = vsub.f32 0.0, %v637
        %v734 = vsub.f32 0.0, %v638
        %v735 = vsub.f32 0.0, %v639
        %v736 = vsub.f32 0.0, %v640
        %v737 = vsub.f32 0.0, %v641
        %v738 = vsub.f32 0.0, %v642
        %v739 = vsub.f32 0.0, %v643
        %v740 = vsub.f32 0.0, %v644
        %v741 = vsub.f32 0.0, %v645
        %v742 = vsub.f32 0.0, %v646
        %v743 = vsub.f32 0.0, %v647
        %v744 = vsub.f32 0.0, %v648
        %v745 = vsub.f32 0.0, %v649
        %v746 = vsub.f32 0.0, %v650
        %v747 = vsub.f32 0.0, %v651
        %v748 = vsub.f32 0.0, %v652
        %v749 = vsub.f32 0.0, %v653
        %v750 = vsub.f32 0.0, %v654
        %v751 = vsub.f32 0.0, %v655
        %v752 = vsub.f32 0.0, %v656
        %v753 = vsub.f32 0.0, %v657
        %v754 = vsub.f32 0.0, %v658
        %v755 = vsub.f32 0.0, %v659
        %v756 = vsub.f32 0.0, %v660
        %v757 = vsub.f32 0.0, %v661
        %v758 = vsub.f32 0.0, %v662
        %v759 = vsub.f32 0.0, %v663
        %v760 = vsub.f32 0.0, %v664
        %v761 = vsub.f32 0.0, %v665
        %v762 = vsub.f32 0.0, %v666
        %v763 = vsub.f32 0.0, %v667
        %v764 = vsub.f32 0.0, %v668
        %v765 = vsub.f32 0.0, %v669
        %v766 = vsub.f32 0.0, %v670
        %v767 = vsub.f32 0.0, %v671
        %v768 = vsub.f32 0.0, %v672
        %v769 = vsub.f32 0.0, %v673
        %v770 = vsub.f32 0.0, %v674
        %v771 = vsub.f32 0.0, %v675
        %v772 = vsub.f32 0.0, %v676
        %v773 = vsub.f32 0.0, %v677
        %v774 = vsub.f32 0.0, %v678
        %v775 = vsub.f32 0.0, %v679
        %v776 = vsub.f32 0.0, %v680
        %v777 = vsub.f32 0.0, %v681
        %v778 = vsub.f32 0.0, %v682
        %v779 = vsub.f32 0.0, %v683
        %v780 = vsub.f32 0.0, %v684
        %v781 = vsub.f32 0.0, %v685
        %v782 = vsub.f32 0.0, %v686
        %v783 = vsub.f32 0.0, %v687
        %v784 = vsub.f32 0.0, %v688
        %v785 = vsub.f32 0.0, %v689
        %v786 = vsub.f32 0.0, %v690
        %v787 = vsub.f32 0.0, %v691
        %v788 = vsub.f32 0.0, %v692
        %v789 = vsub.f32 0.0, %v693
        %v790 = vsub.f32 0.0, %v694
        %v791 = vsub.f32 0.0, %v695
        %v792 = vsub.f32 0.0, %v696
        %v793 = vsub.f32 0.0, %v697
        %v794 = vsub.f32 0.0, %v698
        %v795 = vsub.f32 0.0, %v699
        %v796 = vsub.f32 0.0, %v700
        %v797 = vsub.f32 0.0, %v701
        %v798 = vmul.f32 %v702, 1.442695
        %v799 = vpow.pop %v798
        %v800 = vmul.f32 %v703, 1.442695
        %v801 = vpow.pop %v800
        %v802 = vmul.f32 %v704, 1.442695
        %v803 = vpow.pop %v802
        %v804 = vmul.f32 %v705, 1.442695
        %v805 = vpow.pop %v804
        %v806 = vmul.f32 %v706, 1.442695
        %v807 = vpow.pop %v806
        %v808 = vmul.f32 %v707, 1.442695
        %v809 = vpow.pop %v808
        %v810 = vmul.f32 %v708, 1.442695
        %v811 = vpow.pop %v810
        %v812 = vmul.f32 %v709, 1.442695
        %v813 = vpow.pop %v812
        %v814 = vmul.f32 %v710, 1.442695
        %v815 = vpow.pop %v814
        %v816 = vmul.f32 %v711, 1.442695
        %v817 = vpow.pop %v816
        %v818 = vmul.f32 %v712, 1.442695
        %v819 = vpow.pop %v818
        %v820 = vmul.f32 %v713, 1.442695
        %v821 = vpow.pop %v820
        %v822 = vmul.f32 %v714, 1.442695
        %v823 = vpow.pop %v822
        %v824 = vmul.f32 %v715, 1.442695
        %v825 = vpow.pop %v824
        %v826 = vmul.f32 %v716, 1.442695
        %v827 = vpow.pop %v826
        %v828 = vmul.f32 %v717, 1.442695
        %v829 = vpow.pop %v828
        %v830 = vmul.f32 %v718, 1.442695
        %v831 = vpow.pop %v830
        %v832 = vmul.f32 %v719, 1.442695
        %v833 = vpow.pop %v832
        %v834 = vmul.f32 %v720, 1.442695
        %v835 = vpow.pop %v834
        %v836 = vmul.f32 %v721, 1.442695
        %v837 = vpow.pop %v836
        %v838 = vmul.f32 %v722, 1.442695
        %v839 = vpow.pop %v838
        %v840 = vmul.f32 %v723, 1.442695
        %v841 = vpow.pop %v840
        %v842 = vmul.f32 %v724, 1.442695
        %v843 = vpow.pop %v842
        %v844 = vmul.f32 %v725, 1.442695
        %v845 = vpow.pop %v844
        %v846 = vmul.f32 %v726, 1.442695
        %v847 = vpow.pop %v846
        %v848 = vmul.f32 %v727, 1.442695
        %v849 = vpow.pop %v848
        %v850 = vmul.f32 %v728, 1.442695
        %v851 = vpow.pop %v850
        %v852 = vmul.f32 %v729, 1.442695
        %v853 = vpow.pop %v852
        %v854 = vmul.f32 %v730, 1.442695
        %v855 = vpow.pop %v854
        %v856 = vmul.f32 %v731, 1.442695
        %v857 = vpow.pop %v856
        %v858 = vmul.f32 %v732, 1.442695
        %v859 = vpow.pop %v858
        %v860 = vmul.f32 %v733, 1.442695
        %v861 = vpow.pop %v860
        %v862 = vmul.f32 %v734, 1.442695
        %v863 = vpow.pop %v862
        %v864 = vmul.f32 %v735, 1.442695
        %v865 = vpow.pop %v864
        %v866 = vmul.f32 %v736, 1.442695
        %v867 = vpow.pop %v866
        %v868 = vmul.f32 %v737, 1.442695
        %v869 = vpow.pop %v868
        %v870 = vmul.f32 %v738, 1.442695
        %v871 = vpow.pop %v870
        %v872 = vmul.f32 %v739, 1.442695
        %v873 = vpow.pop %v872
        %v874 = vmul.f32 %v740, 1.442695
        %v875 = vpow.pop %v874
        %v876 = vmul.f32 %v741, 1.442695
        %v877 = vpow.pop %v876
        %v878 = vmul.f32 %v742, 1.442695
        %v879 = vpow.pop %v878
        %v880 = vmul.f32 %v743, 1.442695
        %v881 = vpow.pop %v880
        %v882 = vmul.f32 %v744, 1.442695
        %v883 = vpow.pop %v882
        %v884 = vmul.f32 %v745, 1.442695
        %v885 = vpow.pop %v884
        %v886 = vmul.f32 %v746, 1.442695
        %v887 = vpow.pop %v886
        %v888 = vmul.f32 %v747, 1.442695
        %v889 = vpow.pop %v888
        %v890 = vmul.f32 %v748, 1.442695
        %v891 = vpow.pop %v890
        %v892 = vmul.f32 %v749, 1.442695
        %v893 = vpow.pop %v892
        %v894 = vmul.f32 %v750, 1.442695
        %v895 = vpow.pop %v894
        %v896 = vmul.f32 %v751, 1.442695
        %v897 = vpow.pop %v896
        %v898 = vmul.f32 %v752, 1.442695
        %v899 = vpow.pop %v898
        %v900 = vmul.f32 %v753, 1.442695
        %v901 = vpow.pop %v900
        %v902 = vmul.f32 %v754, 1.442695
        %v903 = vpow.pop %v902
        %v904 = vmul.f32 %v755, 1.442695
        %v905 = vpow.pop %v904
        %v906 = vmul.f32 %v756, 1.442695
        %v907 = vpow.pop %v906
        %v908 = vmul.f32 %v757, 1.442695
        %v909 = vpow.pop %v908
        %v910 = vmul.f32 %v758, 1.442695
        %v911 = vpow.pop %v910
        %v912 = vmul.f32 %v759, 1.442695
        %v913 = vpow.pop %v912
        %v914 = vmul.f32 %v760, 1.442695
        %v915 = vpow.pop %v914
        %v916 = vmul.f32 %v761, 1.442695
        %v917 = vpow.pop %v916
        %v918 = vmul.f32 %v762, 1.442695
        %v919 = vpow.pop %v918
        %v920 = vmul.f32 %v763, 1.442695
        %v921 = vpow.pop %v920
        %v922 = vmul.f32 %v764, 1.442695
        %v923 = vpow.pop %v922
        %v924 = vmul.f32 %v765, 1.442695
        %v925 = vpow.pop %v924
        %v926 = vmul.f32 %v766, 1.442695
        %v927 = vpow.pop %v926
        %v928 = vmul.f32 %v767, 1.442695
        %v929 = vpow.pop %v928
        %v930 = vmul.f32 %v768, 1.442695
        %v931 = vpow.pop %v930
        %v932 = vmul.f32 %v769, 1.442695
        %v933 = vpow.pop %v932
        %v934 = vmul.f32 %v770, 1.442695
        %v935 = vpow.pop %v934
        %v936 = vmul.f32 %v771, 1.442695
        %v937 = vpow.pop %v936
        %v938 = vmul.f32 %v772, 1.442695
        %v939 = vpow.pop %v938
        %v940 = vmul.f32 %v773, 1.442695
        %v941 = vpow.pop %v940
        %v942 = vmul.f32 %v774, 1.442695
        %v943 = vpow.pop %v942
        %v944 = vmul.f32 %v775, 1.442695
        %v945 = vpow.pop %v944
        %v946 = vmul.f32 %v776, 1.442695
        %v947 = vpow.pop %v946
        %v948 = vmul.f32 %v777, 1.442695
        %v949 = vpow.pop %v948
        %v950 = vmul.f32 %v778, 1.442695
        %v951 = vpow.pop %v950
        %v952 = vmul.f32 %v779, 1.442695
        %v953 = vpow.pop %v952
        %v954 = vmul.f32 %v780, 1.442695
        %v955 = vpow.pop %v954
        %v956 = vmul.f32 %v781, 1.442695
        %v957 = vpow.pop %v956
        %v958 = vmul.f32 %v782, 1.442695
        %v959 = vpow.pop %v958
        %v960 = vmul.f32 %v783, 1.442695
        %v961 = vpow.pop %v960
        %v962 = vmul.f32 %v784, 1.442695
        %v963 = vpow.pop %v962
        %v964 = vmul.f32 %v785, 1.442695
        %v965 = vpow.pop %v964
        %v966 = vmul.f32 %v786, 1.442695
        %v967 = vpow.pop %v966
        %v968 = vmul.f32 %v787, 1.442695
        %v969 = vpow.pop %v968
        %v970 = vmul.f32 %v788, 1.442695
        %v971 = vpow.pop %v970
        %v972 = vmul.f32 %v789, 1.442695
        %v973 = vpow.pop %v972
        %v974 = vmul.f32 %v790, 1.442695
        %v975 = vpow.pop %v974
        %v976 = vmul.f32 %v791, 1.442695
        %v977 = vpow.pop %v976
        %v978 = vmul.f32 %v792, 1.442695
        %v979 = vpow.pop %v978
        %v980 = vmul.f32 %v793, 1.442695
        %v981 = vpow.pop %v980
        %v982 = vmul.f32 %v794, 1.442695
        %v983 = vpow.pop %v982
        %v984 = vmul.f32 %v795, 1.442695
        %v985 = vpow.pop %v984
        %v986 = vmul.f32 %v796, 1.442695
        %v987 = vpow.pop %v986
        %v988 = vmul.f32 %v797, 1.442695
        %v989 = vpow.pop %v988
        %v990 = vpack.c.bf16 %v805, %v799
        %v991 = vpack.c.bf16 %v807, %v801
        %v992 = vpack.c.bf16 %v809, %v803
        %v993 = vpack.c.bf16 %v817, %v811
        %v994 = vpack.c.bf16 %v819, %v813
        %v995 = vpack.c.bf16 %v821, %v815
        %v996 = vpack.c.bf16 %v829, %v823
        %v997 = vpack.c.bf16 %v831, %v825
        %v998 = vpack.c.bf16 %v833, %v827
        %v999 = vpack.c.bf16 %v841, %v835
        %v1000 = vpack.c.bf16 %v843, %v837
        %v1001 = vpack.c.bf16 %v845, %v839
        %v1002 = vpack.c.bf16 %v853, %v847
        %v1003 = vpack.c.bf16 %v855, %v849
        %v1004 = vpack.c.bf16 %v857, %v851
        %v1005 = vpack.c.bf16 %v865, %v859
        %v1006 = vpack.c.bf16 %v867, %v861
        %v1007 = vpack.c.bf16 %v869, %v863
        %v1008 = vpack.c.bf16 %v877, %v871
        %v1009 = vpack.c.bf16 %v879, %v873
        %v1010 = vpack.c.bf16 %v881, %v875
        %v1011 = vpack.c.bf16 %v889, %v883
        %v1012 = vpack.c.bf16 %v891, %v885
        %v1013 = vpack.c.bf16 %v893, %v887
        %v1014 = vpack.c.bf16 %v901, %v895
        %v1015 = vpack.c.bf16 %v903, %v897
        %v1016 = vpack.c.bf16 %v905, %v899
        %v1017 = vpack.c.bf16 %v913, %v907
        %v1018 = vpack.c.bf16 %v915, %v909
        %v1019 = vpack.c.bf16 %v917, %v911
        %v1020 = vpack.c.bf16 %v925, %v919
        %v1021 = vpack.c.bf16 %v927, %v921
        %v1022 = vpack.c.bf16 %v929, %v923
        %v1023 = vpack.c.bf16 %v937, %v931
        %v1024 = vpack.c.bf16 %v939, %v933
        %v1025 = vpack.c.bf16 %v941, %v935
        %v1026 = vpack.c.bf16 %v949, %v943
        %v1027 = vpack.c.bf16 %v951, %v945
        %v1028 = vpack.c.bf16 %v953, %v947
        %v1029 = vpack.c.bf16 %v961, %v955
        %v1030 = vpack.c.bf16 %v963, %v957
        %v1031 = vpack.c.bf16 %v965, %v959
        %v1032 = vpack.c.bf16 %v973, %v967
        %v1033 = vpack.c.bf16 %v975, %v969
        %v1034 = vpack.c.bf16 %v977, %v971
        %v1035 = vpack.c.bf16 %v985, %v979
        %v1036 = vpack.c.bf16 %v987, %v981
        %v1037 = vpack.c.bf16 %v989, %v983
        %v1038 = vld [vmem:[#allocation2] sm:$0xff]
        %v1039 = vld [vmem:[#allocation2 + $0x8] sm:$0xf]
        %v1040 = vld [vmem:[#allocation2 + $0xc] sm:$0xff]
        %v1041 = vld [vmem:[#allocation2 + $0x14] sm:$0xf]
        %v1042 = vld [vmem:[#allocation2 + $0x18] sm:$0xff]
        %v1043 = vld [vmem:[#allocation2 + $0x20] sm:$0xf]
        %v1044 = vld [vmem:[#allocation2 + $0x24] sm:$0xff]
        %v1045 = vld [vmem:[#allocation2 + $0x2c] sm:$0xf]
        %v1046 = vld [vmem:[#allocation2 + $0x30] sm:$0xff]
        %v1047 = vld [vmem:[#allocation2 + $0x38] sm:$0xf]
        %v1048 = vld [vmem:[#allocation2 + $0x3c] sm:$0xff]
        %v1049 = vld [vmem:[#allocation2 + $0x44] sm:$0xf]
        %v1050 = vld [vmem:[#allocation2 + $0x48] sm:$0xff]
        %v1051 = vld [vmem:[#allocation2 + $0x50] sm:$0xf]
        %v1052 = vld [vmem:[#allocation2 + $0x54] sm:$0xff]
        %v1053 = vld [vmem:[#allocation2 + $0x5c] sm:$0xf]
        %v1054 = vld [vmem:[#allocation2 + $0x60] sm:$0xff]
        %v1055 = vld [vmem:[#allocation2 + $0x68] sm:$0xf]
        %v1056 = vld [vmem:[#allocation2 + $0x6c] sm:$0xff]
        %v1057 = vld [vmem:[#allocation2 + $0x74] sm:$0xf]
        %v1058 = vld [vmem:[#allocation2 + $0x78] sm:$0xff]
        %v1059 = vld [vmem:[#allocation2 + $0x80] sm:$0xf]
        %v1060 = vld [vmem:[#allocation2 + $0x84] sm:$0xff]
        %v1061 = vld [vmem:[#allocation2 + $0x8c] sm:$0xf]
        %v1062 = vld [vmem:[#allocation2 + $0x90] sm:$0xff]
        %v1063 = vld [vmem:[#allocation2 + $0x98] sm:$0xf]
        %v1064 = vld [vmem:[#allocation2 + $0x9c] sm:$0xff]
        %v1065 = vld [vmem:[#allocation2 + $0xa4] sm:$0xf]
        %v1066 = vld [vmem:[#allocation2 + $0xa8] sm:$0xff]
        %v1067 = vld [vmem:[#allocation2 + $0xb0] sm:$0xf]
        %v1068 = vld [vmem:[#allocation2 + $0xb4] sm:$0xff]
        %v1069 = vld [vmem:[#allocation2 + $0xbc] sm:$0xf]
        %v1070 = vld [vmem:[#allocation2 + $0xc0] sm:$0xff]
        %v1071 = vld [vmem:[#allocation2 + $0xc8] sm:$0xf]
        %v1072 = vld [vmem:[#allocation2 + $0xcc] sm:$0xff]
        %v1073 = vld [vmem:[#allocation2 + $0xd4] sm:$0xf]
        %v1074 = vld [vmem:[#allocation2 + $0xd8] sm:$0xff]
        %v1075 = vld [vmem:[#allocation2 + $0xe0] sm:$0xf]
        %v1076 = vld [vmem:[#allocation2 + $0xe4] sm:$0xff]
        %v1077 = vld [vmem:[#allocation2 + $0xec] sm:$0xf]
        %v1078 = vld [vmem:[#allocation2 + $0xf0] sm:$0xff]
        %v1079 = vld [vmem:[#allocation2 + $0xf8] sm:$0xf]
        %v1080 = vld [vmem:[#allocation2 + $0xfc] sm:$0xff]
        %v1081 = vld [vmem:[#allocation2 + $0x104] sm:$0xf]
        %v1082 = vld [vmem:[#allocation2 + $0x108] sm:$0xff]
        %v1083 = vld [vmem:[#allocation2 + $0x110] sm:$0xf]
        %v1084 = vld [vmem:[#allocation2 + $0x114] sm:$0xff]
        %v1085 = vld [vmem:[#allocation2 + $0x11c] sm:$0xf]
        %v1086 = vld [vmem:[#allocation2 + $0x120] sm:$0xff]
        %v1087 = vld [vmem:[#allocation2 + $0x128] sm:$0xf]
        %v1088 = vld [vmem:[#allocation2 + $0x12c] sm:$0xff]
        %v1089 = vld [vmem:[#allocation2 + $0x134] sm:$0xf]
        %v1090 = vld [vmem:[#allocation2 + $0x138] sm:$0xff]
        %v1091 = vld [vmem:[#allocation2 + $0x140] sm:$0xf]
        %v1092 = vld [vmem:[#allocation2 + $0x144] sm:$0xff]
        %v1093 = vld [vmem:[#allocation2 + $0x14c] sm:$0xf]
        %v1094 = vld [vmem:[#allocation2 + $0x150] sm:$0xff]
        %v1095 = vld [vmem:[#allocation2 + $0x158] sm:$0xf]
        %v1096 = vld [vmem:[#allocation2 + $0x15c] sm:$0xff]
        %v1097 = vld [vmem:[#allocation2 + $0x164] sm:$0xf]
        %v1098 = vld [vmem:[#allocation2 + $0x168] sm:$0xff]
        %v1099 = vld [vmem:[#allocation2 + $0x170] sm:$0xf]
        %v1100 = vld [vmem:[#allocation2 + $0x174] sm:$0xff]
        %v1101 = vld [vmem:[#allocation2 + $0x17c] sm:$0xf]
        %v1102 = vld [vmem:[#allocation2 + $0x180] sm:$0xff]
        %v1103 = vld [vmem:[#allocation2 + $0x188] sm:$0xf]
        %v1104 = vld [vmem:[#allocation2 + $0x18c] sm:$0xff]
        %v1105 = vld [vmem:[#allocation2 + $0x194] sm:$0xf]
        %v1106 = vld [vmem:[#allocation2 + $0x198] sm:$0xff]
        %v1107 = vld [vmem:[#allocation2 + $0x1a0] sm:$0xf]
        %v1108 = vld [vmem:[#allocation2 + $0x1a4] sm:$0xff]
        %v1109 = vld [vmem:[#allocation2 + $0x1ac] sm:$0xf]
        %v1110 = vld [vmem:[#allocation2 + $0x1b0] sm:$0xff]
        %v1111 = vld [vmem:[#allocation2 + $0x1b8] sm:$0xf]
        %v1112 = vld [vmem:[#allocation2 + $0x1bc] sm:$0xff]
        %v1113 = vld [vmem:[#allocation2 + $0x1c4] sm:$0xf]
        %v1114 = vld [vmem:[#allocation2 + $0x1c8] sm:$0xff]
        %v1115 = vld [vmem:[#allocation2 + $0x1d0] sm:$0xf]
        %v1116 = vld [vmem:[#allocation2 + $0x1d4] sm:$0xff]
        %v1117 = vld [vmem:[#allocation2 + $0x1dc] sm:$0xf]
        %v1118 = vld [vmem:[#allocation2 + $0x1e0] sm:$0xff]
        %v1119 = vld [vmem:[#allocation2 + $0x1e8] sm:$0xf]
        %v1120 = vld [vmem:[#allocation2 + $0x1ec] sm:$0xff]
        %v1121 = vld [vmem:[#allocation2 + $0x1f4] sm:$0xf]
        %v1122 = vld [vmem:[#allocation2 + $0x1f8] sm:$0xff]
        %v1123 = vld [vmem:[#allocation2 + $0x200] sm:$0xf]
        %v1124 = vld [vmem:[#allocation2 + $0x204] sm:$0xff]
        %v1125 = vld [vmem:[#allocation2 + $0x20c] sm:$0xf]
        %v1126 = vld [vmem:[#allocation2 + $0x210] sm:$0xff]
        %v1127 = vld [vmem:[#allocation2 + $0x218] sm:$0xf]
        %v1128 = vld [vmem:[#allocation2 + $0x21c] sm:$0xff]
        %v1129 = vld [vmem:[#allocation2 + $0x224] sm:$0xf]
        %v1130 = vld [vmem:[#allocation2 + $0x228] sm:$0xff]
        %v1131 = vld [vmem:[#allocation2 + $0x230] sm:$0xf]
        %v1132 = vld [vmem:[#allocation2 + $0x234] sm:$0xff]
        %v1133 = vld [vmem:[#allocation2 + $0x23c] sm:$0xf]
        %v1134 = vld [vmem:[%s3] sm:$0x7]
        %v1136 = vlaneseq
        %v1137 = vshrl.u32 %v1136, 7
        %v1138 = vsub.s32 0, %v1137
        %v1139 = vrot.slane %v1134, %v1138
        %v1140 = vlaneseq
        %v1141 = vshrl.u32 %v1140, 7
        %v1142 = vsub.s32 1, %v1141
        %v1143 = vrot.slane %v1134, %v1142
        %v1144 = vlaneseq
        %v1145 = vshrl.u32 %v1144, 7
        %v1146 = vsub.s32 2, %v1145
        %v1147 = vrot.slane %v1134, %v1146
        %v1247 = vunpack.c.l.b16 %v1038
        %v1248 = vunpack.c.h.b16 %v1038
        %v1249 = vunpack.c.l.b16 %v1039
        %v1250 = vunpack.c.l.b16 %v1040
        %v1251 = vunpack.c.h.b16 %v1040
        %v1252 = vunpack.c.l.b16 %v1041
        %v1253 = vunpack.c.l.b16 %v1042
        %v1254 = vunpack.c.h.b16 %v1042
        %v1255 = vunpack.c.l.b16 %v1043
        %v1256 = vunpack.c.l.b16 %v1044
        %v1257 = vunpack.c.h.b16 %v1044
        %v1258 = vunpack.c.l.b16 %v1045
        %v1259 = vunpack.c.l.b16 %v1046
        %v1260 = vunpack.c.h.b16 %v1046
        %v1261 = vunpack.c.l.b16 %v1047
        %v1262 = vunpack.c.l.b16 %v1048
        %v1263 = vunpack.c.h.b16 %v1048
        %v1264 = vunpack.c.l.b16 %v1049
        %v1265 = vunpack.c.l.b16 %v1050
        %v1266 = vunpack.c.h.b16 %v1050
        %v1267 = vunpack.c.l.b16 %v1051
        %v1268 = vunpack.c.l.b16 %v1052
        %v1269 = vunpack.c.h.b16 %v1052
        %v1270 = vunpack.c.l.b16 %v1053
        %v1271 = vunpack.c.l.b16 %v1054
        %v1272 = vunpack.c.h.b16 %v1054
        %v1273 = vunpack.c.l.b16 %v1055
        %v1274 = vunpack.c.l.b16 %v1056
        %v1275 = vunpack.c.h.b16 %v1056
        %v1276 = vunpack.c.l.b16 %v1057
        %v1277 = vunpack.c.l.b16 %v1058
        %v1278 = vunpack.c.h.b16 %v1058
        %v1279 = vunpack.c.l.b16 %v1059
        %v1280 = vunpack.c.l.b16 %v1060
        %v1281 = vunpack.c.h.b16 %v1060
        %v1282 = vunpack.c.l.b16 %v1061
        %v1283 = vunpack.c.l.b16 %v1062
        %v1284 = vunpack.c.h.b16 %v1062
        %v1285 = vunpack.c.l.b16 %v1063
        %v1286 = vunpack.c.l.b16 %v1064
        %v1287 = vunpack.c.h.b16 %v1064
        %v1288 = vunpack.c.l.b16 %v1065
        %v1289 = vunpack.c.l.b16 %v1066
        %v1290 = vunpack.c.h.b16 %v1066
        %v1291 = vunpack.c.l.b16 %v1067
        %v1292 = vunpack.c.l.b16 %v1068
        %v1293 = vunpack.c.h.b16 %v1068
        %v1294 = vunpack.c.l.b16 %v1069
        %v1295 = vunpack.c.l.b16 %v1070
        %v1296 = vunpack.c.h.b16 %v1070
        %v1297 = vunpack.c.l.b16 %v1071
        %v1298 = vunpack.c.l.b16 %v1072
        %v1299 = vunpack.c.h.b16 %v1072
        %v1300 = vunpack.c.l.b16 %v1073
        %v1301 = vunpack.c.l.b16 %v1074
        %v1302 = vunpack.c.h.b16 %v1074
        %v1303 = vunpack.c.l.b16 %v1075
        %v1304 = vunpack.c.l.b16 %v1076
        %v1305 = vunpack.c.h.b16 %v1076
        %v1306 = vunpack.c.l.b16 %v1077
        %v1307 = vunpack.c.l.b16 %v1078
        %v1308 = vunpack.c.h.b16 %v1078
        %v1309 = vunpack.c.l.b16 %v1079
        %v1310 = vunpack.c.l.b16 %v1080
        %v1311 = vunpack.c.h.b16 %v1080
        %v1312 = vunpack.c.l.b16 %v1081
        %v1313 = vunpack.c.l.b16 %v1082
        %v1314 = vunpack.c.h.b16 %v1082
        %v1315 = vunpack.c.l.b16 %v1083
        %v1316 = vunpack.c.l.b16 %v1084
        %v1317 = vunpack.c.h.b16 %v1084
        %v1318 = vunpack.c.l.b16 %v1085
        %v1319 = vunpack.c.l.b16 %v1086
        %v1320 = vunpack.c.h.b16 %v1086
        %v1321 = vunpack.c.l.b16 %v1087
        %v1322 = vunpack.c.l.b16 %v1088
        %v1323 = vunpack.c.h.b16 %v1088
        %v1324 = vunpack.c.l.b16 %v1089
        %v1325 = vunpack.c.l.b16 %v1090
        %v1326 = vunpack.c.h.b16 %v1090
        %v1327 = vunpack.c.l.b16 %v1091
        %v1328 = vunpack.c.l.b16 %v1092
        %v1329 = vunpack.c.h.b16 %v1092
        %v1330 = vunpack.c.l.b16 %v1093
        %v1331 = vunpack.c.l.b16 %v1094
        %v1332 = vunpack.c.h.b16 %v1094
        %v1333 = vunpack.c.l.b16 %v1095
        %v1334 = vunpack.c.l.b16 %v1096
        %v1335 = vunpack.c.h.b16 %v1096
        %v1336 = vunpack.c.l.b16 %v1097
        %v1337 = vunpack.c.l.b16 %v1098
        %v1338 = vunpack.c.h.b16 %v1098
        %v1339 = vunpack.c.l.b16 %v1099
        %v1340 = vunpack.c.l.b16 %v1100
        %v1341 = vunpack.c.h.b16 %v1100
        %v1342 = vunpack.c.l.b16 %v1101
        %v1343 = vunpack.c.l.b16 %v1102
        %v1344 = vunpack.c.h.b16 %v1102
        %v1345 = vunpack.c.l.b16 %v1103
        %v1346 = vunpack.c.l.b16 %v1104
        %v1347 = vunpack.c.h.b16 %v1104
        %v1348 = vunpack.c.l.b16 %v1105
        %v1349 = vunpack.c.l.b16 %v1106
        %v1350 = vunpack.c.h.b16 %v1106
        %v1351 = vunpack.c.l.b16 %v1107
        %v1352 = vunpack.c.l.b16 %v1108
        %v1353 = vunpack.c.h.b16 %v1108
        %v1354 = vunpack.c.l.b16 %v1109
        %v1355 = vunpack.c.l.b16 %v1110
        %v1356 = vunpack.c.h.b16 %v1110
        %v1357 = vunpack.c.l.b16 %v1111
        %v1358 = vunpack.c.l.b16 %v1112
        %v1359 = vunpack.c.h.b16 %v1112
        %v1360 = vunpack.c.l.b16 %v1113
        %v1361 = vunpack.c.l.b16 %v1114
        %v1362 = vunpack.c.h.b16 %v1114
        %v1363 = vunpack.c.l.b16 %v1115
        %v1364 = vunpack.c.l.b16 %v1116
        %v1365 = vunpack.c.h.b16 %v1116
        %v1366 = vunpack.c.l.b16 %v1117
        %v1367 = vunpack.c.l.b16 %v1118
        %v1368 = vunpack.c.h.b16 %v1118
        %v1369 = vunpack.c.l.b16 %v1119
        %v1370 = vunpack.c.l.b16 %v1120
        %v1371 = vunpack.c.h.b16 %v1120
        %v1372 = vunpack.c.l.b16 %v1121
        %v1373 = vunpack.c.l.b16 %v1122
        %v1374 = vunpack.c.h.b16 %v1122
        %v1375 = vunpack.c.l.b16 %v1123
        %v1376 = vunpack.c.l.b16 %v1124
        %v1377 = vunpack.c.h.b16 %v1124
        %v1378 = vunpack.c.l.b16 %v1125
        %v1379 = vunpack.c.l.b16 %v1126
        %v1380 = vunpack.c.h.b16 %v1126
        %v1381 = vunpack.c.l.b16 %v1127
        %v1382 = vunpack.c.l.b16 %v1128
        %v1383 = vunpack.c.h.b16 %v1128
        %v1384 = vunpack.c.l.b16 %v1129
        %v1385 = vunpack.c.l.b16 %v1130
        %v1386 = vunpack.c.h.b16 %v1130
        %v1387 = vunpack.c.l.b16 %v1131
        %v1388 = vunpack.c.l.b16 %v1132
        %v1389 = vunpack.c.h.b16 %v1132
        %v1390 = vunpack.c.l.b16 %v1133
        %v1391 = vpack.c.b16 %v1250, %v1247
        %v1392 = vpack.c.b16 %v1251, %v1248
        %v1393 = vpack.c.b16 %v1252, %v1249
        %v1394 = vpack.c.b16 %v1256, %v1253
        %v1395 = vpack.c.b16 %v1257, %v1254
        %v1396 = vpack.c.b16 %v1258, %v1255
        %v1397 = vpack.c.b16 %v1262, %v1259
        %v1398 = vpack.c.b16 %v1263, %v1260
        %v1399 = vpack.c.b16 %v1264, %v1261
        %v1400 = vpack.c.b16 %v1268, %v1265
        %v1401 = vpack.c.b16 %v1269, %v1266
        %v1402 = vpack.c.b16 %v1270, %v1267
        %v1403 = vpack.c.b16 %v1274, %v1271
        %v1404 = vpack.c.b16 %v1275, %v1272
        %v1405 = vpack.c.b16 %v1276, %v1273
        %v1406 = vpack.c.b16 %v1280, %v1277
        %v1407 = vpack.c.b16 %v1281, %v1278
        %v1408 = vpack.c.b16 %v1282, %v1279
        %v1409 = vpack.c.b16 %v1286, %v1283
        %v1410 = vpack.c.b16 %v1287, %v1284
        %v1411 = vpack.c.b16 %v1288, %v1285
        %v1412 = vpack.c.b16 %v1292, %v1289
        %v1413 = vpack.c.b16 %v1293, %v1290
        %v1414 = vpack.c.b16 %v1294, %v1291
        %v1415 = vpack.c.b16 %v1298, %v1295
        %v1416 = vpack.c.b16 %v1299, %v1296
        %v1417 = vpack.c.b16 %v1300, %v1297
        %v1418 = vpack.c.b16 %v1304, %v1301
        %v1419 = vpack.c.b16 %v1305, %v1302
        %v1420 = vpack.c.b16 %v1306, %v1303
        %v1421 = vpack.c.b16 %v1310, %v1307
        %v1422 = vpack.c.b16 %v1311, %v1308
        %v1423 = vpack.c.b16 %v1312, %v1309
        %v1424 = vpack.c.b16 %v1316, %v1313
        %v1425 = vpack.c.b16 %v1317, %v1314
        %v1426 = vpack.c.b16 %v1318, %v1315
        %v1427 = vpack.c.b16 %v1322, %v1319
        %v1428 = vpack.c.b16 %v1323, %v1320
        %v1429 = vpack.c.b16 %v1324, %v1321
        %v1430 = vpack.c.b16 %v1328, %v1325
        %v1431 = vpack.c.b16 %v1329, %v1326
        %v1432 = vpack.c.b16 %v1330, %v1327
        %v1433 = vpack.c.b16 %v1334, %v1331
        %v1434 = vpack.c.b16 %v1335, %v1332
        %v1435 = vpack.c.b16 %v1336, %v1333
        %v1436 = vpack.c.b16 %v1340, %v1337
        %v1437 = vpack.c.b16 %v1341, %v1338
        %v1438 = vpack.c.b16 %v1342, %v1339
        %v1439 = vpack.c.b16 %v1346, %v1343
        %v1440 = vpack.c.b16 %v1347, %v1344
        %v1441 = vpack.c.b16 %v1348, %v1345
        %v1442 = vpack.c.b16 %v1352, %v1349
        %v1443 = vpack.c.b16 %v1353, %v1350
        %v1444 = vpack.c.b16 %v1354, %v1351
        %v1445 = vpack.c.b16 %v1358, %v1355
        %v1446 = vpack.c.b16 %v1359, %v1356
        %v1447 = vpack.c.b16 %v1360, %v1357
        %v1448 = vpack.c.b16 %v1364, %v1361
        %v1449 = vpack.c.b16 %v1365, %v1362
        %v1450 = vpack.c.b16 %v1366, %v1363
        %v1451 = vpack.c.b16 %v1370, %v1367
        %v1452 = vpack.c.b16 %v1371, %v1368
        %v1453 = vpack.c.b16 %v1372, %v1369
        %v1454 = vpack.c.b16 %v1376, %v1373
        %v1455 = vpack.c.b16 %v1377, %v1374
        %v1456 = vpack.c.b16 %v1378, %v1375
        %v1457 = vpack.c.b16 %v1382, %v1379
        %v1458 = vpack.c.b16 %v1383, %v1380
        %v1459 = vpack.c.b16 %v1384, %v1381
        %v1460 = vpack.c.b16 %v1388, %v1385
        %v1461 = vpack.c.b16 %v1389, %v1386
        %v1462 = vpack.c.b16 %v1390, %v1387
        %1535 = vmatprep.subr.bf16.mxu0 %v1413
        %1536 = vmatpush1.bf16.msra.mxu0 %v1412
        %1537 = vmatprep.subr.bf16.mxu0 %v1410
        %1538 = vmatpush1.bf16.msra.mxu0 %v1409
        %1539 = vmatprep.subr.bf16.mxu0 %v1407
        %1540 = vmatpush1.bf16.msra.mxu0 %v1406
        %1541 = vmatprep.subr.bf16.mxu0 %v1404
        %1542 = vmatpush1.bf16.msra.mxu0 %v1403
        %1543 = vmatprep.subr.bf16.mxu0 %v1401
        %1544 = vmatpush1.bf16.msra.mxu0 %v1400
        %1545 = vmatprep.subr.bf16.mxu0 %v1398
        %1546 = vmatpush1.bf16.msra.mxu0 %v1397
        %1547 = vmatprep.subr.bf16.mxu0 %v1395
        %1548 = vmatpush1.bf16.msra.mxu0 %v1394
        %1549 = vmatprep.subr.bf16.mxu0 %v1392
        %1550 = vmatpush1.bf16.msra.mxu0 %v1391
        %1551 = vmatprep.subr.bf16.mxu0 %v1437
        %1552 = vmatpush2.bf16.msra.mxu0 %v1436
        %1553 = vmatprep.subr.bf16.mxu0 %v1434
        %1554 = vmatpush2.bf16.msra.mxu0 %v1433
        %1555 = vmatprep.subr.bf16.mxu0 %v1431
        %1556 = vmatpush2.bf16.msra.mxu0 %v1430
        %1557 = vmatprep.subr.bf16.mxu0 %v1428
        %1558 = vmatpush2.bf16.msra.mxu0 %v1427
        %1559 = vmatprep.subr.bf16.mxu0 %v1425
        %1560 = vmatpush2.bf16.msra.mxu0 %v1424
        %1561 = vmatprep.subr.bf16.mxu0 %v1422
        %1562 = vmatpush2.bf16.msra.mxu0 %v1421
        %1563 = vmatprep.subr.bf16.mxu0 %v1419
        %1564 = vmatpush2.bf16.msra.mxu0 %v1418
        %1565 = vmatprep.subr.bf16.mxu0 %v1416
        %1566 = vmatpush2.bf16.msra.mxu0 %v1415
        %1567 = vmatprep.mubr.bf16.mxu0 %v991
        %1568 = vmatmul.mubr.bf16.gmra.mxu0 %v990
        %v1569 = vpop.f32.mrf.mxu0
        %v1570 = vadd.f32 %v1139, %v1569
        %v1571 = vpop.f32.mrf.mxu0
        %v1572 = vadd.f32 %v1143, %v1571
        %v1573 = vpop.f32.mrf.mxu0
        %v1574 = vadd.f32 %v1139, %v1573
        %v1575 = vpop.f32.mrf.mxu0
        %v1576 = vadd.f32 %v1143, %v1575
        %1577 = vmatprep.mubr.bf16.mxu0 %v994
        %1578 = vmatmul.mubr.bf16.gmra.mxu0 %v993
        %v1579 = vpop.f32.mrf.mxu0
        %v1580 = vadd.f32 %v1139, %v1579
        %v1581 = vpop.f32.mrf.mxu0
        %v1582 = vadd.f32 %v1143, %v1581
        %v1583 = vpop.f32.mrf.mxu0
        %v1584 = vadd.f32 %v1139, %v1583
        %v1585 = vpop.f32.mrf.mxu0
        %v1586 = vadd.f32 %v1143, %v1585
        %1587 = vmatprep.mubr.bf16.mxu0 %v997
        %1588 = vmatmul.mubr.bf16.gmra.mxu0 %v996
        %v1589 = vpop.f32.mrf.mxu0
        %v1590 = vadd.f32 %v1139, %v1589
        %v1591 = vpop.f32.mrf.mxu0
        %v1592 = vadd.f32 %v1143, %v1591
        %v1593 = vpop.f32.mrf.mxu0
        %v1594 = vadd.f32 %v1139, %v1593
        %v1595 = vpop.f32.mrf.mxu0
        %v1596 = vadd.f32 %v1143, %v1595
        %1597 = vmatprep.mubr.bf16.mxu0 %v1000
        %1598 = vmatmul.mubr.bf16.gmra.mxu0 %v999
        %v1599 = vpop.f32.mrf.mxu0
        %v1600 = vadd.f32 %v1139, %v1599
        %v1601 = vpop.f32.mrf.mxu0
        %v1602 = vadd.f32 %v1143, %v1601
        %v1603 = vpop.f32.mrf.mxu0
        %v1604 = vadd.f32 %v1139, %v1603
        %v1605 = vpop.f32.mrf.mxu0
        %v1606 = vadd.f32 %v1143, %v1605
        %1607 = vmatprep.mubr.bf16.mxu0 %v1003
        %1608 = vmatmul.mubr.bf16.gmra.mxu0 %v1002
        %v1609 = vpop.f32.mrf.mxu0
        %v1610 = vadd.f32 %v1139, %v1609
        %v1611 = vpop.f32.mrf.mxu0
        %v1612 = vadd.f32 %v1143, %v1611
        %v1613 = vpop.f32.mrf.mxu0
        %v1614 = vadd.f32 %v1139, %v1613
        %v1615 = vpop.f32.mrf.mxu0
        %v1616 = vadd.f32 %v1143, %v1615
        %1617 = vmatprep.mubr.bf16.mxu0 %v1006
        %1618 = vmatmul.mubr.bf16.gmra.mxu0 %v1005
        %v1619 = vpop.f32.mrf.mxu0
        %v1620 = vadd.f32 %v1139, %v1619
        %v1621 = vpop.f32.mrf.mxu0
        %v1622 = vadd.f32 %v1143, %v1621
        %v1623 = vpop.f32.mrf.mxu0
        %v1624 = vadd.f32 %v1139, %v1623
        %v1625 = vpop.f32.mrf.mxu0
        %v1626 = vadd.f32 %v1143, %v1625
        %1627 = vmatprep.mubr.bf16.mxu0 %v1009
        %1628 = vmatmul.mubr.bf16.gmra.mxu0 %v1008
        %v1629 = vpop.f32.mrf.mxu0
        %v1630 = vadd.f32 %v1139, %v1629
        %v1631 = vpop.f32.mrf.mxu0
        %v1632 = vadd.f32 %v1143, %v1631
        %v1633 = vpop.f32.mrf.mxu0
        %v1634 = vadd.f32 %v1139, %v1633
        %v1635 = vpop.f32.mrf.mxu0
        %v1636 = vadd.f32 %v1143, %v1635
        %1637 = vmatprep.mubr.bf16.mxu0 %v1012
        %1638 = vmatmul.mubr.bf16.gmra.mxu0 %v1011
        %v1639 = vpop.f32.mrf.mxu0
        %v1640 = vadd.f32 %v1139, %v1639
        %v1641 = vpop.f32.mrf.mxu0
        %v1642 = vadd.f32 %v1143, %v1641
        %v1643 = vpop.f32.mrf.mxu0
        %v1644 = vadd.f32 %v1139, %v1643
        %v1645 = vpop.f32.mrf.mxu0
        %v1646 = vadd.f32 %v1143, %v1645
        %1647 = vmatprep.mubr.bf16.mxu0 %v1015
        %1648 = vmatmul.mubr.bf16.gmra.mxu0 %v1014
        %v1649 = vpop.f32.mrf.mxu0
        %v1650 = vadd.f32 %v1139, %v1649
        %v1651 = vpop.f32.mrf.mxu0
        %v1652 = vadd.f32 %v1143, %v1651
        %v1653 = vpop.f32.mrf.mxu0
        %v1654 = vadd.f32 %v1139, %v1653
        %v1655 = vpop.f32.mrf.mxu0
        %v1656 = vadd.f32 %v1143, %v1655
        %1657 = vmatprep.mubr.bf16.mxu0 %v1018
        %1658 = vmatmul.mubr.bf16.gmra.mxu0 %v1017
        %v1659 = vpop.f32.mrf.mxu0
        %v1660 = vadd.f32 %v1139, %v1659
        %v1661 = vpop.f32.mrf.mxu0
        %v1662 = vadd.f32 %v1143, %v1661
        %v1663 = vpop.f32.mrf.mxu0
        %v1664 = vadd.f32 %v1139, %v1663
        %v1665 = vpop.f32.mrf.mxu0
        %v1666 = vadd.f32 %v1143, %v1665
        %1667 = vmatprep.mubr.bf16.mxu0 %v1021
        %1668 = vmatmul.mubr.bf16.gmra.mxu0 %v1020
        %v1669 = vpop.f32.mrf.mxu0
        %v1670 = vadd.f32 %v1139, %v1669
        %v1671 = vpop.f32.mrf.mxu0
        %v1672 = vadd.f32 %v1143, %v1671
        %v1673 = vpop.f32.mrf.mxu0
        %v1674 = vadd.f32 %v1139, %v1673
        %v1675 = vpop.f32.mrf.mxu0
        %v1676 = vadd.f32 %v1143, %v1675
        %1677 = vmatprep.mubr.bf16.mxu0 %v1024
        %1678 = vmatmul.mubr.bf16.gmra.mxu0 %v1023
        %v1679 = vpop.f32.mrf.mxu0
        %v1680 = vadd.f32 %v1139, %v1679
        %v1681 = vpop.f32.mrf.mxu0
        %v1682 = vadd.f32 %v1143, %v1681
        %v1683 = vpop.f32.mrf.mxu0
        %v1684 = vadd.f32 %v1139, %v1683
        %v1685 = vpop.f32.mrf.mxu0
        %v1686 = vadd.f32 %v1143, %v1685
        %1687 = vmatprep.mubr.bf16.mxu0 %v1027
        %1688 = vmatmul.mubr.bf16.gmra.mxu0 %v1026
        %v1689 = vpop.f32.mrf.mxu0
        %v1690 = vadd.f32 %v1139, %v1689
        %v1691 = vpop.f32.mrf.mxu0
        %v1692 = vadd.f32 %v1143, %v1691
        %v1693 = vpop.f32.mrf.mxu0
        %v1694 = vadd.f32 %v1139, %v1693
        %v1695 = vpop.f32.mrf.mxu0
        %v1696 = vadd.f32 %v1143, %v1695
        %1697 = vmatprep.mubr.bf16.mxu0 %v1030
        %1698 = vmatmul.mubr.bf16.gmra.mxu0 %v1029
        %v1699 = vpop.f32.mrf.mxu0
        %v1700 = vadd.f32 %v1139, %v1699
        %v1701 = vpop.f32.mrf.mxu0
        %v1702 = vadd.f32 %v1143, %v1701
        %v1703 = vpop.f32.mrf.mxu0
        %v1704 = vadd.f32 %v1139, %v1703
        %v1705 = vpop.f32.mrf.mxu0
        %v1706 = vadd.f32 %v1143, %v1705
        %1707 = vmatprep.mubr.bf16.mxu0 %v1033
        %1708 = vmatmul.mubr.bf16.gmra.mxu0 %v1032
        %v1709 = vpop.f32.mrf.mxu0
        %v1710 = vadd.f32 %v1139, %v1709
        %v1711 = vpop.f32.mrf.mxu0
        %v1712 = vadd.f32 %v1143, %v1711
        %v1713 = vpop.f32.mrf.mxu0
        %v1714 = vadd.f32 %v1139, %v1713
        %v1715 = vpop.f32.mrf.mxu0
        %v1716 = vadd.f32 %v1143, %v1715
        %1717 = vmatprep.mubr.bf16.mxu0 %v1036
        %1718 = vmatmul.mubr.bf16.gmra.mxu0 %v1035
        %v1719 = vpop.f32.mrf.mxu0
        %v1720 = vadd.f32 %v1139, %v1719
        %v1721 = vpop.f32.mrf.mxu0
        %v1722 = vadd.f32 %v1143, %v1721
        %v1723 = vpop.f32.mrf.mxu0
        %v1724 = vadd.f32 %v1139, %v1723
        %v1725 = vpop.f32.mrf.mxu0
        %v1726 = vadd.f32 %v1143, %v1725
        %1727 = vdwg.mxu0
        %1728 = vmatprep.subr.bf16.mxu0 %v1461
        %1729 = vmatpush1.bf16.msra.mxu0 %v1460
        %1730 = vmatprep.subr.bf16.mxu0 %v1458
        %1731 = vmatpush1.bf16.msra.mxu0 %v1457
        %1732 = vmatprep.subr.bf16.mxu0 %v1455
        %1733 = vmatpush1.bf16.msra.mxu0 %v1454
        %1734 = vmatprep.subr.bf16.mxu0 %v1452
        %1735 = vmatpush1.bf16.msra.mxu0 %v1451
        %1736 = vmatprep.subr.bf16.mxu0 %v1449
        %1737 = vmatpush1.bf16.msra.mxu0 %v1448
        %1738 = vmatprep.subr.bf16.mxu0 %v1446
        %1739 = vmatpush1.bf16.msra.mxu0 %v1445
        %1740 = vmatprep.subr.bf16.mxu0 %v1443
        %1741 = vmatpush1.bf16.msra.mxu0 %v1442
        %1742 = vmatprep.subr.bf16.mxu0 %v1440
        %1743 = vmatpush1.bf16.msra.mxu0 %v1439
        %1744 = vmatprep.subr.bf16.mxu0 0
        %1745 = vmatpush2.bf16.msra.mxu0 0
        %1746 = vmatprep.subr.bf16.mxu0 0
        %1747 = vmatpush2.bf16.msra.mxu0 0
        %1748 = vmatprep.subr.bf16.mxu0 0
        %1749 = vmatpush2.bf16.msra.mxu0 0
        %1750 = vmatprep.subr.bf16.mxu0 0
        %1751 = vmatpush2.bf16.msra.mxu0 0
        %1752 = vmatprep.subr.bf16.mxu0 0
        %1753 = vmatpush2.bf16.msra.mxu0 0
        %1754 = vmatprep.subr.bf16.mxu0 0
        %1755 = vmatpush2.bf16.msra.mxu0 0
        %1756 = vmatprep.subr.bf16.mxu0 0
        %1757 = vmatpush2.bf16.msra.mxu0 0
        %1758 = vmatprep.subr.bf16.mxu0 0
        %1759 = vmatpush2.bf16.msra.mxu0 0
        %1760 = vmatprep.mubr.bf16.mxu0 0
        %1761 = vmatmul.mubr.bf16.gmra.mxu0 %v992
        %v1762 = vpop.f32.mrf.mxu0
        %v1763 = vadd.f32 %v1570, %v1762
        %v1764 = vpop.f32.mrf.mxu0
        %v1765 = vadd.f32 %v1572, %v1764
        %v1766 = vpop.f32.mrf.mxu0
        %v1767 = vadd.f32 %v1574, %v1766
        %v1768 = vpop.f32.mrf.mxu0
        %v1769 = vadd.f32 %v1576, %v1768
        %1770 = vmatprep.mubr.bf16.mxu0 0
        %1771 = vmatmul.mubr.bf16.gmra.mxu0 %v995
        %v1772 = vpop.f32.mrf.mxu0
        %v1773 = vadd.f32 %v1580, %v1772
        %v1774 = vpop.f32.mrf.mxu0
        %v1775 = vadd.f32 %v1582, %v1774
        %v1776 = vpop.f32.mrf.mxu0
        %v1777 = vadd.f32 %v1584, %v1776
        %v1778 = vpop.f32.mrf.mxu0
        %v1779 = vadd.f32 %v1586, %v1778
        %1780 = vmatprep.mubr.bf16.mxu0 0
        %1781 = vmatmul.mubr.bf16.gmra.mxu0 %v998
        %v1782 = vpop.f32.mrf.mxu0
        %v1783 = vadd.f32 %v1590, %v1782
        %v1784 = vpop.f32.mrf.mxu0
        %v1785 = vadd.f32 %v1592, %v1784
        %v1786 = vpop.f32.mrf.mxu0
        %v1787 = vadd.f32 %v1594, %v1786
        %v1788 = vpop.f32.mrf.mxu0
        %v1789 = vadd.f32 %v1596, %v1788
        %1790 = vmatprep.mubr.bf16.mxu0 0
        %1791 = vmatmul.mubr.bf16.gmra.mxu0 %v1001
        %v1792 = vpop.f32.mrf.mxu0
        %v1793 = vadd.f32 %v1600, %v1792
        %v1794 = vpop.f32.mrf.mxu0
        %v1795 = vadd.f32 %v1602, %v1794
        %v1796 = vpop.f32.mrf.mxu0
        %v1797 = vadd.f32 %v1604, %v1796
        %v1798 = vpop.f32.mrf.mxu0
        %v1799 = vadd.f32 %v1606, %v1798
        %1800 = vmatprep.mubr.bf16.mxu0 0
        %1801 = vmatmul.mubr.bf16.gmra.mxu0 %v1004
        %v1802 = vpop.f32.mrf.mxu0
        %v1803 = vadd.f32 %v1610, %v1802
        %v1804 = vpop.f32.mrf.mxu0
        %v1805 = vadd.f32 %v1612, %v1804
        %v1806 = vpop.f32.mrf.mxu0
        %v1807 = vadd.f32 %v1614, %v1806
        %v1808 = vpop.f32.mrf.mxu0
        %v1809 = vadd.f32 %v1616, %v1808
        %1810 = vmatprep.mubr.bf16.mxu0 0
        %1811 = vmatmul.mubr.bf16.gmra.mxu0 %v1007
        %v1812 = vpop.f32.mrf.mxu0
        %v1813 = vadd.f32 %v1620, %v1812
        %v1814 = vpop.f32.mrf.mxu0
        %v1815 = vadd.f32 %v1622, %v1814
        %v1816 = vpop.f32.mrf.mxu0
        %v1817 = vadd.f32 %v1624, %v1816
        %v1818 = vpop.f32.mrf.mxu0
        %v1819 = vadd.f32 %v1626, %v1818
        %1820 = vmatprep.mubr.bf16.mxu0 0
        %1821 = vmatmul.mubr.bf16.gmra.mxu0 %v1010
        %v1822 = vpop.f32.mrf.mxu0
        %v1823 = vadd.f32 %v1630, %v1822
        %v1824 = vpop.f32.mrf.mxu0
        %v1825 = vadd.f32 %v1632, %v1824
        %v1826 = vpop.f32.mrf.mxu0
        %v1827 = vadd.f32 %v1634, %v1826
        %v1828 = vpop.f32.mrf.mxu0
        %v1829 = vadd.f32 %v1636, %v1828
        %1830 = vmatprep.mubr.bf16.mxu0 0
        %1831 = vmatmul.mubr.bf16.gmra.mxu0 %v1013
        %v1832 = vpop.f32.mrf.mxu0
        %v1833 = vadd.f32 %v1640, %v1832
        %v1834 = vpop.f32.mrf.mxu0
        %v1835 = vadd.f32 %v1642, %v1834
        %v1836 = vpop.f32.mrf.mxu0
        %v1837 = vadd.f32 %v1644, %v1836
        %v1838 = vpop.f32.mrf.mxu0
        %v1839 = vadd.f32 %v1646, %v1838
        %1840 = vmatprep.mubr.bf16.mxu0 0
        %1841 = vmatmul.mubr.bf16.gmra.mxu0 %v1016
        %v1842 = vpop.f32.mrf.mxu0
        %v1843 = vadd.f32 %v1650, %v1842
        %v1844 = vpop.f32.mrf.mxu0
        %v1845 = vadd.f32 %v1652, %v1844
        %v1846 = vpop.f32.mrf.mxu0
        %v1847 = vadd.f32 %v1654, %v1846
        %v1848 = vpop.f32.mrf.mxu0
        %v1849 = vadd.f32 %v1656, %v1848
        %1850 = vmatprep.mubr.bf16.mxu0 0
        %1851 = vmatmul.mubr.bf16.gmra.mxu0 %v1019
        %v1852 = vpop.f32.mrf.mxu0
        %v1853 = vadd.f32 %v1660, %v1852
        %v1854 = vpop.f32.mrf.mxu0
        %v1855 = vadd.f32 %v1662, %v1854
        %v1856 = vpop.f32.mrf.mxu0
        %v1857 = vadd.f32 %v1664, %v1856
        %v1858 = vpop.f32.mrf.mxu0
        %v1859 = vadd.f32 %v1666, %v1858
        %1860 = vmatprep.mubr.bf16.mxu0 0
        %1861 = vmatmul.mubr.bf16.gmra.mxu0 %v1022
        %v1862 = vpop.f32.mrf.mxu0
        %v1863 = vadd.f32 %v1670, %v1862
        %v1864 = vpop.f32.mrf.mxu0
        %v1865 = vadd.f32 %v1672, %v1864
        %v1866 = vpop.f32.mrf.mxu0
        %v1867 = vadd.f32 %v1674, %v1866
        %v1868 = vpop.f32.mrf.mxu0
        %v1869 = vadd.f32 %v1676, %v1868
        %1870 = vmatprep.mubr.bf16.mxu0 0
        %1871 = vmatmul.mubr.bf16.gmra.mxu0 %v1025
        %v1872 = vpop.f32.mrf.mxu0
        %v1873 = vadd.f32 %v1680, %v1872
        %v1874 = vpop.f32.mrf.mxu0
        %v1875 = vadd.f32 %v1682, %v1874
        %v1876 = vpop.f32.mrf.mxu0
        %v1877 = vadd.f32 %v1684, %v1876
        %v1878 = vpop.f32.mrf.mxu0
        %v1879 = vadd.f32 %v1686, %v1878
        %1880 = vmatprep.mubr.bf16.mxu0 0
        %1881 = vmatmul.mubr.bf16.gmra.mxu0 %v1028
        %v1882 = vpop.f32.mrf.mxu0
        %v1883 = vadd.f32 %v1690, %v1882
        %v1884 = vpop.f32.mrf.mxu0
        %v1885 = vadd.f32 %v1692, %v1884
        %v1886 = vpop.f32.mrf.mxu0
        %v1887 = vadd.f32 %v1694, %v1886
        %v1888 = vpop.f32.mrf.mxu0
        %v1889 = vadd.f32 %v1696, %v1888
        %1890 = vmatprep.mubr.bf16.mxu0 0
        %1891 = vmatmul.mubr.bf16.gmra.mxu0 %v1031
        %v1892 = vpop.f32.mrf.mxu0
        %v1893 = vadd.f32 %v1700, %v1892
        %v1894 = vpop.f32.mrf.mxu0
        %v1895 = vadd.f32 %v1702, %v1894
        %v1896 = vpop.f32.mrf.mxu0
        %v1897 = vadd.f32 %v1704, %v1896
        %v1898 = vpop.f32.mrf.mxu0
        %v1899 = vadd.f32 %v1706, %v1898
        %1900 = vmatprep.mubr.bf16.mxu0 0
        %1901 = vmatmul.mubr.bf16.gmra.mxu0 %v1034
        %v1902 = vpop.f32.mrf.mxu0
        %v1903 = vadd.f32 %v1710, %v1902
        %v1904 = vpop.f32.mrf.mxu0
        %v1905 = vadd.f32 %v1712, %v1904
        %v1906 = vpop.f32.mrf.mxu0
        %v1907 = vadd.f32 %v1714, %v1906
        %v1908 = vpop.f32.mrf.mxu0
        %v1909 = vadd.f32 %v1716, %v1908
        %1910 = vmatprep.mubr.bf16.mxu0 0
        %1911 = vmatmul.mubr.bf16.gmra.mxu0 %v1037
        %v1912 = vpop.f32.mrf.mxu0
        %v1913 = vadd.f32 %v1720, %v1912
        %v1914 = vpop.f32.mrf.mxu0
        %v1915 = vadd.f32 %v1722, %v1914
        %v1916 = vpop.f32.mrf.mxu0
        %v1917 = vadd.f32 %v1724, %v1916
        %v1918 = vpop.f32.mrf.mxu0
        %v1919 = vadd.f32 %v1726, %v1918
        %1920 = vdwg.mxu0
        %1921 = vmatprep.subr.bf16.mxu0 0
        %1922 = vmatpush1.bf16.msra.mxu0 %v1414
        %1923 = vmatprep.subr.bf16.mxu0 0
        %1924 = vmatpush1.bf16.msra.mxu0 %v1411
        %1925 = vmatprep.subr.bf16.mxu0 0
        %1926 = vmatpush1.bf16.msra.mxu0 %v1408
        %1927 = vmatprep.subr.bf16.mxu0 0
        %1928 = vmatpush1.bf16.msra.mxu0 %v1405
        %1929 = vmatprep.subr.bf16.mxu0 0
        %1930 = vmatpush1.bf16.msra.mxu0 %v1402
        %1931 = vmatprep.subr.bf16.mxu0 0
        %1932 = vmatpush1.bf16.msra.mxu0 %v1399
        %1933 = vmatprep.subr.bf16.mxu0 0
        %1934 = vmatpush1.bf16.msra.mxu0 %v1396
        %1935 = vmatprep.subr.bf16.mxu0 0
        %1936 = vmatpush1.bf16.msra.mxu0 %v1393
        %1937 = vmatprep.subr.bf16.mxu0 0
        %1938 = vmatpush2.bf16.msra.mxu0 %v1438
        %1939 = vmatprep.subr.bf16.mxu0 0
        %1940 = vmatpush2.bf16.msra.mxu0 %v1435
        %1941 = vmatprep.subr.bf16.mxu0 0
        %1942 = vmatpush2.bf16.msra.mxu0 %v1432
        %1943 = vmatprep.subr.bf16.mxu0 0
        %1944 = vmatpush2.bf16.msra.mxu0 %v1429
        %1945 = vmatprep.subr.bf16.mxu0 0
        %1946 = vmatpush2.bf16.msra.mxu0 %v1426
        %1947 = vmatprep.subr.bf16.mxu0 0
        %1948 = vmatpush2.bf16.msra.mxu0 %v1423
        %1949 = vmatprep.subr.bf16.mxu0 0
        %1950 = vmatpush2.bf16.msra.mxu0 %v1420
        %1951 = vmatprep.subr.bf16.mxu0 0
        %1952 = vmatpush2.bf16.msra.mxu0 %v1417
        %1953 = vmatprep.mubr.bf16.mxu0 %v991
        %1954 = vmatmul.mubr.bf16.gmra.mxu0 %v990
        %v1955 = vpop.f32.mrf.mxu0
        %v1956 = vadd.f32 %v1147, %v1955
        %v1957 = vpop.f32.mrf.mxu0
        %v1958 = vpop.f32.mrf.mxu0
        %v1959 = vadd.f32 %v1147, %v1958
        %v1960 = vpop.f32.mrf.mxu0
        %1961 = vmatprep.mubr.bf16.mxu0 %v994
        %1962 = vmatmul.mubr.bf16.gmra.mxu0 %v993
        %v1963 = vpop.f32.mrf.mxu0
        %v1964 = vadd.f32 %v1147, %v1963
        %v1965 = vpop.f32.mrf.mxu0
        %v1966 = vpop.f32.mrf.mxu0
        %v1967 = vadd.f32 %v1147, %v1966
        %v1968 = vpop.f32.mrf.mxu0
        %1969 = vmatprep.mubr.bf16.mxu0 %v997
        %1970 = vmatmul.mubr.bf16.gmra.mxu0 %v996
        %v1971 = vpop.f32.mrf.mxu0
        %v1972 = vadd.f32 %v1147, %v1971
        %v1973 = vpop.f32.mrf.mxu0
        %v1974 = vpop.f32.mrf.mxu0
        %v1975 = vadd.f32 %v1147, %v1974
        %v1976 = vpop.f32.mrf.mxu0
        %1977 = vmatprep.mubr.bf16.mxu0 %v1000
        %1978 = vmatmul.mubr.bf16.gmra.mxu0 %v999
        %v1979 = vpop.f32.mrf.mxu0
        %v1980 = vadd.f32 %v1147, %v1979
        %v1981 = vpop.f32.mrf.mxu0
        %v1982 = vpop.f32.mrf.mxu0
        %v1983 = vadd.f32 %v1147, %v1982
        %v1984 = vpop.f32.mrf.mxu0
        %1985 = vmatprep.mubr.bf16.mxu0 %v1003
        %1986 = vmatmul.mubr.bf16.gmra.mxu0 %v1002
        %v1987 = vpop.f32.mrf.mxu0
        %v1988 = vadd.f32 %v1147, %v1987
        %v1989 = vpop.f32.mrf.mxu0
        %v1990 = vpop.f32.mrf.mxu0
        %v1991 = vadd.f32 %v1147, %v1990
        %v1992 = vpop.f32.mrf.mxu0
        %1993 = vmatprep.mubr.bf16.mxu0 %v1006
        %1994 = vmatmul.mubr.bf16.gmra.mxu0 %v1005
        %v1995 = vpop.f32.mrf.mxu0
        %v1996 = vadd.f32 %v1147, %v1995
        %v1997 = vpop.f32.mrf.mxu0
        %v1998 = vpop.f32.mrf.mxu0
        %v1999 = vadd.f32 %v1147, %v1998
        %v2000 = vpop.f32.mrf.mxu0
        %2001 = vmatprep.mubr.bf16.mxu0 %v1009
        %2002 = vmatmul.mubr.bf16.gmra.mxu0 %v1008
        %v2003 = vpop.f32.mrf.mxu0
        %v2004 = vadd.f32 %v1147, %v2003
        %v2005 = vpop.f32.mrf.mxu0
        %v2006 = vpop.f32.mrf.mxu0
        %v2007 = vadd.f32 %v1147, %v2006
        %v2008 = vpop.f32.mrf.mxu0
        %2009 = vmatprep.mubr.bf16.mxu0 %v1012
        %2010 = vmatmul.mubr.bf16.gmra.mxu0 %v1011
        %v2011 = vpop.f32.mrf.mxu0
        %v2012 = vadd.f32 %v1147, %v2011
        %v2013 = vpop.f32.mrf.mxu0
        %v2014 = vpop.f32.mrf.mxu0
        %v2015 = vadd.f32 %v1147, %v2014
        %v2016 = vpop.f32.mrf.mxu0
        %2017 = vmatprep.mubr.bf16.mxu0 %v1015
        %2018 = vmatmul.mubr.bf16.gmra.mxu0 %v1014
        %v2019 = vpop.f32.mrf.mxu0
        %v2020 = vadd.f32 %v1147, %v2019
        %v2021 = vpop.f32.mrf.mxu0
        %v2022 = vpop.f32.mrf.mxu0
        %v2023 = vadd.f32 %v1147, %v2022
        %v2024 = vpop.f32.mrf.mxu0
        %2025 = vmatprep.mubr.bf16.mxu0 %v1018
        %2026 = vmatmul.mubr.bf16.gmra.mxu0 %v1017
        %v2027 = vpop.f32.mrf.mxu0
        %v2028 = vadd.f32 %v1147, %v2027
        %v2029 = vpop.f32.mrf.mxu0
        %v2030 = vpop.f32.mrf.mxu0
        %v2031 = vadd.f32 %v1147, %v2030
        %v2032 = vpop.f32.mrf.mxu0
        %2033 = vmatprep.mubr.bf16.mxu0 %v1021
        %2034 = vmatmul.mubr.bf16.gmra.mxu0 %v1020
        %v2035 = vpop.f32.mrf.mxu0
        %v2036 = vadd.f32 %v1147, %v2035
        %v2037 = vpop.f32.mrf.mxu0
        %v2038 = vpop.f32.mrf.mxu0
        %v2039 = vadd.f32 %v1147, %v2038
        %v2040 = vpop.f32.mrf.mxu0
        %2041 = vmatprep.mubr.bf16.mxu0 %v1024
        %2042 = vmatmul.mubr.bf16.gmra.mxu0 %v1023
        %v2043 = vpop.f32.mrf.mxu0
        %v2044 = vadd.f32 %v1147, %v2043
        %v2045 = vpop.f32.mrf.mxu0
        %v2046 = vpop.f32.mrf.mxu0
        %v2047 = vadd.f32 %v1147, %v2046
        %v2048 = vpop.f32.mrf.mxu0
        %2049 = vmatprep.mubr.bf16.mxu0 %v1027
        %2050 = vmatmul.mubr.bf16.gmra.mxu0 %v1026
        %v2051 = vpop.f32.mrf.mxu0
        %v2052 = vadd.f32 %v1147, %v2051
        %v2053 = vpop.f32.mrf.mxu0
        %v2054 = vpop.f32.mrf.mxu0
        %v2055 = vadd.f32 %v1147, %v2054
        %v2056 = vpop.f32.mrf.mxu0
        %2057 = vmatprep.mubr.bf16.mxu0 %v1030
        %2058 = vmatmul.mubr.bf16.gmra.mxu0 %v1029
        %v2059 = vpop.f32.mrf.mxu0
        %v2060 = vadd.f32 %v1147, %v2059
        %v2061 = vpop.f32.mrf.mxu0
        %v2062 = vpop.f32.mrf.mxu0
        %v2063 = vadd.f32 %v1147, %v2062
        %v2064 = vpop.f32.mrf.mxu0
        %2065 = vmatprep.mubr.bf16.mxu0 %v1033
        %2066 = vmatmul.mubr.bf16.gmra.mxu0 %v1032
        %v2067 = vpop.f32.mrf.mxu0
        %v2068 = vadd.f32 %v1147, %v2067
        %v2069 = vpop.f32.mrf.mxu0
        %v2070 = vpop.f32.mrf.mxu0
        %v2071 = vadd.f32 %v1147, %v2070
        %v2072 = vpop.f32.mrf.mxu0
        %2073 = vmatprep.mubr.bf16.mxu0 %v1036
        %2074 = vmatmul.mubr.bf16.gmra.mxu0 %v1035
        %v2075 = vpop.f32.mrf.mxu0
        %v2076 = vadd.f32 %v1147, %v2075
        %v2077 = vpop.f32.mrf.mxu0
        %v2078 = vpop.f32.mrf.mxu0
        %v2079 = vadd.f32 %v1147, %v2078
        %v2080 = vpop.f32.mrf.mxu0
        %2081 = vdwg.mxu0
        %2082 = vmatprep.subr.bf16.mxu0 0
        %2083 = vmatpush1.bf16.msra.mxu0 %v1462
        %2084 = vmatprep.subr.bf16.mxu0 0
        %2085 = vmatpush1.bf16.msra.mxu0 %v1459
        %2086 = vmatprep.subr.bf16.mxu0 0
        %2087 = vmatpush1.bf16.msra.mxu0 %v1456
        %2088 = vmatprep.subr.bf16.mxu0 0
        %2089 = vmatpush1.bf16.msra.mxu0 %v1453
        %2090 = vmatprep.subr.bf16.mxu0 0
        %2091 = vmatpush1.bf16.msra.mxu0 %v1450
        %2092 = vmatprep.subr.bf16.mxu0 0
        %2093 = vmatpush1.bf16.msra.mxu0 %v1447
        %2094 = vmatprep.subr.bf16.mxu0 0
        %2095 = vmatpush1.bf16.msra.mxu0 %v1444
        %2096 = vmatprep.subr.bf16.mxu0 0
        %2097 = vmatpush1.bf16.msra.mxu0 %v1441
        %2098 = vmatprep.subr.bf16.mxu0 0
        %2099 = vmatpush2.bf16.msra.mxu0 0
        %2100 = vmatprep.subr.bf16.mxu0 0
        %2101 = vmatpush2.bf16.msra.mxu0 0
        %2102 = vmatprep.subr.bf16.mxu0 0
        %2103 = vmatpush2.bf16.msra.mxu0 0
        %2104 = vmatprep.subr.bf16.mxu0 0
        %2105 = vmatpush2.bf16.msra.mxu0 0
        %2106 = vmatprep.subr.bf16.mxu0 0
        %2107 = vmatpush2.bf16.msra.mxu0 0
        %2108 = vmatprep.subr.bf16.mxu0 0
        %2109 = vmatpush2.bf16.msra.mxu0 0
        %2110 = vmatprep.subr.bf16.mxu0 0
        %2111 = vmatpush2.bf16.msra.mxu0 0
        %2112 = vmatprep.subr.bf16.mxu0 0
        %2113 = vmatpush2.bf16.msra.mxu0 0
        %2114 = vmatprep.mubr.bf16.mxu0 0
        %2115 = vmatmul.mubr.bf16.gmra.mxu0 %v992
        %v2116 = vpop.f32.mrf.mxu0
        %v2117 = vadd.f32 %v1956, %v2116
        %v2118 = vpop.f32.mrf.mxu0
        %v2119 = vpop.f32.mrf.mxu0
        %v2120 = vadd.f32 %v1959, %v2119
        %v2121 = vpop.f32.mrf.mxu0
        %2122 = vmatprep.mubr.bf16.mxu0 0
        %2123 = vmatmul.mubr.bf16.gmra.mxu0 %v995
        %v2124 = vpop.f32.mrf.mxu0
        %v2125 = vadd.f32 %v1964, %v2124
        %v2126 = vpop.f32.mrf.mxu0
        %v2127 = vpop.f32.mrf.mxu0
        %v2128 = vadd.f32 %v1967, %v2127
        %v2129 = vpop.f32.mrf.mxu0
        %2130 = vmatprep.mubr.bf16.mxu0 0
        %2131 = vmatmul.mubr.bf16.gmra.mxu0 %v998
        %v2132 = vpop.f32.mrf.mxu0
        %v2133 = vadd.f32 %v1972, %v2132
        %v2134 = vpop.f32.mrf.mxu0
        %v2135 = vpop.f32.mrf.mxu0
        %v2136 = vadd.f32 %v1975, %v2135
        %v2137 = vpop.f32.mrf.mxu0
        %2138 = vmatprep.mubr.bf16.mxu0 0
        %2139 = vmatmul.mubr.bf16.gmra.mxu0 %v1001
        %v2140 = vpop.f32.mrf.mxu0
        %v2141 = vadd.f32 %v1980, %v2140
        %v2142 = vpop.f32.mrf.mxu0
        %v2143 = vpop.f32.mrf.mxu0
        %v2144 = vadd.f32 %v1983, %v2143
        %v2145 = vpop.f32.mrf.mxu0
        %2146 = vmatprep.mubr.bf16.mxu0 0
        %2147 = vmatmul.mubr.bf16.gmra.mxu0 %v1004
        %v2148 = vpop.f32.mrf.mxu0
        %v2149 = vadd.f32 %v1988, %v2148
        %v2150 = vpop.f32.mrf.mxu0
        %v2151 = vpop.f32.mrf.mxu0
        %v2152 = vadd.f32 %v1991, %v2151
        %v2153 = vpop.f32.mrf.mxu0
        %2154 = vmatprep.mubr.bf16.mxu0 0
        %2155 = vmatmul.mubr.bf16.gmra.mxu0 %v1007
        %v2156 = vpop.f32.mrf.mxu0
        %v2157 = vadd.f32 %v1996, %v2156
        %v2158 = vpop.f32.mrf.mxu0
        %v2159 = vpop.f32.mrf.mxu0
        %v2160 = vadd.f32 %v1999, %v2159
        %v2161 = vpop.f32.mrf.mxu0
        %2162 = vmatprep.mubr.bf16.mxu0 0
        %2163 = vmatmul.mubr.bf16.gmra.mxu0 %v1010
        %v2164 = vpop.f32.mrf.mxu0
        %v2165 = vadd.f32 %v2004, %v2164
        %v2166 = vpop.f32.mrf.mxu0
        %v2167 = vpop.f32.mrf.mxu0
        %v2168 = vadd.f32 %v2007, %v2167
        %v2169 = vpop.f32.mrf.mxu0
        %2170 = vmatprep.mubr.bf16.mxu0 0
        %2171 = vmatmul.mubr.bf16.gmra.mxu0 %v1013
        %v2172 = vpop.f32.mrf.mxu0
        %v2173 = vadd.f32 %v2012, %v2172
        %v2174 = vpop.f32.mrf.mxu0
        %v2175 = vpop.f32.mrf.mxu0
        %v2176 = vadd.f32 %v2015, %v2175
        %v2177 = vpop.f32.mrf.mxu0
        %2178 = vmatprep.mubr.bf16.mxu0 0
        %2179 = vmatmul.mubr.bf16.gmra.mxu0 %v1016
        %v2180 = vpop.f32.mrf.mxu0
        %v2181 = vadd.f32 %v2020, %v2180
        %v2182 = vpop.f32.mrf.mxu0
        %v2183 = vpop.f32.mrf.mxu0
        %v2184 = vadd.f32 %v2023, %v2183
        %v2185 = vpop.f32.mrf.mxu0
        %2186 = vmatprep.mubr.bf16.mxu0 0
        %2187 = vmatmul.mubr.bf16.gmra.mxu0 %v1019
        %v2188 = vpop.f32.mrf.mxu0
        %v2189 = vadd.f32 %v2028, %v2188
        %v2190 = vpop.f32.mrf.mxu0
        %v2191 = vpop.f32.mrf.mxu0
        %v2192 = vadd.f32 %v2031, %v2191
        %v2193 = vpop.f32.mrf.mxu0
        %2194 = vmatprep.mubr.bf16.mxu0 0
        %2195 = vmatmul.mubr.bf16.gmra.mxu0 %v1022
        %v2196 = vpop.f32.mrf.mxu0
        %v2197 = vadd.f32 %v2036, %v2196
        %v2198 = vpop.f32.mrf.mxu0
        %v2199 = vpop.f32.mrf.mxu0
        %v2200 = vadd.f32 %v2039, %v2199
        %v2201 = vpop.f32.mrf.mxu0
        %2202 = vmatprep.mubr.bf16.mxu0 0
        %2203 = vmatmul.mubr.bf16.gmra.mxu0 %v1025
        %v2204 = vpop.f32.mrf.mxu0
        %v2205 = vadd.f32 %v2044, %v2204
        %v2206 = vpop.f32.mrf.mxu0
        %v2207 = vpop.f32.mrf.mxu0
        %v2208 = vadd.f32 %v2047, %v2207
        %v2209 = vpop.f32.mrf.mxu0
        %2210 = vmatprep.mubr.bf16.mxu0 0
        %2211 = vmatmul.mubr.bf16.gmra.mxu0 %v1028
        %v2212 = vpop.f32.mrf.mxu0
        %v2213 = vadd.f32 %v2052, %v2212
        %v2214 = vpop.f32.mrf.mxu0
        %v2215 = vpop.f32.mrf.mxu0
        %v2216 = vadd.f32 %v2055, %v2215
        %v2217 = vpop.f32.mrf.mxu0
        %2218 = vmatprep.mubr.bf16.mxu0 0
        %2219 = vmatmul.mubr.bf16.gmra.mxu0 %v1031
        %v2220 = vpop.f32.mrf.mxu0
        %v2221 = vadd.f32 %v2060, %v2220
        %v2222 = vpop.f32.mrf.mxu0
        %v2223 = vpop.f32.mrf.mxu0
        %v2224 = vadd.f32 %v2063, %v2223
        %v2225 = vpop.f32.mrf.mxu0
        %2226 = vmatprep.mubr.bf16.mxu0 0
        %2227 = vmatmul.mubr.bf16.gmra.mxu0 %v1034
        %v2228 = vpop.f32.mrf.mxu0
        %v2229 = vadd.f32 %v2068, %v2228
        %v2230 = vpop.f32.mrf.mxu0
        %v2231 = vpop.f32.mrf.mxu0
        %v2232 = vadd.f32 %v2071, %v2231
        %v2233 = vpop.f32.mrf.mxu0
        %2234 = vmatprep.mubr.bf16.mxu0 0
        %2235 = vmatmul.mubr.bf16.gmra.mxu0 %v1037
        %v2236 = vpop.f32.mrf.mxu0
        %v2237 = vadd.f32 %v2076, %v2236
        %v2238 = vpop.f32.mrf.mxu0
        %v2239 = vpop.f32.mrf.mxu0
        %v2240 = vadd.f32 %v2079, %v2239
        %v2241 = vpop.f32.mrf.mxu0
        %2242 = vdwg.mxu0
        %v2243 = vxor.u32 %v1763, 2147483648
        %v2244 = vxor.u32 %v1765, 2147483648
        %v2245 = vxor.u32 %v2117, 2147483648
        %v2246 = vxor.u32 %v1767, 2147483648
        %v2247 = vxor.u32 %v1769, 2147483648
        %v2248 = vxor.u32 %v2120, 2147483648
        %v2249 = vxor.u32 %v1773, 2147483648
        %v2250 = vxor.u32 %v1775, 2147483648
        %v2251 = vxor.u32 %v2125, 2147483648
        %v2252 = vxor.u32 %v1777, 2147483648
        %v2253 = vxor.u32 %v1779, 2147483648
        %v2254 = vxor.u32 %v2128, 2147483648
        %v2255 = vxor.u32 %v1783, 2147483648
        %v2256 = vxor.u32 %v1785, 2147483648
        %v2257 = vxor.u32 %v2133, 2147483648
        %v2258 = vxor.u32 %v1787, 2147483648
        %v2259 = vxor.u32 %v1789, 2147483648
        %v2260 = vxor.u32 %v2136, 2147483648
        %v2261 = vxor.u32 %v1793, 2147483648
        %v2262 = vxor.u32 %v1795, 2147483648
        %v2263 = vxor.u32 %v2141, 2147483648
        %v2264 = vxor.u32 %v1797, 2147483648
        %v2265 = vxor.u32 %v1799, 2147483648
        %v2266 = vxor.u32 %v2144, 2147483648
        %v2267 = vxor.u32 %v1803, 2147483648
        %v2268 = vxor.u32 %v1805, 2147483648
        %v2269 = vxor.u32 %v2149, 2147483648
        %v2270 = vxor.u32 %v1807, 2147483648
        %v2271 = vxor.u32 %v1809, 2147483648
        %v2272 = vxor.u32 %v2152, 2147483648
        %v2273 = vxor.u32 %v1813, 2147483648
        %v2274 = vxor.u32 %v1815, 2147483648
        %v2275 = vxor.u32 %v2157, 2147483648
        %v2276 = vxor.u32 %v1817, 2147483648
        %v2277 = vxor.u32 %v1819, 2147483648
        %v2278 = vxor.u32 %v2160, 2147483648
        %v2279 = vxor.u32 %v1823, 2147483648
        %v2280 = vxor.u32 %v1825, 2147483648
        %v2281 = vxor.u32 %v2165, 2147483648
        %v2282 = vxor.u32 %v1827, 2147483648
        %v2283 = vxor.u32 %v1829, 2147483648
        %v2284 = vxor.u32 %v2168, 2147483648
        %v2285 = vxor.u32 %v1833, 2147483648
        %v2286 = vxor.u32 %v1835, 2147483648
        %v2287 = vxor.u32 %v2173, 2147483648
        %v2288 = vxor.u32 %v1837, 2147483648
        %v2289 = vxor.u32 %v1839, 2147483648
        %v2290 = vxor.u32 %v2176, 2147483648
        %v2291 = vxor.u32 %v1843, 2147483648
        %v2292 = vxor.u32 %v1845, 2147483648
        %v2293 = vxor.u32 %v2181, 2147483648
        %v2294 = vxor.u32 %v1847, 2147483648
        %v2295 = vxor.u32 %v1849, 2147483648
        %v2296 = vxor.u32 %v2184, 2147483648
        %v2297 = vxor.u32 %v1853, 2147483648
        %v2298 = vxor.u32 %v1855, 2147483648
        %v2299 = vxor.u32 %v2189, 2147483648
        %v2300 = vxor.u32 %v1857, 2147483648
        %v2301 = vxor.u32 %v1859, 2147483648
        %v2302 = vxor.u32 %v2192, 2147483648
        %v2303 = vxor.u32 %v1863, 2147483648
        %v2304 = vxor.u32 %v1865, 2147483648
        %v2305 = vxor.u32 %v2197, 2147483648
        %v2306 = vxor.u32 %v1867, 2147483648
        %v2307 = vxor.u32 %v1869, 2147483648
        %v2308 = vxor.u32 %v2200, 2147483648
        %v2309 = vxor.u32 %v1873, 2147483648
        %v2310 = vxor.u32 %v1875, 2147483648
        %v2311 = vxor.u32 %v2205, 2147483648
        %v2312 = vxor.u32 %v1877, 2147483648
        %v2313 = vxor.u32 %v1879, 2147483648
        %v2314 = vxor.u32 %v2208, 2147483648
        %v2315 = vxor.u32 %v1883, 2147483648
        %v2316 = vxor.u32 %v1885, 2147483648
        %v2317 = vxor.u32 %v2213, 2147483648
        %v2318 = vxor.u32 %v1887, 2147483648
        %v2319 = vxor.u32 %v1889, 2147483648
        %v2320 = vxor.u32 %v2216, 2147483648
        %v2321 = vxor.u32 %v1893, 2147483648
        %v2322 = vxor.u32 %v1895, 2147483648
        %v2323 = vxor.u32 %v2221, 2147483648
        %v2324 = vxor.u32 %v1897, 2147483648
        %v2325 = vxor.u32 %v1899, 2147483648
        %v2326 = vxor.u32 %v2224, 2147483648
        %v2327 = vxor.u32 %v1903, 2147483648
        %v2328 = vxor.u32 %v1905, 2147483648
        %v2329 = vxor.u32 %v2229, 2147483648
        %v2330 = vxor.u32 %v1907, 2147483648
        %v2331 = vxor.u32 %v1909, 2147483648
        %v2332 = vxor.u32 %v2232, 2147483648
        %v2333 = vxor.u32 %v1913, 2147483648
        %v2334 = vxor.u32 %v1915, 2147483648
        %v2335 = vxor.u32 %v2237, 2147483648
        %v2336 = vxor.u32 %v1917, 2147483648
        %v2337 = vxor.u32 %v1919, 2147483648
        %v2338 = vxor.u32 %v2240, 2147483648
        %v2339 = vmul.f32 %v2243, 1.442695
        %v2340 = vpow.pop %v2339
        %v2341 = vmul.f32 %v2244, 1.442695
        %v2342 = vpow.pop %v2341
        %v2343 = vmul.f32 %v2245, 1.442695
        %v2344 = vpow.pop %v2343
        %v2345 = vmul.f32 %v2246, 1.442695
        %v2346 = vpow.pop %v2345
        %v2347 = vmul.f32 %v2247, 1.442695
        %v2348 = vpow.pop %v2347
        %v2349 = vmul.f32 %v2248, 1.442695
        %v2350 = vpow.pop %v2349
        %v2351 = vmul.f32 %v2249, 1.442695
        %v2352 = vpow.pop %v2351
        %v2353 = vmul.f32 %v2250, 1.442695
        %v2354 = vpow.pop %v2353
        %v2355 = vmul.f32 %v2251, 1.442695
        %v2356 = vpow.pop %v2355
        %v2357 = vmul.f32 %v2252, 1.442695
        %v2358 = vpow.pop %v2357
        %v2359 = vmul.f32 %v2253, 1.442695
        %v2360 = vpow.pop %v2359
        %v2361 = vmul.f32 %v2254, 1.442695
        %v2362 = vpow.pop %v2361
        %v2363 = vmul.f32 %v2255, 1.442695
        %v2364 = vpow.pop %v2363
        %v2365 = vmul.f32 %v2256, 1.442695
        %v2366 = vpow.pop %v2365
        %v2367 = vmul.f32 %v2257, 1.442695
        %v2368 = vpow.pop %v2367
        %v2369 = vmul.f32 %v2258, 1.442695
        %v2370 = vpow.pop %v2369
        %v2371 = vmul.f32 %v2259, 1.442695
        %v2372 = vpow.pop %v2371
        %v2373 = vmul.f32 %v2260, 1.442695
        %v2374 = vpow.pop %v2373
        %v2375 = vmul.f32 %v2261, 1.442695
        %v2376 = vpow.pop %v2375
        %v2377 = vmul.f32 %v2262, 1.442695
        %v2378 = vpow.pop %v2377
        %v2379 = vmul.f32 %v2263, 1.442695
        %v2380 = vpow.pop %v2379
        %v2381 = vmul.f32 %v2264, 1.442695
        %v2382 = vpow.pop %v2381
        %v2383 = vmul.f32 %v2265, 1.442695
        %v2384 = vpow.pop %v2383
        %v2385 = vmul.f32 %v2266, 1.442695
        %v2386 = vpow.pop %v2385
        %v2387 = vmul.f32 %v2267, 1.442695
        %v2388 = vpow.pop %v2387
        %v2389 = vmul.f32 %v2268, 1.442695
        %v2390 = vpow.pop %v2389
        %v2391 = vmul.f32 %v2269, 1.442695
        %v2392 = vpow.pop %v2391
        %v2393 = vmul.f32 %v2270, 1.442695
        %v2394 = vpow.pop %v2393
        %v2395 = vmul.f32 %v2271, 1.442695
        %v2396 = vpow.pop %v2395
        %v2397 = vmul.f32 %v2272, 1.442695
        %v2398 = vpow.pop %v2397
        %v2399 = vmul.f32 %v2273, 1.442695
        %v2400 = vpow.pop %v2399
        %v2401 = vmul.f32 %v2274, 1.442695
        %v2402 = vpow.pop %v2401
        %v2403 = vmul.f32 %v2275, 1.442695
        %v2404 = vpow.pop %v2403
        %v2405 = vmul.f32 %v2276, 1.442695
        %v2406 = vpow.pop %v2405
        %v2407 = vmul.f32 %v2277, 1.442695
        %v2408 = vpow.pop %v2407
        %v2409 = vmul.f32 %v2278, 1.442695
        %v2410 = vpow.pop %v2409
        %v2411 = vmul.f32 %v2279, 1.442695
        %v2412 = vpow.pop %v2411
        %v2413 = vmul.f32 %v2280, 1.442695
        %v2414 = vpow.pop %v2413
        %v2415 = vmul.f32 %v2281, 1.442695
        %v2416 = vpow.pop %v2415
        %v2417 = vmul.f32 %v2282, 1.442695
        %v2418 = vpow.pop %v2417
        %v2419 = vmul.f32 %v2283, 1.442695
        %v2420 = vpow.pop %v2419
        %v2421 = vmul.f32 %v2284, 1.442695
        %v2422 = vpow.pop %v2421
        %v2423 = vmul.f32 %v2285, 1.442695
        %v2424 = vpow.pop %v2423
        %v2425 = vmul.f32 %v2286, 1.442695
        %v2426 = vpow.pop %v2425
        %v2427 = vmul.f32 %v2287, 1.442695
        %v2428 = vpow.pop %v2427
        %v2429 = vmul.f32 %v2288, 1.442695
        %v2430 = vpow.pop %v2429
        %v2431 = vmul.f32 %v2289, 1.442695
        %v2432 = vpow.pop %v2431
        %v2433 = vmul.f32 %v2290, 1.442695
        %v2434 = vpow.pop %v2433
        %v2435 = vmul.f32 %v2291, 1.442695
        %v2436 = vpow.pop %v2435
        %v2437 = vmul.f32 %v2292, 1.442695
        %v2438 = vpow.pop %v2437
        %v2439 = vmul.f32 %v2293, 1.442695
        %v2440 = vpow.pop %v2439
        %v2441 = vmul.f32 %v2294, 1.442695
        %v2442 = vpow.pop %v2441
        %v2443 = vmul.f32 %v2295, 1.442695
        %v2444 = vpow.pop %v2443
        %v2445 = vmul.f32 %v2296, 1.442695
        %v2446 = vpow.pop %v2445
        %v2447 = vmul.f32 %v2297, 1.442695
        %v2448 = vpow.pop %v2447
        %v2449 = vmul.f32 %v2298, 1.442695
        %v2450 = vpow.pop %v2449
        %v2451 = vmul.f32 %v2299, 1.442695
        %v2452 = vpow.pop %v2451
        %v2453 = vmul.f32 %v2300, 1.442695
        %v2454 = vpow.pop %v2453
        %v2455 = vmul.f32 %v2301, 1.442695
        %v2456 = vpow.pop %v2455
        %v2457 = vmul.f32 %v2302, 1.442695
        %v2458 = vpow.pop %v2457
        %v2459 = vmul.f32 %v2303, 1.442695
        %v2460 = vpow.pop %v2459
        %v2461 = vmul.f32 %v2304, 1.442695
        %v2462 = vpow.pop %v2461
        %v2463 = vmul.f32 %v2305, 1.442695
        %v2464 = vpow.pop %v2463
        %v2465 = vmul.f32 %v2306, 1.442695
        %v2466 = vpow.pop %v2465
        %v2467 = vmul.f32 %v2307, 1.442695
        %v2468 = vpow.pop %v2467
        %v2469 = vmul.f32 %v2308, 1.442695
        %v2470 = vpow.pop %v2469
        %v2471 = vmul.f32 %v2309, 1.442695
        %v2472 = vpow.pop %v2471
        %v2473 = vmul.f32 %v2310, 1.442695
        %v2474 = vpow.pop %v2473
        %v2475 = vmul.f32 %v2311, 1.442695
        %v2476 = vpow.pop %v2475
        %v2477 = vmul.f32 %v2312, 1.442695
        %v2478 = vpow.pop %v2477
        %v2479 = vmul.f32 %v2313, 1.442695
        %v2480 = vpow.pop %v2479
        %v2481 = vmul.f32 %v2314, 1.442695
        %v2482 = vpow.pop %v2481
        %v2483 = vmul.f32 %v2315, 1.442695
        %v2484 = vpow.pop %v2483
        %v2485 = vmul.f32 %v2316, 1.442695
        %v2486 = vpow.pop %v2485
        %v2487 = vmul.f32 %v2317, 1.442695
        %v2488 = vpow.pop %v2487
        %v2489 = vmul.f32 %v2318, 1.442695
        %v2490 = vpow.pop %v2489
        %v2491 = vmul.f32 %v2319, 1.442695
        %v2492 = vpow.pop %v2491
        %v2493 = vmul.f32 %v2320, 1.442695
        %v2494 = vpow.pop %v2493
        %v2495 = vmul.f32 %v2321, 1.442695
        %v2496 = vpow.pop %v2495
        %v2497 = vmul.f32 %v2322, 1.442695
        %v2498 = vpow.pop %v2497
        %v2499 = vmul.f32 %v2323, 1.442695
        %v2500 = vpow.pop %v2499
        %v2501 = vmul.f32 %v2324, 1.442695
        %v2502 = vpow.pop %v2501
        %v2503 = vmul.f32 %v2325, 1.442695
        %v2504 = vpow.pop %v2503
        %v2505 = vmul.f32 %v2326, 1.442695
        %v2506 = vpow.pop %v2505
        %v2507 = vmul.f32 %v2327, 1.442695
        %v2508 = vpow.pop %v2507
        %v2509 = vmul.f32 %v2328, 1.442695
        %v2510 = vpow.pop %v2509
        %v2511 = vmul.f32 %v2329, 1.442695
        %v2512 = vpow.pop %v2511
        %v2513 = vmul.f32 %v2330, 1.442695
        %v2514 = vpow.pop %v2513
        %v2515 = vmul.f32 %v2331, 1.442695
        %v2516 = vpow.pop %v2515
        %v2517 = vmul.f32 %v2332, 1.442695
        %v2518 = vpow.pop %v2517
        %v2519 = vmul.f32 %v2333, 1.442695
        %v2520 = vpow.pop %v2519
        %v2521 = vmul.f32 %v2334, 1.442695
        %v2522 = vpow.pop %v2521
        %v2523 = vmul.f32 %v2335, 1.442695
        %v2524 = vpow.pop %v2523
        %v2525 = vmul.f32 %v2336, 1.442695
        %v2526 = vpow.pop %v2525
        %v2527 = vmul.f32 %v2337, 1.442695
        %v2528 = vpow.pop %v2527
        %v2529 = vmul.f32 %v2338, 1.442695
        %v2530 = vpow.pop %v2529
        %v2531 = vadd.f32 %v2340, 1.0
        %v2532 = vadd.f32 %v2342, 1.0
        %v2533 = vadd.f32 %v2344, 1.0
        %v2534 = vadd.f32 %v2346, 1.0
        %v2535 = vadd.f32 %v2348, 1.0
        %v2536 = vadd.f32 %v2350, 1.0
        %v2537 = vadd.f32 %v2352, 1.0
        %v2538 = vadd.f32 %v2354, 1.0
        %v2539 = vadd.f32 %v2356, 1.0
        %v2540 = vadd.f32 %v2358, 1.0
        %v2541 = vadd.f32 %v2360, 1.0
        %v2542 = vadd.f32 %v2362, 1.0
        %v2543 = vadd.f32 %v2364, 1.0
        %v2544 = vadd.f32 %v2366, 1.0
        %v2545 = vadd.f32 %v2368, 1.0
        %v2546 = vadd.f32 %v2370, 1.0
        %v2547 = vadd.f32 %v2372, 1.0
        %v2548 = vadd.f32 %v2374, 1.0
        %v2549 = vadd.f32 %v2376, 1.0
        %v2550 = vadd.f32 %v2378, 1.0
        %v2551 = vadd.f32 %v2380, 1.0
        %v2552 = vadd.f32 %v2382, 1.0
        %v2553 = vadd.f32 %v2384, 1.0
        %v2554 = vadd.f32 %v2386, 1.0
        %v2555 = vadd.f32 %v2388, 1.0
        %v2556 = vadd.f32 %v2390, 1.0
        %v2557 = vadd.f32 %v2392, 1.0
        %v2558 = vadd.f32 %v2394, 1.0
        %v2559 = vadd.f32 %v2396, 1.0
        %v2560 = vadd.f32 %v2398, 1.0
        %v2561 = vadd.f32 %v2400, 1.0
        %v2562 = vadd.f32 %v2402, 1.0
        %v2563 = vadd.f32 %v2404, 1.0
        %v2564 = vadd.f32 %v2406, 1.0
        %v2565 = vadd.f32 %v2408, 1.0
        %v2566 = vadd.f32 %v2410, 1.0
        %v2567 = vadd.f32 %v2412, 1.0
        %v2568 = vadd.f32 %v2414, 1.0
        %v2569 = vadd.f32 %v2416, 1.0
        %v2570 = vadd.f32 %v2418, 1.0
        %v2571 = vadd.f32 %v2420, 1.0
        %v2572 = vadd.f32 %v2422, 1.0
        %v2573 = vadd.f32 %v2424, 1.0
        %v2574 = vadd.f32 %v2426, 1.0
        %v2575 = vadd.f32 %v2428, 1.0
        %v2576 = vadd.f32 %v2430, 1.0
        %v2577 = vadd.f32 %v2432, 1.0
        %v2578 = vadd.f32 %v2434, 1.0
        %v2579 = vadd.f32 %v2436, 1.0
        %v2580 = vadd.f32 %v2438, 1.0
        %v2581 = vadd.f32 %v2440, 1.0
        %v2582 = vadd.f32 %v2442, 1.0
        %v2583 = vadd.f32 %v2444, 1.0
        %v2584 = vadd.f32 %v2446, 1.0
        %v2585 = vadd.f32 %v2448, 1.0
        %v2586 = vadd.f32 %v2450, 1.0
        %v2587 = vadd.f32 %v2452, 1.0
        %v2588 = vadd.f32 %v2454, 1.0
        %v2589 = vadd.f32 %v2456, 1.0
        %v2590 = vadd.f32 %v2458, 1.0
        %v2591 = vadd.f32 %v2460, 1.0
        %v2592 = vadd.f32 %v2462, 1.0
        %v2593 = vadd.f32 %v2464, 1.0
        %v2594 = vadd.f32 %v2466, 1.0
        %v2595 = vadd.f32 %v2468, 1.0
        %v2596 = vadd.f32 %v2470, 1.0
        %v2597 = vadd.f32 %v2472, 1.0
        %v2598 = vadd.f32 %v2474, 1.0
        %v2599 = vadd.f32 %v2476, 1.0
        %v2600 = vadd.f32 %v2478, 1.0
        %v2601 = vadd.f32 %v2480, 1.0
        %v2602 = vadd.f32 %v2482, 1.0
        %v2603 = vadd.f32 %v2484, 1.0
        %v2604 = vadd.f32 %v2486, 1.0
        %v2605 = vadd.f32 %v2488, 1.0
        %v2606 = vadd.f32 %v2490, 1.0
        %v2607 = vadd.f32 %v2492, 1.0
        %v2608 = vadd.f32 %v2494, 1.0
        %v2609 = vadd.f32 %v2496, 1.0
        %v2610 = vadd.f32 %v2498, 1.0
        %v2611 = vadd.f32 %v2500, 1.0
        %v2612 = vadd.f32 %v2502, 1.0
        %v2613 = vadd.f32 %v2504, 1.0
        %v2614 = vadd.f32 %v2506, 1.0
        %v2615 = vadd.f32 %v2508, 1.0
        %v2616 = vadd.f32 %v2510, 1.0
        %v2617 = vadd.f32 %v2512, 1.0
        %v2618 = vadd.f32 %v2514, 1.0
        %v2619 = vadd.f32 %v2516, 1.0
        %v2620 = vadd.f32 %v2518, 1.0
        %v2621 = vadd.f32 %v2520, 1.0
        %v2622 = vadd.f32 %v2522, 1.0
        %v2623 = vadd.f32 %v2524, 1.0
        %v2624 = vadd.f32 %v2526, 1.0
        %v2625 = vadd.f32 %v2528, 1.0
        %v2626 = vadd.f32 %v2530, 1.0
        %v2627 = vrcp.pop %v2531
        %v2628 = vmul.f32 1.0, %v2627
        %v2629 = vrcp.pop %v2532
        %v2630 = vmul.f32 1.0, %v2629
        %v2631 = vrcp.pop %v2533
        %v2632 = vmul.f32 1.0, %v2631
        %v2633 = vrcp.pop %v2534
        %v2634 = vmul.f32 1.0, %v2633
        %v2635 = vrcp.pop %v2535
        %v2636 = vmul.f32 1.0, %v2635
        %v2637 = vrcp.pop %v2536
        %v2638 = vmul.f32 1.0, %v2637
        %v2639 = vrcp.pop %v2537
        %v2640 = vmul.f32 1.0, %v2639
        %v2641 = vrcp.pop %v2538
        %v2642 = vmul.f32 1.0, %v2641
        %v2643 = vrcp.pop %v2539
        %v2644 = vmul.f32 1.0, %v2643
        %v2645 = vrcp.pop %v2540
        %v2646 = vmul.f32 1.0, %v2645
        %v2647 = vrcp.pop %v2541
        %v2648 = vmul.f32 1.0, %v2647
        %v2649 = vrcp.pop %v2542
        %v2650 = vmul.f32 1.0, %v2649
        %v2651 = vrcp.pop %v2543
        %v2652 = vmul.f32 1.0, %v2651
        %v2653 = vrcp.pop %v2544
        %v2654 = vmul.f32 1.0, %v2653
        %v2655 = vrcp.pop %v2545
        %v2656 = vmul.f32 1.0, %v2655
        %v2657 = vrcp.pop %v2546
        %v2658 = vmul.f32 1.0, %v2657
        %v2659 = vrcp.pop %v2547
        %v2660 = vmul.f32 1.0, %v2659
        %v2661 = vrcp.pop %v2548
        %v2662 = vmul.f32 1.0, %v2661
        %v2663 = vrcp.pop %v2549
        %v2664 = vmul.f32 1.0, %v2663
        %v2665 = vrcp.pop %v2550
        %v2666 = vmul.f32 1.0, %v2665
        %v2667 = vrcp.pop %v2551
        %v2668 = vmul.f32 1.0, %v2667
        %v2669 = vrcp.pop %v2552
        %v2670 = vmul.f32 1.0, %v2669
        %v2671 = vrcp.pop %v2553
        %v2672 = vmul.f32 1.0, %v2671
        %v2673 = vrcp.pop %v2554
        %v2674 = vmul.f32 1.0, %v2673
        %v2675 = vrcp.pop %v2555
        %v2676 = vmul.f32 1.0, %v2675
        %v2677 = vrcp.pop %v2556
        %v2678 = vmul.f32 1.0, %v2677
        %v2679 = vrcp.pop %v2557
        %v2680 = vmul.f32 1.0, %v2679
        %v2681 = vrcp.pop %v2558
        %v2682 = vmul.f32 1.0, %v2681
        %v2683 = vrcp.pop %v2559
        %v2684 = vmul.f32 1.0, %v2683
        %v2685 = vrcp.pop %v2560
        %v2686 = vmul.f32 1.0, %v2685
        %v2687 = vrcp.pop %v2561
        %v2688 = vmul.f32 1.0, %v2687
        %v2689 = vrcp.pop %v2562
        %v2690 = vmul.f32 1.0, %v2689
        %v2691 = vrcp.pop %v2563
        %v2692 = vmul.f32 1.0, %v2691
        %v2693 = vrcp.pop %v2564
        %v2694 = vmul.f32 1.0, %v2693
        %v2695 = vrcp.pop %v2565
        %v2696 = vmul.f32 1.0, %v2695
        %v2697 = vrcp.pop %v2566
        %v2698 = vmul.f32 1.0, %v2697
        %v2699 = vrcp.pop %v2567
        %v2700 = vmul.f32 1.0, %v2699
        %v2701 = vrcp.pop %v2568
        %v2702 = vmul.f32 1.0, %v2701
        %v2703 = vrcp.pop %v2569
        %v2704 = vmul.f32 1.0, %v2703
        %v2705 = vrcp.pop %v2570
        %v2706 = vmul.f32 1.0, %v2705
        %v2707 = vrcp.pop %v2571
        %v2708 = vmul.f32 1.0, %v2707
        %v2709 = vrcp.pop %v2572
        %v2710 = vmul.f32 1.0, %v2709
        %v2711 = vrcp.pop %v2573
        %v2712 = vmul.f32 1.0, %v2711
        %v2713 = vrcp.pop %v2574
        %v2714 = vmul.f32 1.0, %v2713
        %v2715 = vrcp.pop %v2575
        %v2716 = vmul.f32 1.0, %v2715
        %v2717 = vrcp.pop %v2576
        %v2718 = vmul.f32 1.0, %v2717
        %v2719 = vrcp.pop %v2577
        %v2720 = vmul.f32 1.0, %v2719
        %v2721 = vrcp.pop %v2578
        %v2722 = vmul.f32 1.0, %v2721
        %v2723 = vrcp.pop %v2579
        %v2724 = vmul.f32 1.0, %v2723
        %v2725 = vrcp.pop %v2580
        %v2726 = vmul.f32 1.0, %v2725
        %v2727 = vrcp.pop %v2581
        %v2728 = vmul.f32 1.0, %v2727
        %v2729 = vrcp.pop %v2582
        %v2730 = vmul.f32 1.0, %v2729
        %v2731 = vrcp.pop %v2583
        %v2732 = vmul.f32 1.0, %v2731
        %v2733 = vrcp.pop %v2584
        %v2734 = vmul.f32 1.0, %v2733
        %v2735 = vrcp.pop %v2585
        %v2736 = vmul.f32 1.0, %v2735
        %v2737 = vrcp.pop %v2586
        %v2738 = vmul.f32 1.0, %v2737
        %v2739 = vrcp.pop %v2587
        %v2740 = vmul.f32 1.0, %v2739
        %v2741 = vrcp.pop %v2588
        %v2742 = vmul.f32 1.0, %v2741
        %v2743 = vrcp.pop %v2589
        %v2744 = vmul.f32 1.0, %v2743
        %v2745 = vrcp.pop %v2590
        %v2746 = vmul.f32 1.0, %v2745
        %v2747 = vrcp.pop %v2591
        %v2748 = vmul.f32 1.0, %v2747
        %v2749 = vrcp.pop %v2592
        %v2750 = vmul.f32 1.0, %v2749
        %v2751 = vrcp.pop %v2593
        %v2752 = vmul.f32 1.0, %v2751
        %v2753 = vrcp.pop %v2594
        %v2754 = vmul.f32 1.0, %v2753
        %v2755 = vrcp.pop %v2595
        %v2756 = vmul.f32 1.0, %v2755
        %v2757 = vrcp.pop %v2596
        %v2758 = vmul.f32 1.0, %v2757
        %v2759 = vrcp.pop %v2597
        %v2760 = vmul.f32 1.0, %v2759
        %v2761 = vrcp.pop %v2598
        %v2762 = vmul.f32 1.0, %v2761
        %v2763 = vrcp.pop %v2599
        %v2764 = vmul.f32 1.0, %v2763
        %v2765 = vrcp.pop %v2600
        %v2766 = vmul.f32 1.0, %v2765
        %v2767 = vrcp.pop %v2601
        %v2768 = vmul.f32 1.0, %v2767
        %v2769 = vrcp.pop %v2602
        %v2770 = vmul.f32 1.0, %v2769
        %v2771 = vrcp.pop %v2603
        %v2772 = vmul.f32 1.0, %v2771
        %v2773 = vrcp.pop %v2604
        %v2774 = vmul.f32 1.0, %v2773
        %v2775 = vrcp.pop %v2605
        %v2776 = vmul.f32 1.0, %v2775
        %v2777 = vrcp.pop %v2606
        %v2778 = vmul.f32 1.0, %v2777
        %v2779 = vrcp.pop %v2607
        %v2780 = vmul.f32 1.0, %v2779
        %v2781 = vrcp.pop %v2608
        %v2782 = vmul.f32 1.0, %v2781
        %v2783 = vrcp.pop %v2609
        %v2784 = vmul.f32 1.0, %v2783
        %v2785 = vrcp.pop %v2610
        %v2786 = vmul.f32 1.0, %v2785
        %v2787 = vrcp.pop %v2611
        %v2788 = vmul.f32 1.0, %v2787
        %v2789 = vrcp.pop %v2612
        %v2790 = vmul.f32 1.0, %v2789
        %v2791 = vrcp.pop %v2613
        %v2792 = vmul.f32 1.0, %v2791
        %v2793 = vrcp.pop %v2614
        %v2794 = vmul.f32 1.0, %v2793
        %v2795 = vrcp.pop %v2615
        %v2796 = vmul.f32 1.0, %v2795
        %v2797 = vrcp.pop %v2616
        %v2798 = vmul.f32 1.0, %v2797
        %v2799 = vrcp.pop %v2617
        %v2800 = vmul.f32 1.0, %v2799
        %v2801 = vrcp.pop %v2618
        %v2802 = vmul.f32 1.0, %v2801
        %v2803 = vrcp.pop %v2619
        %v2804 = vmul.f32 1.0, %v2803
        %v2805 = vrcp.pop %v2620
        %v2806 = vmul.f32 1.0, %v2805
        %v2807 = vrcp.pop %v2621
        %v2808 = vmul.f32 1.0, %v2807
        %v2809 = vrcp.pop %v2622
        %v2810 = vmul.f32 1.0, %v2809
        %v2811 = vrcp.pop %v2623
        %v2812 = vmul.f32 1.0, %v2811
        %v2813 = vrcp.pop %v2624
        %v2814 = vmul.f32 1.0, %v2813
        %v2815 = vrcp.pop %v2625
        %v2816 = vmul.f32 1.0, %v2815
        %v2817 = vrcp.pop %v2626
        %v2818 = vmul.f32 1.0, %v2817
        %v2819 = vmul.f32 %v1763, %v2628
        %v2820 = vmul.f32 %v1765, %v2630
        %v2821 = vmul.f32 %v2117, %v2632
        %v2822 = vmul.f32 %v1767, %v2634
        %v2823 = vmul.f32 %v1769, %v2636
        %v2824 = vmul.f32 %v2120, %v2638
        %v2825 = vmul.f32 %v1773, %v2640
        %v2826 = vmul.f32 %v1775, %v2642
        %v2827 = vmul.f32 %v2125, %v2644
        %v2828 = vmul.f32 %v1777, %v2646
        %v2829 = vmul.f32 %v1779, %v2648
        %v2830 = vmul.f32 %v2128, %v2650
        %v2831 = vmul.f32 %v1783, %v2652
        %v2832 = vmul.f32 %v1785, %v2654
        %v2833 = vmul.f32 %v2133, %v2656
        %v2834 = vmul.f32 %v1787, %v2658
        %v2835 = vmul.f32 %v1789, %v2660
        %v2836 = vmul.f32 %v2136, %v2662
        %v2837 = vmul.f32 %v1793, %v2664
        %v2838 = vmul.f32 %v1795, %v2666
        %v2839 = vmul.f32 %v2141, %v2668
        %v2840 = vmul.f32 %v1797, %v2670
        %v2841 = vmul.f32 %v1799, %v2672
        %v2842 = vmul.f32 %v2144, %v2674
        %v2843 = vmul.f32 %v1803, %v2676
        %v2844 = vmul.f32 %v1805, %v2678
        %v2845 = vmul.f32 %v2149, %v2680
        %v2846 = vmul.f32 %v1807, %v2682
        %v2847 = vmul.f32 %v1809, %v2684
        %v2848 = vmul.f32 %v2152, %v2686
        %v2849 = vmul.f32 %v1813, %v2688
        %v2850 = vmul.f32 %v1815, %v2690
        %v2851 = vmul.f32 %v2157, %v2692
        %v2852 = vmul.f32 %v1817, %v2694
        %v2853 = vmul.f32 %v1819, %v2696
        %v2854 = vmul.f32 %v2160, %v2698
        %v2855 = vmul.f32 %v1823, %v2700
        %v2856 = vmul.f32 %v1825, %v2702
        %v2857 = vmul.f32 %v2165, %v2704
        %v2858 = vmul.f32 %v1827, %v2706
        %v2859 = vmul.f32 %v1829, %v2708
        %v2860 = vmul.f32 %v2168, %v2710
        %v2861 = vmul.f32 %v1833, %v2712
        %v2862 = vmul.f32 %v1835, %v2714
        %v2863 = vmul.f32 %v2173, %v2716
        %v2864 = vmul.f32 %v1837, %v2718
        %v2865 = vmul.f32 %v1839, %v2720
        %v2866 = vmul.f32 %v2176, %v2722
        %v2867 = vmul.f32 %v1843, %v2724
        %v2868 = vmul.f32 %v1845, %v2726
        %v2869 = vmul.f32 %v2181, %v2728
        %v2870 = vmul.f32 %v1847, %v2730
        %v2871 = vmul.f32 %v1849, %v2732
        %v2872 = vmul.f32 %v2184, %v2734
        %v2873 = vmul.f32 %v1853, %v2736
        %v2874 = vmul.f32 %v1855, %v2738
        %v2875 = vmul.f32 %v2189, %v2740
        %v2876 = vmul.f32 %v1857, %v2742
        %v2877 = vmul.f32 %v1859, %v2744
        %v2878 = vmul.f32 %v2192, %v2746
        %v2879 = vmul.f32 %v1863, %v2748
        %v2880 = vmul.f32 %v1865, %v2750
        %v2881 = vmul.f32 %v2197, %v2752
        %v2882 = vmul.f32 %v1867, %v2754
        %v2883 = vmul.f32 %v1869, %v2756
        %v2884 = vmul.f32 %v2200, %v2758
        %v2885 = vmul.f32 %v1873, %v2760
        %v2886 = vmul.f32 %v1875, %v2762
        %v2887 = vmul.f32 %v2205, %v2764
        %v2888 = vmul.f32 %v1877, %v2766
        %v2889 = vmul.f32 %v1879, %v2768
        %v2890 = vmul.f32 %v2208, %v2770
        %v2891 = vmul.f32 %v1883, %v2772
        %v2892 = vmul.f32 %v1885, %v2774
        %v2893 = vmul.f32 %v2213, %v2776
        %v2894 = vmul.f32 %v1887, %v2778
        %v2895 = vmul.f32 %v1889, %v2780
        %v2896 = vmul.f32 %v2216, %v2782
        %v2897 = vmul.f32 %v1893, %v2784
        %v2898 = vmul.f32 %v1895, %v2786
        %v2899 = vmul.f32 %v2221, %v2788
        %v2900 = vmul.f32 %v1897, %v2790
        %v2901 = vmul.f32 %v1899, %v2792
        %v2902 = vmul.f32 %v2224, %v2794
        %v2903 = vmul.f32 %v1903, %v2796
        %v2904 = vmul.f32 %v1905, %v2798
        %v2905 = vmul.f32 %v2229, %v2800
        %v2906 = vmul.f32 %v1907, %v2802
        %v2907 = vmul.f32 %v1909, %v2804
        %v2908 = vmul.f32 %v2232, %v2806
        %v2909 = vmul.f32 %v1913, %v2808
        %v2910 = vmul.f32 %v1915, %v2810
        %v2911 = vmul.f32 %v2237, %v2812
        %v2912 = vmul.f32 %v1917, %v2814
        %v2913 = vmul.f32 %v1919, %v2816
        %v2914 = vmul.f32 %v2240, %v2818
        %v2915 = vpack.c.bf16 %v2822, %v2819
        %v2916 = vpack.c.bf16 %v2823, %v2820
        %v2917 = vpack.c.bf16 %v2824, %v2821
        %v2918 = vpack.c.bf16 %v2828, %v2825
        %v2919 = vpack.c.bf16 %v2829, %v2826
        %v2920 = vpack.c.bf16 %v2830, %v2827
        %v2921 = vpack.c.bf16 %v2834, %v2831
        %v2922 = vpack.c.bf16 %v2835, %v2832
        %v2923 = vpack.c.bf16 %v2836, %v2833
        %v2924 = vpack.c.bf16 %v2840, %v2837
        %v2925 = vpack.c.bf16 %v2841, %v2838
        %v2926 = vpack.c.bf16 %v2842, %v2839
        %v2927 = vpack.c.bf16 %v2846, %v2843
        %v2928 = vpack.c.bf16 %v2847, %v2844
        %v2929 = vpack.c.bf16 %v2848, %v2845
        %v2930 = vpack.c.bf16 %v2852, %v2849
        %v2931 = vpack.c.bf16 %v2853, %v2850
        %v2932 = vpack.c.bf16 %v2854, %v2851
        %v2933 = vpack.c.bf16 %v2858, %v2855
        %v2934 = vpack.c.bf16 %v2859, %v2856
        %v2935 = vpack.c.bf16 %v2860, %v2857
        %v2936 = vpack.c.bf16 %v2864, %v2861
        %v2937 = vpack.c.bf16 %v2865, %v2862
        %v2938 = vpack.c.bf16 %v2866, %v2863
        %v2939 = vpack.c.bf16 %v2870, %v2867
        %v2940 = vpack.c.bf16 %v2871, %v2868
        %v2941 = vpack.c.bf16 %v2872, %v2869
        %v2942 = vpack.c.bf16 %v2876, %v2873
        %v2943 = vpack.c.bf16 %v2877, %v2874
        %v2944 = vpack.c.bf16 %v2878, %v2875
        %v2945 = vpack.c.bf16 %v2882, %v2879
        %v2946 = vpack.c.bf16 %v2883, %v2880
        %v2947 = vpack.c.bf16 %v2884, %v2881
        %v2948 = vpack.c.bf16 %v2888, %v2885
        %v2949 = vpack.c.bf16 %v2889, %v2886
        %v2950 = vpack.c.bf16 %v2890, %v2887
        %v2951 = vpack.c.bf16 %v2894, %v2891
        %v2952 = vpack.c.bf16 %v2895, %v2892
        %v2953 = vpack.c.bf16 %v2896, %v2893
        %v2954 = vpack.c.bf16 %v2900, %v2897
        %v2955 = vpack.c.bf16 %v2901, %v2898
        %v2956 = vpack.c.bf16 %v2902, %v2899
        %v2957 = vpack.c.bf16 %v2906, %v2903
        %v2958 = vpack.c.bf16 %v2907, %v2904
        %v2959 = vpack.c.bf16 %v2908, %v2905
        %v2960 = vpack.c.bf16 %v2912, %v2909
        %v2961 = vpack.c.bf16 %v2913, %v2910
        %v2962 = vpack.c.bf16 %v2914, %v2911
        %v2963 = vld [vmem:[%s4] sm:$0xf]
        %v2964 = vld [vmem:[%s4 + $0x4] sm:$0xf]
        %v2965 = vld [vmem:[%s4 + $0x8] sm:$0xf]
        %v2966 = vld [vmem:[%s4 + $0xc] sm:$0xf]
        %v2967 = vld [vmem:[%s4 + $0x10] sm:$0xf]
        %v2968 = vld [vmem:[%s4 + $0x14] sm:$0xf]
        %v2969 = vld [vmem:[%s4 + $0x18] sm:$0xf]
        %v2970 = vld [vmem:[%s4 + $0x1c] sm:$0xf]
        %v2971 = vld [vmem:[%s4 + $0x20] sm:$0xf]
        %v2972 = vld [vmem:[%s4 + $0x24] sm:$0xf]
        %v2973 = vld [vmem:[%s4 + $0x28] sm:$0xf]
        %v2974 = vld [vmem:[%s4 + $0x2c] sm:$0xf]
        %v2975 = vld [vmem:[%s4 + $0x30] sm:$0xf]
        %v2976 = vld [vmem:[%s4 + $0x34] sm:$0xf]
        %v2977 = vld [vmem:[%s4 + $0x38] sm:$0xf]
        %v2978 = vld [vmem:[%s4 + $0x3c] sm:$0xf]
        %v2979 = vld [vmem:[%s4 + $0x40] sm:$0xf]
        %v2980 = vld [vmem:[%s4 + $0x44] sm:$0xf]
        %v2981 = vld [vmem:[%s4 + $0x48] sm:$0xf]
        %v2982 = vld [vmem:[%s4 + $0x4c] sm:$0xf]
        %v2983 = vld [vmem:[%s4 + $0x50] sm:$0xf]
        %v2984 = vld [vmem:[%s4 + $0x54] sm:$0xf]
        %v2985 = vld [vmem:[%s4 + $0x58] sm:$0xf]
        %v2986 = vld [vmem:[%s4 + $0x5c] sm:$0xf]
        %v2987 = vld [vmem:[%s4 + $0x60] sm:$0xf]
        %v2988 = vld [vmem:[%s4 + $0x64] sm:$0xf]
        %v2989 = vld [vmem:[%s4 + $0x68] sm:$0xf]
        %v2990 = vld [vmem:[%s4 + $0x6c] sm:$0xf]
        %v2991 = vld [vmem:[%s4 + $0x70] sm:$0xf]
        %v2992 = vld [vmem:[%s4 + $0x74] sm:$0xf]
        %v2993 = vld [vmem:[%s4 + $0x78] sm:$0xf]
        %v2994 = vld [vmem:[%s4 + $0x7c] sm:$0xf]
        %v2995 = vld [vmem:[%s4 + $0x80] sm:$0xf]
        %v2996 = vld [vmem:[%s4 + $0x84] sm:$0xf]
        %v2997 = vld [vmem:[%s4 + $0x88] sm:$0xf]
        %v2998 = vld [vmem:[%s4 + $0x8c] sm:$0xf]
        %v2999 = vld [vmem:[%s4 + $0x90] sm:$0xf]
        %v3000 = vld [vmem:[%s4 + $0x94] sm:$0xf]
        %v3001 = vld [vmem:[%s4 + $0x98] sm:$0xf]
        %v3002 = vld [vmem:[%s4 + $0x9c] sm:$0xf]
        %v3003 = vld [vmem:[%s4 + $0xa0] sm:$0xf]
        %v3004 = vld [vmem:[%s4 + $0xa4] sm:$0xf]
        %v3005 = vld [vmem:[%s4 + $0xa8] sm:$0xf]
        %v3006 = vld [vmem:[%s4 + $0xac] sm:$0xf]
        %v3007 = vld [vmem:[%s4 + $0xb0] sm:$0xf]
        %v3008 = vld [vmem:[%s4 + $0xb4] sm:$0xf]
        %v3009 = vld [vmem:[%s4 + $0xb8] sm:$0xf]
        %v3010 = vld [vmem:[%s4 + $0xbc] sm:$0xf]
        %v3011 = vld [vmem:[%s5] sm:$0x1]
        %v3013 = vlaneseq
        %v3014 = vshrl.u32 %v3013, 7
        %v3015 = vsub.s32 0, %v3014
        %v3016 = vrot.slane %v3011, %v3015
        %v3066 = vunpack.c.l.b16 %v2963
        %v3067 = vunpack.c.l.b16 %v2964
        %v3068 = vunpack.c.l.b16 %v2965
        %v3069 = vunpack.c.l.b16 %v2966
        %v3070 = vunpack.c.l.b16 %v2967
        %v3071 = vunpack.c.l.b16 %v2968
        %v3072 = vunpack.c.l.b16 %v2969
        %v3073 = vunpack.c.l.b16 %v2970
        %v3074 = vunpack.c.l.b16 %v2971
        %v3075 = vunpack.c.l.b16 %v2972
        %v3076 = vunpack.c.l.b16 %v2973
        %v3077 = vunpack.c.l.b16 %v2974
        %v3078 = vunpack.c.l.b16 %v2975
        %v3079 = vunpack.c.l.b16 %v2976
        %v3080 = vunpack.c.l.b16 %v2977
        %v3081 = vunpack.c.l.b16 %v2978
        %v3082 = vunpack.c.l.b16 %v2979
        %v3083 = vunpack.c.l.b16 %v2980
        %v3084 = vunpack.c.l.b16 %v2981
        %v3085 = vunpack.c.l.b16 %v2982
        %v3086 = vunpack.c.l.b16 %v2983
        %v3087 = vunpack.c.l.b16 %v2984
        %v3088 = vunpack.c.l.b16 %v2985
        %v3089 = vunpack.c.l.b16 %v2986
        %v3090 = vunpack.c.l.b16 %v2987
        %v3091 = vunpack.c.l.b16 %v2988
        %v3092 = vunpack.c.l.b16 %v2989
        %v3093 = vunpack.c.l.b16 %v2990
        %v3094 = vunpack.c.l.b16 %v2991
        %v3095 = vunpack.c.l.b16 %v2992
        %v3096 = vunpack.c.l.b16 %v2993
        %v3097 = vunpack.c.l.b16 %v2994
        %v3098 = vunpack.c.l.b16 %v2995
        %v3099 = vunpack.c.l.b16 %v2996
        %v3100 = vunpack.c.l.b16 %v2997
        %v3101 = vunpack.c.l.b16 %v2998
        %v3102 = vunpack.c.l.b16 %v2999
        %v3103 = vunpack.c.l.b16 %v3000
        %v3104 = vunpack.c.l.b16 %v3001
        %v3105 = vunpack.c.l.b16 %v3002
        %v3106 = vunpack.c.l.b16 %v3003
        %v3107 = vunpack.c.l.b16 %v3004
        %v3108 = vunpack.c.l.b16 %v3005
        %v3109 = vunpack.c.l.b16 %v3006
        %v3110 = vunpack.c.l.b16 %v3007
        %v3111 = vunpack.c.l.b16 %v3008
        %v3112 = vunpack.c.l.b16 %v3009
        %v3113 = vunpack.c.l.b16 %v3010
        %v3114 = vpack.c.b16 %v3067, %v3066
        %v3115 = vpack.c.b16 %v3069, %v3068
        %v3116 = vpack.c.b16 %v3071, %v3070
        %v3117 = vpack.c.b16 %v3073, %v3072
        %v3118 = vpack.c.b16 %v3075, %v3074
        %v3119 = vpack.c.b16 %v3077, %v3076
        %v3120 = vpack.c.b16 %v3079, %v3078
        %v3121 = vpack.c.b16 %v3081, %v3080
        %v3122 = vpack.c.b16 %v3083, %v3082
        %v3123 = vpack.c.b16 %v3085, %v3084
        %v3124 = vpack.c.b16 %v3087, %v3086
        %v3125 = vpack.c.b16 %v3089, %v3088
        %v3126 = vpack.c.b16 %v3091, %v3090
        %v3127 = vpack.c.b16 %v3093, %v3092
        %v3128 = vpack.c.b16 %v3095, %v3094
        %v3129 = vpack.c.b16 %v3097, %v3096
        %v3130 = vpack.c.b16 %v3099, %v3098
        %v3131 = vpack.c.b16 %v3101, %v3100
        %v3132 = vpack.c.b16 %v3103, %v3102
        %v3133 = vpack.c.b16 %v3105, %v3104
        %v3134 = vpack.c.b16 %v3107, %v3106
        %v3135 = vpack.c.b16 %v3109, %v3108
        %v3136 = vpack.c.b16 %v3111, %v3110
        %v3137 = vpack.c.b16 %v3113, %v3112
        %3162 = vmatprep.subr.bf16.mxu0 0
        %3163 = vmatpush1.bf16.msra.mxu0 %v3121
        %3164 = vmatprep.subr.bf16.mxu0 0
        %3165 = vmatpush1.bf16.msra.mxu0 %v3120
        %3166 = vmatprep.subr.bf16.mxu0 0
        %3167 = vmatpush1.bf16.msra.mxu0 %v3119
        %3168 = vmatprep.subr.bf16.mxu0 0
        %3169 = vmatpush1.bf16.msra.mxu0 %v3118
        %3170 = vmatprep.subr.bf16.mxu0 0
        %3171 = vmatpush1.bf16.msra.mxu0 %v3117
        %3172 = vmatprep.subr.bf16.mxu0 0
        %3173 = vmatpush1.bf16.msra.mxu0 %v3116
        %3174 = vmatprep.subr.bf16.mxu0 0
        %3175 = vmatpush1.bf16.msra.mxu0 %v3115
        %3176 = vmatprep.subr.bf16.mxu0 0
        %3177 = vmatpush1.bf16.msra.mxu0 %v3114
        %3178 = vmatprep.subr.bf16.mxu0 0
        %3179 = vmatpush2.bf16.msra.mxu0 %v3129
        %3180 = vmatprep.subr.bf16.mxu0 0
        %3181 = vmatpush2.bf16.msra.mxu0 %v3128
        %3182 = vmatprep.subr.bf16.mxu0 0
        %3183 = vmatpush2.bf16.msra.mxu0 %v3127
        %3184 = vmatprep.subr.bf16.mxu0 0
        %3185 = vmatpush2.bf16.msra.mxu0 %v3126
        %3186 = vmatprep.subr.bf16.mxu0 0
        %3187 = vmatpush2.bf16.msra.mxu0 %v3125
        %3188 = vmatprep.subr.bf16.mxu0 0
        %3189 = vmatpush2.bf16.msra.mxu0 %v3124
        %3190 = vmatprep.subr.bf16.mxu0 0
        %3191 = vmatpush2.bf16.msra.mxu0 %v3123
        %3192 = vmatprep.subr.bf16.mxu0 0
        %3193 = vmatpush2.bf16.msra.mxu0 %v3122
        %3194 = vmatprep.mubr.bf16.mxu0 %v2916
        %3195 = vmatmul.mubr.bf16.gmra.mxu0 %v2915
        %v3196 = vpop.f32.mrf.mxu0
        %v3197 = vadd.f32 %v3016, %v3196
        %v3198 = vpop.f32.mrf.mxu0
        %v3199 = vpop.f32.mrf.mxu0
        %v3200 = vadd.f32 %v3016, %v3199
        %v3201 = vpop.f32.mrf.mxu0
        %3202 = vmatprep.mubr.bf16.mxu0 %v2919
        %3203 = vmatmul.mubr.bf16.gmra.mxu0 %v2918
        %v3204 = vpop.f32.mrf.mxu0
        %v3205 = vadd.f32 %v3016, %v3204
        %v3206 = vpop.f32.mrf.mxu0
        %v3207 = vpop.f32.mrf.mxu0
        %v3208 = vadd.f32 %v3016, %v3207
        %v3209 = vpop.f32.mrf.mxu0
        %3210 = vmatprep.mubr.bf16.mxu0 %v2922
        %3211 = vmatmul.mubr.bf16.gmra.mxu0 %v2921
        %v3212 = vpop.f32.mrf.mxu0
        %v3213 = vadd.f32 %v3016, %v3212
        %v3214 = vpop.f32.mrf.mxu0
        %v3215 = vpop.f32.mrf.mxu0
        %v3216 = vadd.f32 %v3016, %v3215
        %v3217 = vpop.f32.mrf.mxu0
        %3218 = vmatprep.mubr.bf16.mxu0 %v2925
        %3219 = vmatmul.mubr.bf16.gmra.mxu0 %v2924
        %v3220 = vpop.f32.mrf.mxu0
        %v3221 = vadd.f32 %v3016, %v3220
        %v3222 = vpop.f32.mrf.mxu0
        %v3223 = vpop.f32.mrf.mxu0
        %v3224 = vadd.f32 %v3016, %v3223
        %v3225 = vpop.f32.mrf.mxu0
        %3226 = vmatprep.mubr.bf16.mxu0 %v2928
        %3227 = vmatmul.mubr.bf16.gmra.mxu0 %v2927
        %v3228 = vpop.f32.mrf.mxu0
        %v3229 = vadd.f32 %v3016, %v3228
        %v3230 = vpop.f32.mrf.mxu0
        %v3231 = vpop.f32.mrf.mxu0
        %v3232 = vadd.f32 %v3016, %v3231
        %v3233 = vpop.f32.mrf.mxu0
        %3234 = vmatprep.mubr.bf16.mxu0 %v2931
        %3235 = vmatmul.mubr.bf16.gmra.mxu0 %v2930
        %v3236 = vpop.f32.mrf.mxu0
        %v3237 = vadd.f32 %v3016, %v3236
        %v3238 = vpop.f32.mrf.mxu0
        %v3239 = vpop.f32.mrf.mxu0
        %v3240 = vadd.f32 %v3016, %v3239
        %v3241 = vpop.f32.mrf.mxu0
        %3242 = vmatprep.mubr.bf16.mxu0 %v2934
        %3243 = vmatmul.mubr.bf16.gmra.mxu0 %v2933
        %v3244 = vpop.f32.mrf.mxu0
        %v3245 = vadd.f32 %v3016, %v3244
        %v3246 = vpop.f32.mrf.mxu0
        %v3247 = vpop.f32.mrf.mxu0
        %v3248 = vadd.f32 %v3016, %v3247
        %v3249 = vpop.f32.mrf.mxu0
        %3250 = vmatprep.mubr.bf16.mxu0 %v2937
        %3251 = vmatmul.mubr.bf16.gmra.mxu0 %v2936
        %v3252 = vpop.f32.mrf.mxu0
        %v3253 = vadd.f32 %v3016, %v3252
        %v3254 = vpop.f32.mrf.mxu0
        %v3255 = vpop.f32.mrf.mxu0
        %v3256 = vadd.f32 %v3016, %v3255
        %v3257 = vpop.f32.mrf.mxu0
        %3258 = vmatprep.mubr.bf16.mxu0 %v2940
        %3259 = vmatmul.mubr.bf16.gmra.mxu0 %v2939
        %v3260 = vpop.f32.mrf.mxu0
        %v3261 = vadd.f32 %v3016, %v3260
        %v3262 = vpop.f32.mrf.mxu0
        %v3263 = vpop.f32.mrf.mxu0
        %v3264 = vadd.f32 %v3016, %v3263
        %v3265 = vpop.f32.mrf.mxu0
        %3266 = vmatprep.mubr.bf16.mxu0 %v2943
        %3267 = vmatmul.mubr.bf16.gmra.mxu0 %v2942
        %v3268 = vpop.f32.mrf.mxu0
        %v3269 = vadd.f32 %v3016, %v3268
        %v3270 = vpop.f32.mrf.mxu0
        %v3271 = vpop.f32.mrf.mxu0
        %v3272 = vadd.f32 %v3016, %v3271
        %v3273 = vpop.f32.mrf.mxu0
        %3274 = vmatprep.mubr.bf16.mxu0 %v2946
        %3275 = vmatmul.mubr.bf16.gmra.mxu0 %v2945
        %v3276 = vpop.f32.mrf.mxu0
        %v3277 = vadd.f32 %v3016, %v3276
        %v3278 = vpop.f32.mrf.mxu0
        %v3279 = vpop.f32.mrf.mxu0
        %v3280 = vadd.f32 %v3016, %v3279
        %v3281 = vpop.f32.mrf.mxu0
        %3282 = vmatprep.mubr.bf16.mxu0 %v2949
        %3283 = vmatmul.mubr.bf16.gmra.mxu0 %v2948
        %v3284 = vpop.f32.mrf.mxu0
        %v3285 = vadd.f32 %v3016, %v3284
        %v3286 = vpop.f32.mrf.mxu0
        %v3287 = vpop.f32.mrf.mxu0
        %v3288 = vadd.f32 %v3016, %v3287
        %v3289 = vpop.f32.mrf.mxu0
        %3290 = vmatprep.mubr.bf16.mxu0 %v2952
        %3291 = vmatmul.mubr.bf16.gmra.mxu0 %v2951
        %v3292 = vpop.f32.mrf.mxu0
        %v3293 = vadd.f32 %v3016, %v3292
        %v3294 = vpop.f32.mrf.mxu0
        %v3295 = vpop.f32.mrf.mxu0
        %v3296 = vadd.f32 %v3016, %v3295
        %v3297 = vpop.f32.mrf.mxu0
        %3298 = vmatprep.mubr.bf16.mxu0 %v2955
        %3299 = vmatmul.mubr.bf16.gmra.mxu0 %v2954
        %v3300 = vpop.f32.mrf.mxu0
        %v3301 = vadd.f32 %v3016, %v3300
        %v3302 = vpop.f32.mrf.mxu0
        %v3303 = vpop.f32.mrf.mxu0
        %v3304 = vadd.f32 %v3016, %v3303
        %v3305 = vpop.f32.mrf.mxu0
        %3306 = vmatprep.mubr.bf16.mxu0 %v2958
        %3307 = vmatmul.mubr.bf16.gmra.mxu0 %v2957
        %v3308 = vpop.f32.mrf.mxu0
        %v3309 = vadd.f32 %v3016, %v3308
        %v3310 = vpop.f32.mrf.mxu0
        %v3311 = vpop.f32.mrf.mxu0
        %v3312 = vadd.f32 %v3016, %v3311
        %v3313 = vpop.f32.mrf.mxu0
        %3314 = vmatprep.mubr.bf16.mxu0 %v2961
        %3315 = vmatmul.mubr.bf16.gmra.mxu0 %v2960
        %v3316 = vpop.f32.mrf.mxu0
        %v3317 = vadd.f32 %v3016, %v3316
        %v3318 = vpop.f32.mrf.mxu0
        %v3319 = vpop.f32.mrf.mxu0
        %v3320 = vadd.f32 %v3016, %v3319
        %v3321 = vpop.f32.mrf.mxu0
        %3322 = vdwg.mxu0
        %3323 = vmatprep.subr.bf16.mxu0 0
        %3324 = vmatpush1.bf16.msra.mxu0 %v3137
        %3325 = vmatprep.subr.bf16.mxu0 0
        %3326 = vmatpush1.bf16.msra.mxu0 %v3136
        %3327 = vmatprep.subr.bf16.mxu0 0
        %3328 = vmatpush1.bf16.msra.mxu0 %v3135
        %3329 = vmatprep.subr.bf16.mxu0 0
        %3330 = vmatpush1.bf16.msra.mxu0 %v3134
        %3331 = vmatprep.subr.bf16.mxu0 0
        %3332 = vmatpush1.bf16.msra.mxu0 %v3133
        %3333 = vmatprep.subr.bf16.mxu0 0
        %3334 = vmatpush1.bf16.msra.mxu0 %v3132
        %3335 = vmatprep.subr.bf16.mxu0 0
        %3336 = vmatpush1.bf16.msra.mxu0 %v3131
        %3337 = vmatprep.subr.bf16.mxu0 0
        %3338 = vmatpush1.bf16.msra.mxu0 %v3130
        %3339 = vmatprep.subr.bf16.mxu0 0
        %3340 = vmatpush2.bf16.msra.mxu0 0
        %3341 = vmatprep.subr.bf16.mxu0 0
        %3342 = vmatpush2.bf16.msra.mxu0 0
        %3343 = vmatprep.subr.bf16.mxu0 0
        %3344 = vmatpush2.bf16.msra.mxu0 0
        %3345 = vmatprep.subr.bf16.mxu0 0
        %3346 = vmatpush2.bf16.msra.mxu0 0
        %3347 = vmatprep.subr.bf16.mxu0 0
        %3348 = vmatpush2.bf16.msra.mxu0 0
        %3349 = vmatprep.subr.bf16.mxu0 0
        %3350 = vmatpush2.bf16.msra.mxu0 0
        %3351 = vmatprep.subr.bf16.mxu0 0
        %3352 = vmatpush2.bf16.msra.mxu0 0
        %3353 = vmatprep.subr.bf16.mxu0 0
        %3354 = vmatpush2.bf16.msra.mxu0 0
        %3355 = vmatprep.mubr.bf16.mxu0 0
        %3356 = vmatmul.mubr.bf16.gmra.mxu0 %v2917
        %v3357 = vpop.f32.mrf.mxu0
        %v3358 = vadd.f32 %v3197, %v3357
        %v3359 = vpop.f32.mrf.mxu0
        %v3360 = vpop.f32.mrf.mxu0
        %v3361 = vadd.f32 %v3200, %v3360
        %v3362 = vpop.f32.mrf.mxu0
        %3363 = vmatprep.mubr.bf16.mxu0 0
        %3364 = vmatmul.mubr.bf16.gmra.mxu0 %v2920
        %v3365 = vpop.f32.mrf.mxu0
        %v3366 = vadd.f32 %v3205, %v3365
        %v3367 = vpop.f32.mrf.mxu0
        %v3368 = vpop.f32.mrf.mxu0
        %v3369 = vadd.f32 %v3208, %v3368
        %v3370 = vpop.f32.mrf.mxu0
        %3371 = vmatprep.mubr.bf16.mxu0 0
        %3372 = vmatmul.mubr.bf16.gmra.mxu0 %v2923
        %v3373 = vpop.f32.mrf.mxu0
        %v3374 = vadd.f32 %v3213, %v3373
        %v3375 = vpop.f32.mrf.mxu0
        %v3376 = vpop.f32.mrf.mxu0
        %v3377 = vadd.f32 %v3216, %v3376
        %v3378 = vpop.f32.mrf.mxu0
        %3379 = vmatprep.mubr.bf16.mxu0 0
        %3380 = vmatmul.mubr.bf16.gmra.mxu0 %v2926
        %v3381 = vpop.f32.mrf.mxu0
        %v3382 = vadd.f32 %v3221, %v3381
        %v3383 = vpop.f32.mrf.mxu0
        %v3384 = vpop.f32.mrf.mxu0
        %v3385 = vadd.f32 %v3224, %v3384
        %v3386 = vpop.f32.mrf.mxu0
        %3387 = vmatprep.mubr.bf16.mxu0 0
        %3388 = vmatmul.mubr.bf16.gmra.mxu0 %v2929
        %v3389 = vpop.f32.mrf.mxu0
        %v3390 = vadd.f32 %v3229, %v3389
        %v3391 = vpop.f32.mrf.mxu0
        %v3392 = vpop.f32.mrf.mxu0
        %v3393 = vadd.f32 %v3232, %v3392
        %v3394 = vpop.f32.mrf.mxu0
        %3395 = vmatprep.mubr.bf16.mxu0 0
        %3396 = vmatmul.mubr.bf16.gmra.mxu0 %v2932
        %v3397 = vpop.f32.mrf.mxu0
        %v3398 = vadd.f32 %v3237, %v3397
        %v3399 = vpop.f32.mrf.mxu0
        %v3400 = vpop.f32.mrf.mxu0
        %v3401 = vadd.f32 %v3240, %v3400
        %v3402 = vpop.f32.mrf.mxu0
        %3403 = vmatprep.mubr.bf16.mxu0 0
        %3404 = vmatmul.mubr.bf16.gmra.mxu0 %v2935
        %v3405 = vpop.f32.mrf.mxu0
        %v3406 = vadd.f32 %v3245, %v3405
        %v3407 = vpop.f32.mrf.mxu0
        %v3408 = vpop.f32.mrf.mxu0
        %v3409 = vadd.f32 %v3248, %v3408
        %v3410 = vpop.f32.mrf.mxu0
        %3411 = vmatprep.mubr.bf16.mxu0 0
        %3412 = vmatmul.mubr.bf16.gmra.mxu0 %v2938
        %v3413 = vpop.f32.mrf.mxu0
        %v3414 = vadd.f32 %v3253, %v3413
        %v3415 = vpop.f32.mrf.mxu0
        %v3416 = vpop.f32.mrf.mxu0
        %v3417 = vadd.f32 %v3256, %v3416
        %v3418 = vpop.f32.mrf.mxu0
        %3419 = vmatprep.mubr.bf16.mxu0 0
        %3420 = vmatmul.mubr.bf16.gmra.mxu0 %v2941
        %v3421 = vpop.f32.mrf.mxu0
        %v3422 = vadd.f32 %v3261, %v3421
        %v3423 = vpop.f32.mrf.mxu0
        %v3424 = vpop.f32.mrf.mxu0
        %v3425 = vadd.f32 %v3264, %v3424
        %v3426 = vpop.f32.mrf.mxu0
        %3427 = vmatprep.mubr.bf16.mxu0 0
        %3428 = vmatmul.mubr.bf16.gmra.mxu0 %v2944
        %v3429 = vpop.f32.mrf.mxu0
        %v3430 = vadd.f32 %v3269, %v3429
        %v3431 = vpop.f32.mrf.mxu0
        %v3432 = vpop.f32.mrf.mxu0
        %v3433 = vadd.f32 %v3272, %v3432
        %v3434 = vpop.f32.mrf.mxu0
        %3435 = vmatprep.mubr.bf16.mxu0 0
        %3436 = vmatmul.mubr.bf16.gmra.mxu0 %v2947
        %v3437 = vpop.f32.mrf.mxu0
        %v3438 = vadd.f32 %v3277, %v3437
        %v3439 = vpop.f32.mrf.mxu0
        %v3440 = vpop.f32.mrf.mxu0
        %v3441 = vadd.f32 %v3280, %v3440
        %v3442 = vpop.f32.mrf.mxu0
        %3443 = vmatprep.mubr.bf16.mxu0 0
        %3444 = vmatmul.mubr.bf16.gmra.mxu0 %v2950
        %v3445 = vpop.f32.mrf.mxu0
        %v3446 = vadd.f32 %v3285, %v3445
        %v3447 = vpop.f32.mrf.mxu0
        %v3448 = vpop.f32.mrf.mxu0
        %v3449 = vadd.f32 %v3288, %v3448
        %v3450 = vpop.f32.mrf.mxu0
        %3451 = vmatprep.mubr.bf16.mxu0 0
        %3452 = vmatmul.mubr.bf16.gmra.mxu0 %v2953
        %v3453 = vpop.f32.mrf.mxu0
        %v3454 = vadd.f32 %v3293, %v3453
        %v3455 = vpop.f32.mrf.mxu0
        %v3456 = vpop.f32.mrf.mxu0
        %v3457 = vadd.f32 %v3296, %v3456
        %v3458 = vpop.f32.mrf.mxu0
        %3459 = vmatprep.mubr.bf16.mxu0 0
        %3460 = vmatmul.mubr.bf16.gmra.mxu0 %v2956
        %v3461 = vpop.f32.mrf.mxu0
        %v3462 = vadd.f32 %v3301, %v3461
        %v3463 = vpop.f32.mrf.mxu0
        %v3464 = vpop.f32.mrf.mxu0
        %v3465 = vadd.f32 %v3304, %v3464
        %v3466 = vpop.f32.mrf.mxu0
        %3467 = vmatprep.mubr.bf16.mxu0 0
        %3468 = vmatmul.mubr.bf16.gmra.mxu0 %v2959
        %v3469 = vpop.f32.mrf.mxu0
        %v3470 = vadd.f32 %v3309, %v3469
        %v3471 = vpop.f32.mrf.mxu0
        %v3472 = vpop.f32.mrf.mxu0
        %v3473 = vadd.f32 %v3312, %v3472
        %v3474 = vpop.f32.mrf.mxu0
        %3475 = vmatprep.mubr.bf16.mxu0 0
        %3476 = vmatmul.mubr.bf16.gmra.mxu0 %v2962
        %v3477 = vpop.f32.mrf.mxu0
        %v3478 = vadd.f32 %v3317, %v3477
        %v3479 = vpop.f32.mrf.mxu0
        %v3480 = vpop.f32.mrf.mxu0
        %v3481 = vadd.f32 %v3320, %v3480
        %v3482 = vpop.f32.mrf.mxu0
        %3483 = vdwg.mxu0
        %3484 = vst [vmem:[%s260] sm:$0xff] %v3358
        %3485 = vst [vmem:[%s260 + $0x8] sm:$0xff] %v3361
        %3486 = vst [vmem:[%s260 + $0x10] sm:$0xff] %v3366
        %3487 = vst [vmem:[%s260 + $0x18] sm:$0xff] %v3369
        %3488 = vst [vmem:[%s260 + $0x20] sm:$0xff] %v3374
        %3489 = vst [vmem:[%s260 + $0x28] sm:$0xff] %v3377
        %3490 = vst [vmem:[%s260 + $0x30] sm:$0xff] %v3382
        %3491 = vst [vmem:[%s260 + $0x38] sm:$0xff] %v3385
        %3492 = vst [vmem:[%s260 + $0x40] sm:$0xff] %v3390
        %3493 = vst [vmem:[%s260 + $0x48] sm:$0xff] %v3393
        %3494 = vst [vmem:[%s260 + $0x50] sm:$0xff] %v3398
        %3495 = vst [vmem:[%s260 + $0x58] sm:$0xff] %v3401
        %3496 = vst [vmem:[%s260 + $0x60] sm:$0xff] %v3406
        %3497 = vst [vmem:[%s260 + $0x68] sm:$0xff] %v3409
        %3498 = vst [vmem:[%s260 + $0x70] sm:$0xff] %v3414
        %3499 = vst [vmem:[%s260 + $0x78] sm:$0xff] %v3417
        %3500 = vst [vmem:[%s260 + $0x80] sm:$0xff] %v3422
        %3501 = vst [vmem:[%s260 + $0x88] sm:$0xff] %v3425
        %3502 = vst [vmem:[%s260 + $0x90] sm:$0xff] %v3430
        %3503 = vst [vmem:[%s260 + $0x98] sm:$0xff] %v3433
        %3504 = vst [vmem:[%s260 + $0xa0] sm:$0xff] %v3438
        %3505 = vst [vmem:[%s260 + $0xa8] sm:$0xff] %v3441
        %3506 = vst [vmem:[%s260 + $0xb0] sm:$0xff] %v3446
        %3507 = vst [vmem:[%s260 + $0xb8] sm:$0xff] %v3449
        %3508 = vst [vmem:[%s260 + $0xc0] sm:$0xff] %v3454
        %3509 = vst [vmem:[%s260 + $0xc8] sm:$0xff] %v3457
        %3510 = vst [vmem:[%s260 + $0xd0] sm:$0xff] %v3462
        %3511 = vst [vmem:[%s260 + $0xd8] sm:$0xff] %v3465
        %3512 = vst [vmem:[%s260 + $0xe0] sm:$0xff] %v3470
        %3513 = vst [vmem:[%s260 + $0xe8] sm:$0xff] %v3473
        %3514 = vst [vmem:[%s260 + $0xf0] sm:$0xff] %v3478
        %3515 = vst [vmem:[%s260 + $0xf8] sm:$0xff] %v3481
        %s3516 = sand.u32 %s160, 1
        %s3517 = scalar_lea.sflag [#allocation4], %s3516
        %s3518 = sand.u32 %s160, 1
        %s3519 = smul.addr %s3518, 256
        %s3520 = scalar_lea.vmem [#allocation5], %s3519
        // Predicated region
        $region49: #{tpu_custom_call.1} parent=43 // pred_check
          %p3521 = pneg %p170
        $region50: #{tpu_custom_call.1} parent=43 // pred_check_branch
          %3523 = sbr.rel (%p3521) target = $region52
        $region51: #{tpu_custom_call.1} parent=43 // pred_region
          %s3524 = smul.u32 32, %s21
          %s3526 = ssub.s32 4096, 4096
          %3527 = vsyncadd %s3517, %s3526
          %s3528 = smul.addr %s3524, 128
          %s3529 = scalar_lea.hbm %s6, %s3528
          %s3530 = sshll.u32 %s3520, 4
          %s3531 = int_to_ptr.vmem [resolvable:$true] %s3530
          %3536 = dma.vmem_to_hbm [thread:$0]  %s3531, 4096, %s3529, %s3517, 128, 128, 8
        $region52: #{tpu_custom_call.1} parent=43 // pred_fallthru
          _
      $region44: #{tpu_custom_call.1} parent=5 // pred_fallthru
        _
      %p3537 = scmp.le.s32.totalorder 2, %s16
      // Predicated region
      $region53: #{tpu_custom_call.1} parent=5 // pred_check
        %p3538 = pneg %p3537
      $region54: #{tpu_custom_call.1} parent=5 // pred_check_branch
        %3540 = sbr.rel (%p3538) target = $region56
      $region55: #{tpu_custom_call.1} parent=5 // pred_region
        %s3541 = ssub.s32 %s16, 2
        // Predicated region
        $region57: #{tpu_custom_call.1} parent=55 // pred_check
          %p3542 = pneg %p176
        $region58: #{tpu_custom_call.1} parent=55 // pred_check_branch
          %3544 = sbr.rel (%p3542) target = $region60
        $region59: #{tpu_custom_call.1} parent=55 // pred_region
          %s3545 = sand.u32 %s161, 1
          %s3546 = scalar_lea.sflag [#allocation4], %s3545
          %s3547 = sand.u32 %s161, 1
          %s3548 = smul.addr %s3547, 256
          %s3549 = scalar_lea.vmem [#allocation5], %s3548
          %3550 = dma.done %s3546, 4096
        $region60: #{tpu_custom_call.1} parent=55 // pred_fallthru
          _
      $region56: #{tpu_custom_call.1} parent=5 // pred_fallthru
        _
    $region6: #{tpu_custom_call.1} parent=1 // loop_footer
      %s20 = sadd.s32 1, %s16
    $region7: #{tpu_custom_call.1} parent=1 // loop_footer_branch
      %15 = sbr.rel target = $region3
    $region8: #{tpu_custom_call.1} parent=1 // loop_exit
      _
    %3551 = vsyncpa [#allocation3], 1
    %s3552 = scalar_lea.sflag [#allocation3], 1
    %3553 = vsyncpa %s3552, 1
    %3554 = vsyncpa [#allocation4], 1
    %s3555 = scalar_lea.sflag [#allocation4], 1
    %3556 = vsyncpa %s3555, 1

</llo_original>
